<compile_context>
chip_gen: v7x
topology: tpu7x:2x2x1
jax: 0.10.0
libtpu: 0.0.40
codegen_flags: <defaults>
</compile_context>

<pallas_src>
import functools
import math

import jax
import jax.numpy as jnp
from jax.experimental import pallas as pl
from jax.experimental.pallas import tpu as pltpu


# ----------------------------------------------------------------------------
# Pallas kernel
# ----------------------------------------------------------------------------
def _upformer_attn_kernel(band_ref, kv_ref, sel_ref, wo_ref, bo_ref, gm_ref,
                          gam_ref, bet_ref, o_ref, *, ksize, band_rows, w,
                          heads, s2, eps):
    """One row-band of tokens: in-kernel unfold (k*k shifted slabs of the
    halo'd image band), ONE fused logits|V projection matmul, softmax over the
    k*k neighbourhood, ONE lane-dense selector matmul for the per-query
    weighted-V sums, then centered bf16 out-projection + grouped LayerNorm."""
    kk = ksize * ksize
    tn = band_rows * w                       # tokens in this tile
    c2 = band_ref.shape[-1]                  # C + 2  (raw | mask | ones)
    hs2 = heads * s2
    c = kv_ref.shape[1] - hs2                # C

    # --- in-kernel unfold + fused K/V projection (ONE matmul) ----------------
    slabs = []
    for kh in range(ksize):
        for kw in range(ksize):
            slabs.append(
                band_ref[0, kh:kh + band_rows, kw:kw + w, :].reshape(tn, c2))
    xcat = jnp.concatenate(slabs, axis=0)                         # (kk*tn, C+2) bf16
    lv = jnp.dot(xcat, kv_ref[...],
                 preferred_element_type=jnp.float32)              # (kk*tn, hs2+C)
    logits = lv[:, :hs2].reshape(kk, tn, hs2)                     # (kk, tn, hs2)
    vall = lv[:, hs2:]                                            # (kk*tn, C)

    # --- softmax over the kk neighbourhood axis (f32, approx reciprocal) -----
    m = jnp.max(logits, axis=0)                                   # (tn, hs2)
    e = jnp.exp(logits - m[None])
    denom = jnp.sum(e, axis=0)
    probs = e * pl.reciprocal(denom, approx=True)[None]           # (kk, tn, hs2)

    # --- per-query weighted V sums: ONE lane-dense selector matmul -----------
    wcat = jnp.dot(probs.reshape(kk * tn, hs2).astype(jnp.bfloat16),
                   sel_ref[...],
                   preferred_element_type=jnp.float32)            # (kk*tn, s2*C)
    vtile = jnp.tile(vall, (1, s2))                               # (kk*tn, s2*C)
    acc = jnp.sum((wcat * vtile).reshape(kk, tn, s2 * c), axis=0)  # (tn, s2*C)

    # --- centered block-diag out-projection + grouped LayerNorm (bf16 MXU) ---
    # wo_ref already has the per-group LayerNorm mean subtracted (host fold),
    # so yc == y - mean_group(y).
    yc = jnp.dot(acc.astype(jnp.bfloat16), wo_ref[...],
                 preferred_element_type=jnp.float32) + bo_ref[...]  # (tn, s2*od)
    sq = yc * yc                                                  # square in f32
    var = jnp.dot(sq.astype(jnp.bfloat16), gm_ref[...],
                  preferred_element_type=jnp.float32)             # group mean of sq
    o_ref[...] = yc * jax.lax.rsqrt(var + eps) * gam_ref[...] + bet_ref[...]


# ----------------------------------------------------------------------------
# pallas_call wrapper
# ----------------------------------------------------------------------------
def _full_spec(shape):
    nd = len(shape)
    return pl.BlockSpec(shape, lambda i, _nd=nd: (0,) * _nd)


def upformer_attention(bands, kv_mat, sel_cat, wo_c, bo_c, gmean, gamma_t,
                       beta_t, *, ksize, band_rows, w_img, heads, s2,
                       eps=1e-5):
    g, brh, wp, c2 = bands.shape
    tile_n = band_rows * w_img
    ocols = wo_c.shape[1]                    # s2 * out_dim (lane-dense, 128)
    n = g * tile_n
    kernel = functools.partial(_upformer_attn_kernel, ksize=ksize,
                               band_rows=band_rows, w=w_img, heads=heads,
                               s2=s2, eps=eps)
    return pl.pallas_call(
        kernel,
        grid=(g,),
        in_specs=[pl.BlockSpec((1, brh, wp, c2), lambda i: (i, 0, 0, 0)),
                  _full_spec(kv_mat.shape), _full_spec(sel_cat.shape),
                  _full_spec(wo_c.shape), _full_spec(bo_c.shape),
                  _full_spec(gmean.shape),
                  _full_spec(gamma_t.shape), _full_spec(beta_t.shape)],
        out_specs=pl.BlockSpec((tile_n, ocols), lambda i: (i, 0)),
        # NOTE(v5e): switching this to bf16 halves output writeback if the
        # consumer accepts it; kept f32 here for the correctness check.
        out_shape=jax.ShapeDtypeStruct((n, ocols), jnp.float32),
        compiler_params=pltpu.CompilerParams(
            dimension_semantics=("parallel",),
            vmem_limit_bytes=48 * 1024 * 1024),
    )(bands, kv_mat, sel_cat, wo_c, bo_c, gmean, gamma_t, beta_t)


# ----------------------------------------------------------------------------
# Glue (padded image + banded halos, host-side algebraic folds, final reshapes)
# ----------------------------------------------------------------------------
def upformer_forward(x_nchw, params, *, heads, scale, kernel_size, band_rows):
    hp = jax.lax.Precision.HIGHEST
    b, c, h, w = x_nchw.shape
    s2 = scale * scale
    pad = (kernel_size - 1) // 2
    hd = c // heads
    od = params["wo"].shape[1]
    assert h % band_rows == 0
    n_bands = h // band_rows

    # pre_norm == Identity (post_norm=True in the reference module)
    x_nhwc = jnp.transpose(x_nchw, (0, 2, 3, 1))

    # Zero-padded NHWC image with [raw C | validity-mask | const-1] channels.
    # The mask channel carries the to_k/to_v conv biases (0 at zero-padded
    # border patch entries, matching unfold-after-conv); the const-1 channel
    # carries the attention-projection / aux-zeros bias constants.
    maskc = jnp.ones((b, h, w, 1), jnp.float32)
    xm_p = jnp.pad(jnp.concatenate([x_nhwc, maskc], axis=-1),
                   ((0, 0), (pad, pad), (pad, pad), (0, 0)))
    ones_p = jnp.ones((b, h + 2 * pad, w + 2 * pad, 1), jnp.float32)
    img = jnp.concatenate([xm_p, ones_p], axis=-1).astype(jnp.bfloat16)

    # Overlapping row bands with a `pad`-row halo: the kernel unfolds in VMEM,
    # so HBM input traffic is ~(band_rows+2p)/band_rows of the image (vs 9x).
    bands = jnp.stack(
        [img[:, i * band_rows: i * band_rows + band_rows + 2 * pad]
         for i in range(n_bands)], axis=1)
    bands = bands.reshape(b * n_bands, band_rows + 2 * pad, w + 2 * pad, c + 2)

    # --- host-side algebraic folds (all tiny matrices, f32 HIGHEST) ----------
    # query side -> block-diagonal per-head logit matrix (carries 1/sqrt(hd))
    q = jnp.dot(params["up_query"][0], params["wq_att"],
                precision=hp) + params["bq_att"]                      # (s2, C)
    qh = (q.reshape(s2, heads, hd) / math.sqrt(hd)).transpose(1, 2, 0)  # (H,D,S2)
    qmat = jnp.einsum("hds,hg->hdgs", qh,
                      jnp.eye(heads, dtype=jnp.float32)).reshape(c, heads * s2)

    # K path fold:  logits_j = x_j @ A_x + mask_j*bk1 + 1*(bk1 + bk2)
    #   (interior: to_k bias counted twice as in the reference; border: only
    #    the aux_zeros bias term) -- intentional, matches the module.
    m_k = jnp.dot(params["wk_att"], qmat, precision=hp)               # (C,H*S2)
    a_x = jnp.dot(params["wk_conv"], m_k, precision=hp)               # (C,H*S2)
    bk1 = jnp.dot(params["bk_conv"], m_k, precision=hp)               # (H*S2,)
    bk2 = jnp.dot(params["bk_att"], qmat, precision=hp)               # (H*S2,)

    # V path fold:  v_j = x_j @ Wv_x + mask_j*bv1 + 1*bv_att
    wv_x = jnp.dot(params["wv_conv"], params["wv_att"], precision=hp)  # (C,C)
    bv1 = jnp.dot(params["bv_conv"], params["wv_att"], precision=hp)   # (C,)

    # Fused logits|V projection matrix: rows = [raw x | mask | ones],
    # columns = [heads*s2 logits | C values].
    kv_mat = jnp.concatenate(
        [jnp.concatenate([a_x, wv_x], axis=1),
         jnp.concatenate([bk1, bv1])[None, :],
         jnp.concatenate([bk1 + bk2, params["bv_att"]])[None, :]],
        axis=0).astype(jnp.bfloat16)                                  # (C+2, hs2+C)

    # Lane-dense selector: (probs @ sel_cat)[n, i*C + h*hd + d] == probs[n, h*s2+i]
    sel = jnp.einsum("gh,si,d->igshd",
                     jnp.eye(heads, dtype=jnp.float32),
                     jnp.eye(s2, dtype=jnp.float32),
                     jnp.ones((hd,), jnp.float32)).reshape(s2, heads * s2, c)
    sel_cat = jnp.transpose(sel, (1, 0, 2)).reshape(heads * s2, s2 * c)
    sel_cat = sel_cat.astype(jnp.bfloat16)                            # (hs2, s2*C)

    # Block-diag out-projection with the LayerNorm group-mean pre-subtracted,
    # the group-mean matrix for the variance, and tiled gamma/beta.
    wo_big = jnp.kron(jnp.eye(s2, dtype=jnp.float32), params["wo"])   # (s2*C, s2*od)
    bo_big = jnp.tile(params["bo"], s2)                               # (s2*od,)
    gmean = jnp.kron(jnp.eye(s2, dtype=jnp.float32),
                     jnp.ones((od, od), jnp.float32) / od)            # (s2*od, s2*od)
    proj = jnp.eye(s2 * od, dtype=jnp.float32) - gmean
    wo_c = jnp.dot(wo_big, proj, precision=hp).astype(jnp.bfloat16)
    bo_c = jnp.dot(bo_big, proj, precision=hp).reshape(1, s2 * od)
    gmean_b = gmean.astype(jnp.bfloat16)
    gamma_t = jnp.tile(params["ln_gamma"], s2).reshape(1, s2 * od)
    beta_t = jnp.tile(params["ln_beta"], s2).reshape(1, s2 * od)

    out2d = upformer_attention(bands, kv_mat, sel_cat, wo_c, bo_c, gmean_b,
                               gamma_t, beta_t, ksize=kernel_size,
                               band_rows=band_rows, w_img=w, heads=heads,
                               s2=s2)                                 # (N, s2*od)

    # (N, s2*od) -> (B, od, H*scale, W*scale) (matches the torch view/permute;
    # free view thanks to the lane-dense output layout).
    up = out2d.reshape(b, h, w, scale, scale, od)
    up = jnp.transpose(up, (0, 5, 1, 3, 2, 4)).reshape(b, od, h * scale, w * scale)
    return up


# ----------------------------------------------------------------------------
# Pure-JAX reference (for correctness check only)
# ----------------------------------------------------------------------------
def unfold_patches(y_nhwc, ksize, pad):
    """F.unfold(kernel=ksize, stride=1, padding=pad) arranged as
    (ksize*ksize, B*H*W, C) patch planes (row-major (kh, kw))."""
    b, h, w, c = y_nhwc.shape
    yp = jnp.pad(y_nhwc, ((0, 0), (pad, pad), (pad, pad), (0, 0)))
    planes = []
    for kh in range(ksize):
        for kw in range(ksize):
            planes.append(yp[:, kh:kh + h, kw:kw + w, :].reshape(b * h * w, c))
    return jnp.stack(planes, axis=0)


def upformer_reference(x_nchw, params, *, heads, scale, kernel_size):
    hp = jax.lax.Precision.HIGHEST
    b, c, h, w = x_nchw.shape
    s2 = scale * scale
    kk = kernel_size * kernel_size
    pad = (kernel_size - 1) // 2
    hd = c // heads
    n = b * h * w
    od = params["wo"].shape[1]

    x_nhwc = jnp.transpose(x_nchw, (0, 2, 3, 1))
    yk = jnp.einsum("bhwc,cd->bhwd", x_nhwc, params["wk_conv"],
                    precision=hp) + params["bk_conv"]
    yv = jnp.einsum("bhwc,cd->bhwd", x_nhwc, params["wv_conv"],
                    precision=hp) + params["bv_conv"]
    pk = jnp.transpose(unfold_patches(yk, kernel_size, pad), (1, 0, 2))  # (N,KK,C)
    pv = jnp.transpose(unfold_patches(yv, kernel_size, pad), (1, 0, 2))
    pk = pk + params["bk_conv"][None, None, :]

    qp = jnp.einsum("sc,cd->sd", params["up_query"][0], params["wq_att"],
                    precision=hp) + params["bq_att"]
    kp = jnp.einsum("nkc,cd->nkd", pk, params["wk_att"],
                    precision=hp) + params["bk_att"]
    vp = jnp.einsum("nkc,cd->nkd", pv, params["wv_att"],
                    precision=hp) + params["bv_att"]
    qh = qp.reshape(s2, heads, hd).transpose(1, 0, 2)                    # (H,S2,D)
    kh = kp.reshape(n, kk, heads, hd)
    vh = vp.reshape(n, kk, heads, hd)
    scores = jnp.einsum("hid,njhd->nhij", qh, kh, precision=hp) / math.sqrt(hd)
    attn = jax.nn.softmax(scores, axis=-1)
    out = jnp.einsum("nhij,njhd->nihd", attn, vh, precision=hp).reshape(n, s2, c)
    y = jnp.einsum("nsc,cd->nsd", out, params["wo"], precision=hp) + params["bo"]
    mu = jnp.mean(y, axis=-1, keepdims=True)
    var = jnp.mean(jnp.square(y - mu), axis=-1, keepdims=True)
    y = (y - mu) * jax.lax.rsqrt(var + 1e-5) * params["ln_gamma"] + params["ln_beta"]
    up = y.reshape(b, h, w, scale, scale, od)
    up = jnp.transpose(up, (0, 5, 1, 3, 2, 4)).reshape(b, od, h * scale, w * scale)
    return up


# ----------------------------------------------------------------------------
# Main
# ----------------------------------------------------------------------------
if __name__ == "__main__":
    B, C, H, W = 2, 32, 16, 16        # in_dim = 32
    heads, scale, kernel_size = 4, 2, 3
    out_dim = 32
    # N = B*H*W = 512.  band_rows=8 -> tile_n = 8*16 = 128 tokens/step,
    # grid = B * H/band_rows = 4 (even and >= 4 => both v7x TensorCores busy
    # with pipeline overlap).  For real N, sweep band_rows upward (tile_n of
    # 512-1024) while keeping the padded-lane VMEM footprint under the
    # explicit vmem_limit_bytes.
    band_rows = 8

    key = jax.random.PRNGKey(0)
    ks = jax.random.split(key, 16)

    def nrm(k, shape, s=0.1):
        return (s * jax.random.normal(k, shape)).astype(jnp.float32)

    # Deterministic synthetic parameters (shapes follow the module __init__;
    # all linear/conv weights stored in "x @ W" orientation, i.e. (in, out)).
    params = dict(
        up_query=jax.random.normal(ks[0], (1, scale * scale, C),
                                   dtype=jnp.float32),
        wk_conv=nrm(ks[1], (C, C)), bk_conv=nrm(ks[2], (C,)),
        wv_conv=nrm(ks[3], (C, C)), bv_conv=nrm(ks[4], (C,)),
        wq_att=nrm(ks[5], (C, C)), bq_att=nrm(ks[6], (C,)),
        wk_att=nrm(ks[7], (C, C)), bk_att=nrm(ks[8], (C,)),
        wv_att=nrm(ks[9], (C, C)), bv_att=nrm(ks[10], (C,)),
        wo=nrm(ks[11], (C, out_dim)), bo=nrm(ks[12], (out_dim,)),
        ln_gamma=jnp.ones((out_dim,), jnp.float32),
        ln_beta=jnp.zeros((out_dim,), jnp.float32),
    )

    x = jax.random.normal(ks[13], (B, C, H, W), dtype=jnp.float32)

    out = upformer_forward(x, params, heads=heads, scale=scale,
                           kernel_size=kernel_size, band_rows=band_rows)
    out = jax.block_until_ready(out)

    ref = upformer_reference(x, params, heads=heads, scale=scale,
                             kernel_size=kernel_size)

    assert out.shape == (B, out_dim, H * scale, W * scale), out.shape
    max_err = float(jnp.max(jnp.abs(out - ref)))
    if max_err < 5e-2 and bool(jnp.all(jnp.isfinite(out))):
        print("KERNEL_OK")
    else:
        print(f"MISMATCH max_abs_err={max_err}")
</pallas_src>

<mosaic_0001>
module attributes {stable_mosaic.version = 11 : i64} {
  func.func @_upformer_attn_kernel(%arg0: i32, %arg1: memref<1x10x18x34xbf16, #tpu.memory_space<vmem>>, %arg2: memref<34x48xbf16, #tpu.memory_space<vmem>>, %arg3: memref<16x128xbf16, #tpu.memory_space<vmem>>, %arg4: memref<128x128xbf16, #tpu.memory_space<vmem>>, %arg5: memref<1x128xf32, #tpu.memory_space<vmem>>, %arg6: memref<128x128xbf16, #tpu.memory_space<vmem>>, %arg7: memref<1x128xf32, #tpu.memory_space<vmem>>, %arg8: memref<1x128xf32, #tpu.memory_space<vmem>>, %arg9: memref<128x128xf32, #tpu.memory_space<vmem>>) attributes {dimension_semantics = [#tpu.dimension_semantics<parallel>], iteration_bounds = array<i64: 4>, scalar_prefetch = 0 : i64, scratch_operands = 0 : i64, tpu.core_type = #tpu.core_type<tc>, window_params = [{transform_indices = @transform_0, window_bounds = array<i64: 1, 10, 18, 34>}, {pipeline_mode = #tpu.pipeline_mode<synchronous>, transform_indices = @transform_1, window_bounds = array<i64: 34, 48>}, {pipeline_mode = #tpu.pipeline_mode<synchronous>, transform_indices = @transform_2, window_bounds = array<i64: 16, 128>}, {pipeline_mode = #tpu.pipeline_mode<synchronous>, transform_indices = @transform_3, window_bounds = array<i64: 128, 128>}, {pipeline_mode = #tpu.pipeline_mode<synchronous>, transform_indices = @transform_4, window_bounds = array<i64: 1, 128>}, {pipeline_mode = #tpu.pipeline_mode<synchronous>, transform_indices = @transform_5, window_bounds = array<i64: 128, 128>}, {pipeline_mode = #tpu.pipeline_mode<synchronous>, transform_indices = @transform_6, window_bounds = array<i64: 1, 128>}, {pipeline_mode = #tpu.pipeline_mode<synchronous>, transform_indices = @transform_7, window_bounds = array<i64: 1, 128>}, {transform_indices = @transform_8, window_bounds = array<i64: 128, 128>}]} {
    %c0 = arith.constant 0 : index
    %c0_0 = arith.constant 0 : index
    %c0_1 = arith.constant 0 : index
    %c0_2 = arith.constant 0 : index
    %0 = vector.load %arg1[%c0, %c0_0, %c0_1, %c0_2] : memref<1x10x18x34xbf16, #tpu.memory_space<vmem>>, vector<1x8x16x34xbf16>
    %1 = vector.shape_cast %0 : vector<1x8x16x34xbf16> to vector<8x16x34xbf16>
    %2 = vector.shape_cast %1 : vector<8x16x34xbf16> to vector<128x34xbf16>
    %c0_3 = arith.constant 0 : index
    %c0_4 = arith.constant 0 : index
    %c1 = arith.constant 1 : index
    %c0_5 = arith.constant 0 : index
    %3 = vector.load %arg1[%c0_3, %c0_4, %c1, %c0_5] : memref<1x10x18x34xbf16, #tpu.memory_space<vmem>>, vector<1x8x16x34xbf16>
    %4 = vector.shape_cast %3 : vector<1x8x16x34xbf16> to vector<8x16x34xbf16>
    %5 = vector.shape_cast %4 : vector<8x16x34xbf16> to vector<128x34xbf16>
    %c0_6 = arith.constant 0 : index
    %c0_7 = arith.constant 0 : index
    %c2 = arith.constant 2 : index
    %c0_8 = arith.constant 0 : index
    %6 = vector.load %arg1[%c0_6, %c0_7, %c2, %c0_8] : memref<1x10x18x34xbf16, #tpu.memory_space<vmem>>, vector<1x8x16x34xbf16>
    %7 = vector.shape_cast %6 : vector<1x8x16x34xbf16> to vector<8x16x34xbf16>
    %8 = vector.shape_cast %7 : vector<8x16x34xbf16> to vector<128x34xbf16>
    %c0_9 = arith.constant 0 : index
    %c1_10 = arith.constant 1 : index
    %c0_11 = arith.constant 0 : index
    %c0_12 = arith.constant 0 : index
    %9 = vector.load %arg1[%c0_9, %c1_10, %c0_11, %c0_12] : memref<1x10x18x34xbf16, #tpu.memory_space<vmem>>, vector<1x8x16x34xbf16>
    %10 = vector.shape_cast %9 : vector<1x8x16x34xbf16> to vector<8x16x34xbf16>
    %11 = vector.shape_cast %10 : vector<8x16x34xbf16> to vector<128x34xbf16>
    %c0_13 = arith.constant 0 : index
    %c1_14 = arith.constant 1 : index
    %c1_15 = arith.constant 1 : index
    %c0_16 = arith.constant 0 : index
    %12 = vector.load %arg1[%c0_13, %c1_14, %c1_15, %c0_16] : memref<1x10x18x34xbf16, #tpu.memory_space<vmem>>, vector<1x8x16x34xbf16>
    %13 = vector.shape_cast %12 : vector<1x8x16x34xbf16> to vector<8x16x34xbf16>
    %14 = vector.shape_cast %13 : vector<8x16x34xbf16> to vector<128x34xbf16>
    %c0_17 = arith.constant 0 : index
    %c1_18 = arith.constant 1 : index
    %c2_19 = arith.constant 2 : index
    %c0_20 = arith.constant 0 : index
    %15 = vector.load %arg1[%c0_17, %c1_18, %c2_19, %c0_20] : memref<1x10x18x34xbf16, #tpu.memory_space<vmem>>, vector<1x8x16x34xbf16>
    %16 = vector.shape_cast %15 : vector<1x8x16x34xbf16> to vector<8x16x34xbf16>
    %17 = vector.shape_cast %16 : vector<8x16x34xbf16> to vector<128x34xbf16>
    %c0_21 = arith.constant 0 : index
    %c2_22 = arith.constant 2 : index
    %c0_23 = arith.constant 0 : index
    %c0_24 = arith.constant 0 : index
    %18 = vector.load %arg1[%c0_21, %c2_22, %c0_23, %c0_24] : memref<1x10x18x34xbf16, #tpu.memory_space<vmem>>, vector<1x8x16x34xbf16>
    %19 = vector.shape_cast %18 : vector<1x8x16x34xbf16> to vector<8x16x34xbf16>
    %20 = vector.shape_cast %19 : vector<8x16x34xbf16> to vector<128x34xbf16>
    %c0_25 = arith.constant 0 : index
    %c2_26 = arith.constant 2 : index
    %c1_27 = arith.constant 1 : index
    %c0_28 = arith.constant 0 : index
    %21 = vector.load %arg1[%c0_25, %c2_26, %c1_27, %c0_28] : memref<1x10x18x34xbf16, #tpu.memory_space<vmem>>, vector<1x8x16x34xbf16>
    %22 = vector.shape_cast %21 : vector<1x8x16x34xbf16> to vector<8x16x34xbf16>
    %23 = vector.shape_cast %22 : vector<8x16x34xbf16> to vector<128x34xbf16>
    %c0_29 = arith.constant 0 : index
    %c2_30 = arith.constant 2 : index
    %c2_31 = arith.constant 2 : index
    %c0_32 = arith.constant 0 : index
    %24 = vector.load %arg1[%c0_29, %c2_30, %c2_31, %c0_32] : memref<1x10x18x34xbf16, #tpu.memory_space<vmem>>, vector<1x8x16x34xbf16>
    %25 = vector.shape_cast %24 : vector<1x8x16x34xbf16> to vector<8x16x34xbf16>
    %26 = vector.shape_cast %25 : vector<8x16x34xbf16> to vector<128x34xbf16>
    %27 = tpu.concatenate %2, %5, %8, %11, %14, %17, %20, %23, %26 in 0 : vector<128x34xbf16>, vector<128x34xbf16>, vector<128x34xbf16>, vector<128x34xbf16>, vector<128x34xbf16>, vector<128x34xbf16>, vector<128x34xbf16>, vector<128x34xbf16>, vector<128x34xbf16> -> vector<1152x34xbf16>
    %c0_33 = arith.constant 0 : index
    %c0_34 = arith.constant 0 : index
    %28 = vector.load %arg2[%c0_33, %c0_34] : memref<34x48xbf16, #tpu.memory_space<vmem>>, vector<34x48xbf16>
    %cst = arith.constant dense<0.000000e+00> : vector<1152x48xf32>
    %29 = tpu.matmul %27, %28, %cst {dimension_numbers = #tpu.dot_dimension_numbers<[1], [0], [0], [1], [0, 0, 1, 1], [], []>} : vector<1152x34xbf16>, vector<34x48xbf16>, vector<1152x48xf32> -> vector<1152x48xf32>
    %30 = vector.extract_strided_slice %29 {offsets = [0, 0], sizes = [1152, 16], strides = [1, 1]} : vector<1152x48xf32> to vector<1152x16xf32>
    %31 = vector.shape_cast %30 : vector<1152x16xf32> to vector<9x128x16xf32>
    %32 = vector.extract_strided_slice %29 {offsets = [0, 16], sizes = [1152, 32], strides = [1, 1]} : vector<1152x48xf32> to vector<1152x32xf32>
    %cst_35 = arith.constant dense<0xFF800000> : vector<128x16xf32>
    %33 = vector.multi_reduction <maximumf>, %31, %cst_35 [0] : vector<9x128x16xf32> to vector<128x16xf32>
    %34 = vector.shape_cast %33 : vector<128x16xf32> to vector<1x128x16xf32>
    %35 = vector.broadcast %34 : vector<1x128x16xf32> to vector<9x128x16xf32>
    %36 = arith.subf %31, %35 : vector<9x128x16xf32>
    %37 = math.exp %36 : vector<9x128x16xf32>
    %cst_36 = arith.constant dense<0.000000e+00> : vector<128x16xf32>
    %38 = vector.multi_reduction <add>, %37, %cst_36 [0] : vector<9x128x16xf32> to vector<128x16xf32>
    %39 = tpu.reciprocal %38 {approx = true} : vector<128x16xf32> -> vector<128x16xf32>
    %40 = vector.shape_cast %39 : vector<128x16xf32> to vector<1x128x16xf32>
    %41 = vector.broadcast %40 : vector<1x128x16xf32> to vector<9x128x16xf32>
    %42 = arith.mulf %37, %41 : vector<9x128x16xf32>
    %43 = vector.shape_cast %42 : vector<9x128x16xf32> to vector<1152x16xf32>
    %44 = arith.truncf %43 : vector<1152x16xf32> to vector<1152x16xbf16>
    %c0_37 = arith.constant 0 : index
    %c0_38 = arith.constant 0 : index
    %45 = vector.load %arg3[%c0_37, %c0_38] : memref<16x128xbf16, #tpu.memory_space<vmem>>, vector<16x128xbf16>
    %cst_39 = arith.constant dense<0.000000e+00> : vector<1152x128xf32>
    %46 = tpu.matmul %44, %45, %cst_39 {dimension_numbers = #tpu.dot_dimension_numbers<[1], [0], [0], [1], [0, 0, 1, 1], [], []>} : vector<1152x16xbf16>, vector<16x128xbf16>, vector<1152x128xf32> -> vector<1152x128xf32>
    %47 = tpu.concatenate %32, %32, %32, %32 in 1 : vector<1152x32xf32>, vector<1152x32xf32>, vector<1152x32xf32>, vector<1152x32xf32> -> vector<1152x128xf32>
    %48 = arith.mulf %46, %47 : vector<1152x128xf32>
    %49 = vector.shape_cast %48 : vector<1152x128xf32> to vector<9x128x128xf32>
    %cst_40 = arith.constant dense<0.000000e+00> : vector<128x128xf32>
    %50 = vector.multi_reduction <add>, %49, %cst_40 [0] : vector<9x128x128xf32> to vector<128x128xf32>
    %51 = arith.truncf %50 : vector<128x128xf32> to vector<128x128xbf16>
    %c0_41 = arith.constant 0 : index
    %c0_42 = arith.constant 0 : index
    %52 = vector.load %arg4[%c0_41, %c0_42] : memref<128x128xbf16, #tpu.memory_space<vmem>>, vector<128x128xbf16>
    %cst_43 = arith.constant dense<0.000000e+00> : vector<128x128xf32>
    %53 = tpu.matmul %51, %52, %cst_43 {dimension_numbers = #tpu.dot_dimension_numbers<[1], [0], [0], [1], [0, 0, 1, 1], [], []>} : vector<128x128xbf16>, vector<128x128xbf16>, vector<128x128xf32> -> vector<128x128xf32>
    %c0_44 = arith.constant 0 : index
    %c0_45 = arith.constant 0 : index
    %54 = vector.load %arg5[%c0_44, %c0_45] : memref<1x128xf32, #tpu.memory_space<vmem>>, vector<1x128xf32>
    %55 = vector.broadcast %54 : vector<1x128xf32> to vector<128x128xf32>
    %56 = arith.addf %53, %55 : vector<128x128xf32>
    %57 = arith.mulf %56, %56 : vector<128x128xf32>
    %58 = arith.truncf %57 : vector<128x128xf32> to vector<128x128xbf16>
    %c0_46 = arith.constant 0 : index
    %c0_47 = arith.constant 0 : index
    %59 = vector.load %arg6[%c0_46, %c0_47] : memref<128x128xbf16, #tpu.memory_space<vmem>>, vector<128x128xbf16>
    %cst_48 = arith.constant dense<0.000000e+00> : vector<128x128xf32>
    %60 = tpu.matmul %58, %59, %cst_48 {dimension_numbers = #tpu.dot_dimension_numbers<[1], [0], [0], [1], [0, 0, 1, 1], [], []>} : vector<128x128xbf16>, vector<128x128xbf16>, vector<128x128xf32> -> vector<128x128xf32>
    %cst_49 = arith.constant 9.99999974E-6 : f32
    %61 = vector.broadcast %cst_49 : f32 to vector<128x128xf32>
    %62 = arith.addf %60, %61 : vector<128x128xf32>
    %63 = math.rsqrt %62 : vector<128x128xf32>
    %64 = arith.mulf %56, %63 : vector<128x128xf32>
    %c0_50 = arith.constant 0 : index
    %c0_51 = arith.constant 0 : index
    %65 = vector.load %arg7[%c0_50, %c0_51] : memref<1x128xf32, #tpu.memory_space<vmem>>, vector<1x128xf32>
    %66 = vector.broadcast %65 : vector<1x128xf32> to vector<128x128xf32>
    %67 = arith.mulf %64, %66 : vector<128x128xf32>
    %c0_52 = arith.constant 0 : index
    %c0_53 = arith.constant 0 : index
    %68 = vector.load %arg8[%c0_52, %c0_53] : memref<1x128xf32, #tpu.memory_space<vmem>>, vector<1x128xf32>
    %69 = vector.broadcast %68 : vector<1x128xf32> to vector<128x128xf32>
    %70 = arith.addf %67, %69 : vector<128x128xf32>
    %c0_54 = arith.constant 0 : index
    %c0_55 = arith.constant 0 : index
    %71 = vector.load %arg9[%c0_54, %c0_55] : memref<128x128xf32, #tpu.memory_space<vmem>>, vector<128x128xf32>
    tpu.vector_store %arg9[%c0_54, %c0_55], %70 {strides = array<i32>} : memref<128x128xf32, #tpu.memory_space<vmem>>, vector<128x128xf32>,
    return
  }
  func.func @transform_0(%arg0: i32) -> (i32, i32, i32, i32) {
    %c0_i32 = arith.constant 0 : i32
    %c0_i32_0 = arith.constant 0 : i32
    %c0_i32_1 = arith.constant 0 : i32
    %c0_i32_2 = arith.constant 0 : i32
    return %arg0, %c0_i32, %c0_i32_0, %c0_i32_1 : i32, i32, i32, i32
  }
  func.func @transform_1(%arg0: i32) -> (i32, i32) {
    %c0_i32 = arith.constant 0 : i32
    %c0_i32_0 = arith.constant 0 : i32
    %c0_i32_1 = arith.constant 0 : i32
    return %c0_i32, %c0_i32_0 : i32, i32
  }
  func.func @transform_2(%arg0: i32) -> (i32, i32) {
    %c0_i32 = arith.constant 0 : i32
    %c0_i32_0 = arith.constant 0 : i32
    %c0_i32_1 = arith.constant 0 : i32
    return %c0_i32, %c0_i32_0 : i32, i32
  }
  func.func @transform_3(%arg0: i32) -> (i32, i32) {
    %c0_i32 = arith.constant 0 : i32
    %c0_i32_0 = arith.constant 0 : i32
    %c0_i32_1 = arith.constant 0 : i32
    return %c0_i32, %c0_i32_0 : i32, i32
  }
  func.func @transform_4(%arg0: i32) -> (i32, i32) {
    %c0_i32 = arith.constant 0 : i32
    %c0_i32_0 = arith.constant 0 : i32
    %c0_i32_1 = arith.constant 0 : i32
    return %c0_i32, %c0_i32_0 : i32, i32
  }
  func.func @transform_5(%arg0: i32) -> (i32, i32) {
    %c0_i32 = arith.constant 0 : i32
    %c0_i32_0 = arith.constant 0 : i32
    %c0_i32_1 = arith.constant 0 : i32
    return %c0_i32, %c0_i32_0 : i32, i32
  }
  func.func @transform_6(%arg0: i32) -> (i32, i32) {
    %c0_i32 = arith.constant 0 : i32
    %c0_i32_0 = arith.constant 0 : i32
    %c0_i32_1 = arith.constant 0 : i32
    return %c0_i32, %c0_i32_0 : i32, i32
  }
  func.func @transform_7(%arg0: i32) -> (i32, i32) {
    %c0_i32 = arith.constant 0 : i32
    %c0_i32_0 = arith.constant 0 : i32
    %c0_i32_1 = arith.constant 0 : i32
    return %c0_i32, %c0_i32_0 : i32, i32
  }
  func.func @transform_8(%arg0: i32) -> (i32, i32) {
    %c0_i32 = arith.constant 0 : i32
    %c0_i32_0 = arith.constant 0 : i32
    return %arg0, %c0_i32 : i32, i32
  }
}

</mosaic_0001>

<llo_original>
// kernel: tpu_custom_call.1
$region0: #{tpu_custom_call.1}
  #allocation0 [shape = 'u32[]', space=smem, size = 0x4, offset = 0x4, fixed_abs, tag = 'smem constant byte address 0x4 - core index']
  #allocation1 [shape = 'u32[144,128]{1,0:T(1,128)}', space=vmem, size = 0x12000, scoped, tag = 'internal scratch']
  %s0 = inlined_call_operand.vmem [shape: bf16[4,10,18,34], index: 0, kind: input, shape index: {}]
  %s1 = inlined_call_operand.vmem [shape: bf16[34,48], index: 1, kind: input, shape index: {}]
  %s2 = inlined_call_operand.vmem [shape: bf16[16,128], index: 2, kind: input, shape index: {}]
  %s3 = inlined_call_operand.vmem [shape: bf16[128,128], index: 3, kind: input, shape index: {}]
  %s4 = inlined_call_operand.vmem [shape: f32[1,128], index: 4, kind: input, shape index: {}]
  %s5 = inlined_call_operand.vmem [shape: bf16[128,128], index: 5, kind: input, shape index: {}]
  %s6 = inlined_call_operand.vmem [shape: f32[1,128], index: 6, kind: input, shape index: {}]
  %s7 = inlined_call_operand.vmem [shape: f32[1,128], index: 7, kind: input, shape index: {}]
  %s8 = inlined_call_operand.hbm [shape: f32[512,128], index: 8, kind: output, shape index: {}]
  %s9 = sld [smem:[#allocation0]]
  $region65: #{tpu_custom_call.1} parent=0
    _
  %s11 = ssub.s32 1, %s9
  %s12 = scalar_select 0, %s11, %s9
  $region1: #{tpu_custom_call.1} parent=0
    #allocation2 [shape = 'u8[131072]{0}', space=vmem, size = 0x20000, scoped, tag = 'output window, operand 0']
    #allocation3 [shape = 's32[2]{0}', space=sflag, size = 0x8, scoped, tag = 'scoped memory for tpu_custom_call.1']
    %13 = vsyncpa [#allocation3], 0
    %s14 = scalar_lea.sflag [#allocation3], 1
    %15 = vsyncpa %s14, 0
    loop: start=0, step=1, limit=6
    $region2: #{tpu_custom_call.1} parent=1 // loop_pre_header
      _
    $region3: #{tpu_custom_call.1} parent=1 // loop_header
      %s17 = sphi 0, %s21
      %p18 = scmp.ge.s32.totalorder %s17, 6
      %s27 = sphi 0, %s29
      %s30 = sphi 0, %s27
      %s31 = sphi 0, %s30
      %s47 = sphi 0, %s31
      %s51 = sphi 0, %s51
      %s53 = sphi 0, %s51
      %s54 = sphi 0, %s53
      %s68 = sphi 0, %s54
      %s72 = sphi 0, %s72
      %s74 = sphi 0, %s72
      %s75 = sphi 0, %s74
      %s89 = sphi 0, %s75
      %s93 = sphi 0, %s93
      %s95 = sphi 0, %s93
      %s96 = sphi 0, %s95
      %s110 = sphi 0, %s96
      %s114 = sphi 0, %s114
      %s116 = sphi 0, %s114
      %s117 = sphi 0, %s116
      %s131 = sphi 0, %s117
      %s135 = sphi 0, %s135
      %s137 = sphi 0, %s135
      %s138 = sphi 0, %s137
      %s152 = sphi 0, %s138
      %s156 = sphi 0, %s156
      %s158 = sphi 0, %s156
      %s159 = sphi 0, %s158
      %s173 = sphi 0, %s159
      %s177 = sphi 0, %s177
      %s179 = sphi 0, %s177
      %s180 = sphi 0, %s179
      %s194 = sphi 0, %s180
      %s200 = sphi 0, %s202
      %s203 = sphi 0, %s200
      %s204 = sphi 0, %s203
      %s220 = sphi 0, %s204
    $region4: #{tpu_custom_call.1} parent=1 // loop_header_branch
      %20 = sbr.rel (%p18) target = $region8
    $region5: #{tpu_custom_call.1} parent=1 // loop_body
      %s22 = ssub.s32 %s17, 1
      %s23 = ssub.s32 %s17, 2
      %s24 = sadd.s32 %s17, 1
      %s25 = ssub.s32 %s17, %s24
      %p26 = scmp.eq.s32.totalorder %s25, 0
      %s28 = sadd.s32 %s27, 1
      %s29 = scalar_select %p26, %s27, %s28
      %p32 = pneg %p26
      %p33 = scmp.eq.s32.totalorder %s17, 3
      %p34 = por %p32, %p33
      %p35 = scmp.ne.s32.totalorder %s27, %s30
      %p36 = scmp.eq.s32.totalorder %s17, 0
      %p37 = por %p35, %p36
      %p38 = scmp.ne.s32.totalorder %s27, %s30
      %p39 = scmp.eq.s32.totalorder %s22, 3
      %p40 = por %p38, %p39
      %p41 = scmp.ne.s32.totalorder %s30, %s31
      %p42 = scmp.eq.s32.totalorder %s22, 0
      %p43 = por %p41, %p42
      %p44 = scmp.ne.s32.totalorder %s30, %s31
      %p45 = scmp.eq.s32.totalorder %s23, 3
      %p46 = por %p44, %p45
      %p48 = scmp.ne.s32.totalorder %s31, %s47
      %p49 = scmp.eq.s32.totalorder %s23, 0
      %p50 = por %p48, %p49
      %s52 = sadd.s32 %s51, 1
      %p55 = scmp.eq.s32.totalorder %s17, 3
      %p56 = scmp.ne.s32.totalorder %s51, %s53
      %p57 = scmp.eq.s32.totalorder %s17, 0
      %p58 = por %p56, %p57
      %p59 = scmp.ne.s32.totalorder %s51, %s53
      %p60 = scmp.eq.s32.totalorder %s22, 3
      %p61 = por %p59, %p60
      %p62 = scmp.ne.s32.totalorder %s53, %s54
      %p63 = scmp.eq.s32.totalorder %s22, 0
      %p64 = por %p62, %p63
      %p65 = scmp.ne.s32.totalorder %s53, %s54
      %p66 = scmp.eq.s32.totalorder %s23, 3
      %p67 = por %p65, %p66
      %p69 = scmp.ne.s32.totalorder %s54, %s68
      %p70 = scmp.eq.s32.totalorder %s23, 0
      %p71 = por %p69, %p70
      %s73 = sadd.s32 %s72, 1
      %p76 = scmp.eq.s32.totalorder %s17, 3
      %p77 = scmp.ne.s32.totalorder %s72, %s74
      %p78 = scmp.eq.s32.totalorder %s17, 0
      %p79 = por %p77, %p78
      %p80 = scmp.ne.s32.totalorder %s72, %s74
      %p81 = scmp.eq.s32.totalorder %s22, 3
      %p82 = por %p80, %p81
      %p83 = scmp.ne.s32.totalorder %s74, %s75
      %p84 = scmp.eq.s32.totalorder %s22, 0
      %p85 = por %p83, %p84
      %p86 = scmp.ne.s32.totalorder %s74, %s75
      %p87 = scmp.eq.s32.totalorder %s23, 3
      %p88 = por %p86, %p87
      %p90 = scmp.ne.s32.totalorder %s75, %s89
      %p91 = scmp.eq.s32.totalorder %s23, 0
      %p92 = por %p90, %p91
      %s94 = sadd.s32 %s93, 1
      %p97 = scmp.eq.s32.totalorder %s17, 3
      %p98 = scmp.ne.s32.totalorder %s93, %s95
      %p99 = scmp.eq.s32.totalorder %s17, 0
      %p100 = por %p98, %p99
      %p101 = scmp.ne.s32.totalorder %s93, %s95
      %p102 = scmp.eq.s32.totalorder %s22, 3
      %p103 = por %p101, %p102
      %p104 = scmp.ne.s32.totalorder %s95, %s96
      %p105 = scmp.eq.s32.totalorder %s22, 0
      %p106 = por %p104, %p105
      %p107 = scmp.ne.s32.totalorder %s95, %s96
      %p108 = scmp.eq.s32.totalorder %s23, 3
      %p109 = por %p107, %p108
      %p111 = scmp.ne.s32.totalorder %s96, %s110
      %p112 = scmp.eq.s32.totalorder %s23, 0
      %p113 = por %p111, %p112
      %s115 = sadd.s32 %s114, 1
      %p118 = scmp.eq.s32.totalorder %s17, 3
      %p119 = scmp.ne.s32.totalorder %s114, %s116
      %p120 = scmp.eq.s32.totalorder %s17, 0
      %p121 = por %p119, %p120
      %p122 = scmp.ne.s32.totalorder %s114, %s116
      %p123 = scmp.eq.s32.totalorder %s22, 3
      %p124 = por %p122, %p123
      %p125 = scmp.ne.s32.totalorder %s116, %s117
      %p126 = scmp.eq.s32.totalorder %s22, 0
      %p127 = por %p125, %p126
      %p128 = scmp.ne.s32.totalorder %s116, %s117
      %p129 = scmp.eq.s32.totalorder %s23, 3
      %p130 = por %p128, %p129
      %p132 = scmp.ne.s32.totalorder %s117, %s131
      %p133 = scmp.eq.s32.totalorder %s23, 0
      %p134 = por %p132, %p133
      %s136 = sadd.s32 %s135, 1
      %p139 = scmp.eq.s32.totalorder %s17, 3
      %p140 = scmp.ne.s32.totalorder %s135, %s137
      %p141 = scmp.eq.s32.totalorder %s17, 0
      %p142 = por %p140, %p141
      %p143 = scmp.ne.s32.totalorder %s135, %s137
      %p144 = scmp.eq.s32.totalorder %s22, 3
      %p145 = por %p143, %p144
      %p146 = scmp.ne.s32.totalorder %s137, %s138
      %p147 = scmp.eq.s32.totalorder %s22, 0
      %p148 = por %p146, %p147
      %p149 = scmp.ne.s32.totalorder %s137, %s138
      %p150 = scmp.eq.s32.totalorder %s23, 3
      %p151 = por %p149, %p150
      %p153 = scmp.ne.s32.totalorder %s138, %s152
      %p154 = scmp.eq.s32.totalorder %s23, 0
      %p155 = por %p153, %p154
      %s157 = sadd.s32 %s156, 1
      %p160 = scmp.eq.s32.totalorder %s17, 3
      %p161 = scmp.ne.s32.totalorder %s156, %s158
      %p162 = scmp.eq.s32.totalorder %s17, 0
      %p163 = por %p161, %p162
      %p164 = scmp.ne.s32.totalorder %s156, %s158
      %p165 = scmp.eq.s32.totalorder %s22, 3
      %p166 = por %p164, %p165
      %p167 = scmp.ne.s32.totalorder %s158, %s159
      %p168 = scmp.eq.s32.totalorder %s22, 0
      %p169 = por %p167, %p168
      %p170 = scmp.ne.s32.totalorder %s158, %s159
      %p171 = scmp.eq.s32.totalorder %s23, 3
      %p172 = por %p170, %p171
      %p174 = scmp.ne.s32.totalorder %s159, %s173
      %p175 = scmp.eq.s32.totalorder %s23, 0
      %p176 = por %p174, %p175
      %s178 = sadd.s32 %s177, 1
      %p181 = scmp.eq.s32.totalorder %s17, 3
      %p182 = scmp.ne.s32.totalorder %s177, %s179
      %p183 = scmp.eq.s32.totalorder %s17, 0
      %p184 = por %p182, %p183
      %p185 = scmp.ne.s32.totalorder %s177, %s179
      %p186 = scmp.eq.s32.totalorder %s22, 3
      %p187 = por %p185, %p186
      %p188 = scmp.ne.s32.totalorder %s179, %s180
      %p189 = scmp.eq.s32.totalorder %s22, 0
      %p190 = por %p188, %p189
      %p191 = scmp.ne.s32.totalorder %s179, %s180
      %p192 = scmp.eq.s32.totalorder %s23, 3
      %p193 = por %p191, %p192
      %p195 = scmp.ne.s32.totalorder %s180, %s194
      %p196 = scmp.eq.s32.totalorder %s23, 0
      %p197 = por %p195, %p196
      %s198 = ssub.s32 %s17, %s24
      %p199 = scmp.eq.s32.totalorder %s198, 0
      %s201 = sadd.s32 %s200, 1
      %s202 = scalar_select %p199, %s200, %s201
      %p205 = pneg %p199
      %p206 = scmp.eq.s32.totalorder %s17, 3
      %p207 = por %p205, %p206
      %p208 = scmp.ne.s32.totalorder %s200, %s203
      %p209 = scmp.eq.s32.totalorder %s17, 0
      %p210 = por %p208, %p209
      %p211 = scmp.ne.s32.totalorder %s200, %s203
      %p212 = scmp.eq.s32.totalorder %s22, 3
      %p213 = por %p211, %p212
      %p214 = scmp.ne.s32.totalorder %s203, %s204
      %p215 = scmp.eq.s32.totalorder %s22, 0
      %p216 = por %p214, %p215
      %p217 = scmp.ne.s32.totalorder %s203, %s204
      %p218 = scmp.eq.s32.totalorder %s23, 3
      %p219 = por %p217, %p218
      %p221 = scmp.ne.s32.totalorder %s204, %s220
      %p222 = scmp.eq.s32.totalorder %s23, 0
      %p223 = por %p221, %p222
      %p224 = scmp.le.s32.totalorder 1, %s17
      %p225 = scmp.lt.s32.totalorder %s17, 5
      %p226 = pnand %p224, %p225
      %p227 = pneg %p226
      // Predicated region
      $region9: #{tpu_custom_call.1} parent=5 // pred_check
        _
      $region10: #{tpu_custom_call.1} parent=5 // pred_check_branch
        %229 = sbr.rel (%p226) target = $region12
      $region11: #{tpu_custom_call.1} parent=5 // pred_region
        %s230 = ssub.s32 %s17, 1
        // Predicated region
        $region13: #{tpu_custom_call.1} parent=11 // pred_check
          %p231 = pneg %p64
        $region14: #{tpu_custom_call.1} parent=11 // pred_check_branch
          %233 = sbr.rel (%p231) target = $region16
        $region15: #{tpu_custom_call.1} parent=11 // pred_region
          _
        $region16: #{tpu_custom_call.1} parent=11 // pred_fallthru
          _
        // Predicated region
        $region17: #{tpu_custom_call.1} parent=11 // pred_check
          %p234 = pneg %p85
        $region18: #{tpu_custom_call.1} parent=11 // pred_check_branch
          %236 = sbr.rel (%p234) target = $region20
        $region19: #{tpu_custom_call.1} parent=11 // pred_region
          _
        $region20: #{tpu_custom_call.1} parent=11 // pred_fallthru
          _
        // Predicated region
        $region21: #{tpu_custom_call.1} parent=11 // pred_check
          %p237 = pneg %p106
        $region22: #{tpu_custom_call.1} parent=11 // pred_check_branch
          %239 = sbr.rel (%p237) target = $region24
        $region23: #{tpu_custom_call.1} parent=11 // pred_region
          _
        $region24: #{tpu_custom_call.1} parent=11 // pred_fallthru
          _
        // Predicated region
        $region25: #{tpu_custom_call.1} parent=11 // pred_check
          %p240 = pneg %p127
        $region26: #{tpu_custom_call.1} parent=11 // pred_check_branch
          %242 = sbr.rel (%p240) target = $region28
        $region27: #{tpu_custom_call.1} parent=11 // pred_region
          _
        $region28: #{tpu_custom_call.1} parent=11 // pred_fallthru
          _
        // Predicated region
        $region29: #{tpu_custom_call.1} parent=11 // pred_check
          %p243 = pneg %p148
        $region30: #{tpu_custom_call.1} parent=11 // pred_check_branch
          %245 = sbr.rel (%p243) target = $region32
        $region31: #{tpu_custom_call.1} parent=11 // pred_region
          _
        $region32: #{tpu_custom_call.1} parent=11 // pred_fallthru
          _
        // Predicated region
        $region33: #{tpu_custom_call.1} parent=11 // pred_check
          %p246 = pneg %p169
        $region34: #{tpu_custom_call.1} parent=11 // pred_check_branch
          %248 = sbr.rel (%p246) target = $region36
        $region35: #{tpu_custom_call.1} parent=11 // pred_region
          _
        $region36: #{tpu_custom_call.1} parent=11 // pred_fallthru
          _
        // Predicated region
        $region37: #{tpu_custom_call.1} parent=11 // pred_check
          %p249 = pneg %p190
        $region38: #{tpu_custom_call.1} parent=11 // pred_check_branch
          %251 = sbr.rel (%p249) target = $region40
        $region39: #{tpu_custom_call.1} parent=11 // pred_region
          _
        $region40: #{tpu_custom_call.1} parent=11 // pred_fallthru
          _
      $region12: #{tpu_custom_call.1} parent=5 // pred_fallthru
        _
      %p252 = scmp.lt.s32.totalorder %s17, 4
      // Predicated region
      $region41: #{tpu_custom_call.1} parent=5 // pred_check
        %p253 = pneg %p252
      $region42: #{tpu_custom_call.1} parent=5 // pred_check_branch
        %255 = sbr.rel (%p253) target = $region44
      $region43: #{tpu_custom_call.1} parent=5 // pred_region
        // Predicated region
        $region45: #{tpu_custom_call.1} parent=43 // pred_check
          %p256 = pneg %p37
        $region46: #{tpu_custom_call.1} parent=43 // pred_check_branch
          %258 = sbr.rel (%p256) target = $region48
        $region47: #{tpu_custom_call.1} parent=43 // pred_region
          %p259 = scmp.lt.s32.totalorder %s17, 3
          %s260 = scalar_select %p259, %s17, 3
          %s261 = smul.addr %s260, 30
          %s262 = smul.addr %s261, 4
          %s263 = scalar_lea.vmem %s0, %s262
        $region48: #{tpu_custom_call.1} parent=43 // pred_fallthru
          _
      $region44: #{tpu_custom_call.1} parent=5 // pred_fallthru
        _
      %p264 = scmp.le.s32.totalorder 1, %s17
      %p265 = scmp.lt.s32.totalorder %s17, 5
      %p266 = pnand %p264, %p265
      %p267 = pneg %p266
      // Predicated region
      $region49: #{tpu_custom_call.1} parent=5 // pred_check
        _
      $region50: #{tpu_custom_call.1} parent=5 // pred_check_branch
        %269 = sbr.rel (%p266) target = $region52
      $region51: #{tpu_custom_call.1} parent=5 // pred_region
        %s270 = ssub.s32 %s17, 1
        %p271 = scmp.lt.s32.totalorder %s22, 3
        %s272 = scalar_select %p271, %s22, 3
        %s273 = smul.addr %s272, 30
        %s274 = smul.addr %s273, 4
        %s275 = scalar_lea.vmem %s0, %s274
        %p276 = pneg %p43
        %p277 = pneg %p40
        %p278 = pneg %p64
        %p279 = pneg %p61
        %p280 = pneg %p85
        %p281 = pneg %p82
        %p282 = pneg %p106
        %p283 = pneg %p103
        %p284 = pneg %p127
        %p285 = pneg %p124
        %p286 = pneg %p148
        %p287 = pneg %p145
        %p288 = pneg %p169
        %p289 = pneg %p166
        %p290 = pneg %p190
        %p291 = pneg %p187
        %p292 = pneg %p216
        %p293 = pneg %p213
        %s294 = sand.u32 %s203, 1
        %s295 = scalar_lea.sflag [#allocation3], %s294
        %s296 = sand.u32 %s203, 1
        %s297 = smul.addr %s296, 128
        %s298 = scalar_lea.vmem [#allocation2], %s297
        %p299 = scmp.lt.s32.totalorder %s22, 3
        %s300 = scalar_select %p299, %s22, 3
        %s301 = smul.addr %s300, 30
        %s302 = smul.addr %s301, 4
        %s303 = scalar_lea.vmem %s0, %s302
        %s304 = smul.u32 16, %s22
        %v306 = vld [vmem:[%s303] sm:$0xf]
        %v307 = vld [vmem:[%s303 + $0x4] sm:$0xf]
        %v308 = vld [vmem:[%s303 + $0xc] sm:$0xf]
        %v309 = vld [vmem:[%s303 + $0x10] sm:$0xf]
        %v310 = vld [vmem:[%s303 + $0x18] sm:$0xf]
        %v311 = vld [vmem:[%s303 + $0x1c] sm:$0xf]
        %v312 = vld [vmem:[%s303 + $0x24] sm:$0xf]
        %v313 = vld [vmem:[%s303 + $0x28] sm:$0xf]
        %v314 = vld [vmem:[%s303 + $0x30] sm:$0xf]
        %v315 = vld [vmem:[%s303 + $0x34] sm:$0xf]
        %v316 = vld [vmem:[%s303 + $0x3c] sm:$0xf]
        %v317 = vld [vmem:[%s303 + $0x40] sm:$0xf]
        %v318 = vld [vmem:[%s303 + $0x48] sm:$0xf]
        %v319 = vld [vmem:[%s303 + $0x4c] sm:$0xf]
        %v320 = vld [vmem:[%s303 + $0x54] sm:$0xf]
        %v321 = vld [vmem:[%s303 + $0x58] sm:$0xf]
        %v322 = vld [vmem:[%s303 + $0x8] sm:$0x1]
        %v323 = vld [vmem:[%s303 + $0x14] sm:$0x1]
        %v324 = vld [vmem:[%s303 + $0x20] sm:$0x1]
        %v325 = vld [vmem:[%s303 + $0x2c] sm:$0x1]
        %v326 = vld [vmem:[%s303 + $0x38] sm:$0x1]
        %v327 = vld [vmem:[%s303 + $0x44] sm:$0x1]
        %v328 = vld [vmem:[%s303 + $0x50] sm:$0x1]
        %v329 = vld [vmem:[%s303 + $0x5c] sm:$0x1]
        %vm330 = vsmask.f32 3328
        %vm331 = vsmask.f32 7440
        %vm332 = vmor %vm330, %vm331
        %v334 = vshrl.u32 %v306, 16
        %v336 = vrot.slane %v334, 4
        %v337 = vshll.u32 %v306, 16
        %v339 = vrot.slane %v337, 5
        %v340 = vor.u32 %v336, %v339
        %v341 = vrot.slane %v340, 4
        %v343 = vshll.u32 %v307, 16
        %v345 = vrot.slane %v343, 5
        %v346 = vsel %vm332, %v341, %v345
        %v347 = vshrl.u32 %v307, 16
        %v349 = vrot.slane %v347, 4
        %v350 = vor.u32 %v349, %v345
        %v351 = vrot.slane %v350, 4
        %v353 = vshll.u32 %v322, 16
        %v355 = vrot.slane %v353, 5
        %v356 = vsel %vm332, %v351, %v355
        %v358 = vshrl.u32 %v308, 16
        %v360 = vrot.slane %v358, 4
        %v361 = vshll.u32 %v308, 16
        %v363 = vrot.slane %v361, 5
        %v364 = vor.u32 %v360, %v363
        %v365 = vrot.slane %v364, 4
        %v367 = vshll.u32 %v309, 16
        %v369 = vrot.slane %v367, 5
        %v370 = vsel %vm332, %v365, %v369
        %v371 = vshrl.u32 %v309, 16
        %v373 = vrot.slane %v371, 4
        %v374 = vor.u32 %v373, %v369
        %v375 = vrot.slane %v374, 4
        %v377 = vshll.u32 %v323, 16
        %v379 = vrot.slane %v377, 5
        %v380 = vsel %vm332, %v375, %v379
        %v382 = vshrl.u32 %v310, 16
        %v384 = vrot.slane %v382, 4
        %v385 = vshll.u32 %v310, 16
        %v387 = vrot.slane %v385, 5
        %v388 = vor.u32 %v384, %v387
        %v389 = vrot.slane %v388, 4
        %v391 = vshll.u32 %v311, 16
        %v393 = vrot.slane %v391, 5
        %v394 = vsel %vm332, %v389, %v393
        %v395 = vshrl.u32 %v311, 16
        %v397 = vrot.slane %v395, 4
        %v398 = vor.u32 %v397, %v393
        %v399 = vrot.slane %v398, 4
        %v401 = vshll.u32 %v324, 16
        %v403 = vrot.slane %v401, 5
        %v404 = vsel %vm332, %v399, %v403
        %v406 = vshrl.u32 %v312, 16
        %v408 = vrot.slane %v406, 4
        %v409 = vshll.u32 %v312, 16
        %v411 = vrot.slane %v409, 5
        %v412 = vor.u32 %v408, %v411
        %v413 = vrot.slane %v412, 4
        %v415 = vshll.u32 %v313, 16
        %v417 = vrot.slane %v415, 5
        %v418 = vsel %vm332, %v413, %v417
        %v419 = vshrl.u32 %v313, 16
        %v421 = vrot.slane %v419, 4
        %v422 = vor.u32 %v421, %v417
        %v423 = vrot.slane %v422, 4
        %v425 = vshll.u32 %v325, 16
        %v427 = vrot.slane %v425, 5
        %v428 = vsel %vm332, %v423, %v427
        %v430 = vshrl.u32 %v314, 16
        %v432 = vrot.slane %v430, 4
        %v433 = vshll.u32 %v314, 16
        %v435 = vrot.slane %v433, 5
        %v436 = vor.u32 %v432, %v435
        %v437 = vrot.slane %v436, 4
        %v439 = vshll.u32 %v315, 16
        %v441 = vrot.slane %v439, 5
        %v442 = vsel %vm332, %v437, %v441
        %v443 = vshrl.u32 %v315, 16
        %v445 = vrot.slane %v443, 4
        %v446 = vor.u32 %v445, %v441
        %v447 = vrot.slane %v446, 4
        %v449 = vshll.u32 %v326, 16
        %v451 = vrot.slane %v449, 5
        %v452 = vsel %vm332, %v447, %v451
        %v454 = vshrl.u32 %v316, 16
        %v456 = vrot.slane %v454, 4
        %v457 = vshll.u32 %v316, 16
        %v459 = vrot.slane %v457, 5
        %v460 = vor.u32 %v456, %v459
        %v461 = vrot.slane %v460, 4
        %v463 = vshll.u32 %v317, 16
        %v465 = vrot.slane %v463, 5
        %v466 = vsel %vm332, %v461, %v465
        %v467 = vshrl.u32 %v317, 16
        %v469 = vrot.slane %v467, 4
        %v470 = vor.u32 %v469, %v465
        %v471 = vrot.slane %v470, 4
        %v473 = vshll.u32 %v327, 16
        %v475 = vrot.slane %v473, 5
        %v476 = vsel %vm332, %v471, %v475
        %v478 = vshrl.u32 %v318, 16
        %v480 = vrot.slane %v478, 4
        %v481 = vshll.u32 %v318, 16
        %v483 = vrot.slane %v481, 5
        %v484 = vor.u32 %v480, %v483
        %v485 = vrot.slane %v484, 4
        %v487 = vshll.u32 %v319, 16
        %v489 = vrot.slane %v487, 5
        %v490 = vsel %vm332, %v485, %v489
        %v491 = vshrl.u32 %v319, 16
        %v493 = vrot.slane %v491, 4
        %v494 = vor.u32 %v493, %v489
        %v495 = vrot.slane %v494, 4
        %v497 = vshll.u32 %v328, 16
        %v499 = vrot.slane %v497, 5
        %v500 = vsel %vm332, %v495, %v499
        %v502 = vshrl.u32 %v320, 16
        %v504 = vrot.slane %v502, 4
        %v505 = vshll.u32 %v320, 16
        %v507 = vrot.slane %v505, 5
        %v508 = vor.u32 %v504, %v507
        %v509 = vrot.slane %v508, 4
        %v511 = vshll.u32 %v321, 16
        %v513 = vrot.slane %v511, 5
        %v514 = vsel %vm332, %v509, %v513
        %v515 = vshrl.u32 %v321, 16
        %v517 = vrot.slane %v515, 4
        %v518 = vor.u32 %v517, %v513
        %v519 = vrot.slane %v518, 4
        %v521 = vshll.u32 %v329, 16
        %v523 = vrot.slane %v521, 5
        %v524 = vsel %vm332, %v519, %v523
        %v525 = vld [vmem:[%s303] sm:$0xe]
        %v526 = vld [vmem:[%s303 + $0xc] sm:$0xe]
        %v527 = vld [vmem:[%s303 + $0x18] sm:$0xe]
        %v528 = vld [vmem:[%s303 + $0x24] sm:$0xe]
        %v529 = vld [vmem:[%s303 + $0x30] sm:$0xe]
        %v530 = vld [vmem:[%s303 + $0x3c] sm:$0xe]
        %v531 = vld [vmem:[%s303 + $0x48] sm:$0xe]
        %v532 = vld [vmem:[%s303 + $0x54] sm:$0xe]
        %vm557 = vcmask 1042432
        %vm558 = vcmask 1046532
        %vm559 = vmor %vm557, %vm558
        %v560 = vrot.slane %v525, 5
        %v561 = vrot.slane %v560, 4
        %v562 = vrot.slane %v307, 5
        %v563 = vsel %vm559, %v561, %v562
        %v564 = vrot.slane %v562, 4
        %v565 = vrot.slane %v322, 5
        %v566 = vsel %vm559, %v564, %v565
        %v567 = vrot.slane %v526, 5
        %v568 = vrot.slane %v567, 4
        %v569 = vrot.slane %v309, 5
        %v570 = vsel %vm559, %v568, %v569
        %v571 = vrot.slane %v569, 4
        %v572 = vrot.slane %v323, 5
        %v573 = vsel %vm559, %v571, %v572
        %v574 = vrot.slane %v527, 5
        %v575 = vrot.slane %v574, 4
        %v576 = vrot.slane %v311, 5
        %v577 = vsel %vm559, %v575, %v576
        %v578 = vrot.slane %v576, 4
        %v579 = vrot.slane %v324, 5
        %v580 = vsel %vm559, %v578, %v579
        %v581 = vrot.slane %v528, 5
        %v582 = vrot.slane %v581, 4
        %v583 = vrot.slane %v313, 5
        %v584 = vsel %vm559, %v582, %v583
        %v585 = vrot.slane %v583, 4
        %v586 = vrot.slane %v325, 5
        %v587 = vsel %vm559, %v585, %v586
        %v588 = vrot.slane %v529, 5
        %v589 = vrot.slane %v588, 4
        %v590 = vrot.slane %v315, 5
        %v591 = vsel %vm559, %v589, %v590
        %v592 = vrot.slane %v590, 4
        %v593 = vrot.slane %v326, 5
        %v594 = vsel %vm559, %v592, %v593
        %v595 = vrot.slane %v530, 5
        %v596 = vrot.slane %v595, 4
        %v597 = vrot.slane %v317, 5
        %v598 = vsel %vm559, %v596, %v597
        %v599 = vrot.slane %v597, 4
        %v600 = vrot.slane %v327, 5
        %v601 = vsel %vm559, %v599, %v600
        %v602 = vrot.slane %v531, 5
        %v603 = vrot.slane %v602, 4
        %v604 = vrot.slane %v319, 5
        %v605 = vsel %vm559, %v603, %v604
        %v606 = vrot.slane %v604, 4
        %v607 = vrot.slane %v328, 5
        %v608 = vsel %vm559, %v606, %v607
        %v609 = vrot.slane %v532, 5
        %v610 = vrot.slane %v609, 4
        %v611 = vrot.slane %v321, 5
        %v612 = vsel %vm559, %v610, %v611
        %v613 = vrot.slane %v611, 4
        %v614 = vrot.slane %v329, 5
        %v615 = vsel %vm559, %v613, %v614
        %s616 = scalar_lea.vmem %s303, 12
        %v617 = vld [vmem:[%s616] sm:$0xf]
        %v618 = vld [vmem:[%s616 + $0x4] sm:$0xf]
        %v619 = vld [vmem:[%s616 + $0xc] sm:$0xf]
        %v620 = vld [vmem:[%s616 + $0x10] sm:$0xf]
        %v621 = vld [vmem:[%s616 + $0x18] sm:$0xf]
        %v622 = vld [vmem:[%s616 + $0x1c] sm:$0xf]
        %v623 = vld [vmem:[%s616 + $0x24] sm:$0xf]
        %v624 = vld [vmem:[%s616 + $0x28] sm:$0xf]
        %v625 = vld [vmem:[%s616 + $0x30] sm:$0xf]
        %v626 = vld [vmem:[%s616 + $0x34] sm:$0xf]
        %v627 = vld [vmem:[%s616 + $0x3c] sm:$0xf]
        %v628 = vld [vmem:[%s616 + $0x40] sm:$0xf]
        %v629 = vld [vmem:[%s616 + $0x48] sm:$0xf]
        %v630 = vld [vmem:[%s616 + $0x4c] sm:$0xf]
        %v631 = vld [vmem:[%s616 + $0x54] sm:$0xf]
        %v632 = vld [vmem:[%s616 + $0x58] sm:$0xf]
        %v633 = vld [vmem:[%s616 + $0x8] sm:$0x1]
        %v634 = vld [vmem:[%s616 + $0x14] sm:$0x1]
        %v635 = vld [vmem:[%s616 + $0x20] sm:$0x1]
        %v636 = vld [vmem:[%s616 + $0x2c] sm:$0x1]
        %v637 = vld [vmem:[%s616 + $0x38] sm:$0x1]
        %v638 = vld [vmem:[%s616 + $0x44] sm:$0x1]
        %v639 = vld [vmem:[%s616 + $0x50] sm:$0x1]
        %v640 = vld [vmem:[%s616 + $0x5c] sm:$0x1]
        %v642 = vshrl.u32 %v617, 16
        %v644 = vrot.slane %v642, 4
        %v645 = vshll.u32 %v617, 16
        %v647 = vrot.slane %v645, 5
        %v648 = vor.u32 %v644, %v647
        %v649 = vrot.slane %v648, 4
        %v651 = vshll.u32 %v618, 16
        %v653 = vrot.slane %v651, 5
        %v654 = vsel %vm332, %v649, %v653
        %v655 = vshrl.u32 %v618, 16
        %v657 = vrot.slane %v655, 4
        %v658 = vor.u32 %v657, %v653
        %v659 = vrot.slane %v658, 4
        %v661 = vshll.u32 %v633, 16
        %v663 = vrot.slane %v661, 5
        %v664 = vsel %vm332, %v659, %v663
        %v666 = vshrl.u32 %v619, 16
        %v668 = vrot.slane %v666, 4
        %v669 = vshll.u32 %v619, 16
        %v671 = vrot.slane %v669, 5
        %v672 = vor.u32 %v668, %v671
        %v673 = vrot.slane %v672, 4
        %v675 = vshll.u32 %v620, 16
        %v677 = vrot.slane %v675, 5
        %v678 = vsel %vm332, %v673, %v677
        %v679 = vshrl.u32 %v620, 16
        %v681 = vrot.slane %v679, 4
        %v682 = vor.u32 %v681, %v677
        %v683 = vrot.slane %v682, 4
        %v685 = vshll.u32 %v634, 16
        %v687 = vrot.slane %v685, 5
        %v688 = vsel %vm332, %v683, %v687
        %v690 = vshrl.u32 %v621, 16
        %v692 = vrot.slane %v690, 4
        %v693 = vshll.u32 %v621, 16
        %v695 = vrot.slane %v693, 5
        %v696 = vor.u32 %v692, %v695
        %v697 = vrot.slane %v696, 4
        %v699 = vshll.u32 %v622, 16
        %v701 = vrot.slane %v699, 5
        %v702 = vsel %vm332, %v697, %v701
        %v703 = vshrl.u32 %v622, 16
        %v705 = vrot.slane %v703, 4
        %v706 = vor.u32 %v705, %v701
        %v707 = vrot.slane %v706, 4
        %v709 = vshll.u32 %v635, 16
        %v711 = vrot.slane %v709, 5
        %v712 = vsel %vm332, %v707, %v711
        %v714 = vshrl.u32 %v623, 16
        %v716 = vrot.slane %v714, 4
        %v717 = vshll.u32 %v623, 16
        %v719 = vrot.slane %v717, 5
        %v720 = vor.u32 %v716, %v719
        %v721 = vrot.slane %v720, 4
        %v723 = vshll.u32 %v624, 16
        %v725 = vrot.slane %v723, 5
        %v726 = vsel %vm332, %v721, %v725
        %v727 = vshrl.u32 %v624, 16
        %v729 = vrot.slane %v727, 4
        %v730 = vor.u32 %v729, %v725
        %v731 = vrot.slane %v730, 4
        %v733 = vshll.u32 %v636, 16
        %v735 = vrot.slane %v733, 5
        %v736 = vsel %vm332, %v731, %v735
        %v738 = vshrl.u32 %v625, 16
        %v740 = vrot.slane %v738, 4
        %v741 = vshll.u32 %v625, 16
        %v743 = vrot.slane %v741, 5
        %v744 = vor.u32 %v740, %v743
        %v745 = vrot.slane %v744, 4
        %v747 = vshll.u32 %v626, 16
        %v749 = vrot.slane %v747, 5
        %v750 = vsel %vm332, %v745, %v749
        %v751 = vshrl.u32 %v626, 16
        %v753 = vrot.slane %v751, 4
        %v754 = vor.u32 %v753, %v749
        %v755 = vrot.slane %v754, 4
        %v757 = vshll.u32 %v637, 16
        %v759 = vrot.slane %v757, 5
        %v760 = vsel %vm332, %v755, %v759
        %v762 = vshrl.u32 %v627, 16
        %v764 = vrot.slane %v762, 4
        %v765 = vshll.u32 %v627, 16
        %v767 = vrot.slane %v765, 5
        %v768 = vor.u32 %v764, %v767
        %v769 = vrot.slane %v768, 4
        %v771 = vshll.u32 %v628, 16
        %v773 = vrot.slane %v771, 5
        %v774 = vsel %vm332, %v769, %v773
        %v775 = vshrl.u32 %v628, 16
        %v777 = vrot.slane %v775, 4
        %v778 = vor.u32 %v777, %v773
        %v779 = vrot.slane %v778, 4
        %v781 = vshll.u32 %v638, 16
        %v783 = vrot.slane %v781, 5
        %v784 = vsel %vm332, %v779, %v783
        %v786 = vshrl.u32 %v629, 16
        %v788 = vrot.slane %v786, 4
        %v789 = vshll.u32 %v629, 16
        %v791 = vrot.slane %v789, 5
        %v792 = vor.u32 %v788, %v791
        %v793 = vrot.slane %v792, 4
        %v795 = vshll.u32 %v630, 16
        %v797 = vrot.slane %v795, 5
        %v798 = vsel %vm332, %v793, %v797
        %v799 = vshrl.u32 %v630, 16
        %v801 = vrot.slane %v799, 4
        %v802 = vor.u32 %v801, %v797
        %v803 = vrot.slane %v802, 4
        %v805 = vshll.u32 %v639, 16
        %v807 = vrot.slane %v805, 5
        %v808 = vsel %vm332, %v803, %v807
        %v810 = vshrl.u32 %v631, 16
        %v812 = vrot.slane %v810, 4
        %v813 = vshll.u32 %v631, 16
        %v815 = vrot.slane %v813, 5
        %v816 = vor.u32 %v812, %v815
        %v817 = vrot.slane %v816, 4
        %v819 = vshll.u32 %v632, 16
        %v821 = vrot.slane %v819, 5
        %v822 = vsel %vm332, %v817, %v821
        %v823 = vshrl.u32 %v632, 16
        %v825 = vrot.slane %v823, 4
        %v826 = vor.u32 %v825, %v821
        %v827 = vrot.slane %v826, 4
        %v829 = vshll.u32 %v640, 16
        %v831 = vrot.slane %v829, 5
        %v832 = vsel %vm332, %v827, %v831
        %v833 = vld [vmem:[%s616] sm:$0xe]
        %v834 = vld [vmem:[%s616 + $0xc] sm:$0xe]
        %v835 = vld [vmem:[%s616 + $0x18] sm:$0xe]
        %v836 = vld [vmem:[%s616 + $0x24] sm:$0xe]
        %v837 = vld [vmem:[%s616 + $0x30] sm:$0xe]
        %v838 = vld [vmem:[%s616 + $0x3c] sm:$0xe]
        %v839 = vld [vmem:[%s616 + $0x48] sm:$0xe]
        %v840 = vld [vmem:[%s616 + $0x54] sm:$0xe]
        %v865 = vrot.slane %v833, 5
        %v866 = vrot.slane %v865, 4
        %v867 = vrot.slane %v618, 5
        %v868 = vsel %vm559, %v866, %v867
        %v869 = vrot.slane %v867, 4
        %v870 = vrot.slane %v633, 5
        %v871 = vsel %vm559, %v869, %v870
        %v872 = vrot.slane %v834, 5
        %v873 = vrot.slane %v872, 4
        %v874 = vrot.slane %v620, 5
        %v875 = vsel %vm559, %v873, %v874
        %v876 = vrot.slane %v874, 4
        %v877 = vrot.slane %v634, 5
        %v878 = vsel %vm559, %v876, %v877
        %v879 = vrot.slane %v835, 5
        %v880 = vrot.slane %v879, 4
        %v881 = vrot.slane %v622, 5
        %v882 = vsel %vm559, %v880, %v881
        %v883 = vrot.slane %v881, 4
        %v884 = vrot.slane %v635, 5
        %v885 = vsel %vm559, %v883, %v884
        %v886 = vrot.slane %v836, 5
        %v887 = vrot.slane %v886, 4
        %v888 = vrot.slane %v624, 5
        %v889 = vsel %vm559, %v887, %v888
        %v890 = vrot.slane %v888, 4
        %v891 = vrot.slane %v636, 5
        %v892 = vsel %vm559, %v890, %v891
        %v893 = vrot.slane %v837, 5
        %v894 = vrot.slane %v893, 4
        %v895 = vrot.slane %v626, 5
        %v896 = vsel %vm559, %v894, %v895
        %v897 = vrot.slane %v895, 4
        %v898 = vrot.slane %v637, 5
        %v899 = vsel %vm559, %v897, %v898
        %v900 = vrot.slane %v838, 5
        %v901 = vrot.slane %v900, 4
        %v902 = vrot.slane %v628, 5
        %v903 = vsel %vm559, %v901, %v902
        %v904 = vrot.slane %v902, 4
        %v905 = vrot.slane %v638, 5
        %v906 = vsel %vm559, %v904, %v905
        %v907 = vrot.slane %v839, 5
        %v908 = vrot.slane %v907, 4
        %v909 = vrot.slane %v630, 5
        %v910 = vsel %vm559, %v908, %v909
        %v911 = vrot.slane %v909, 4
        %v912 = vrot.slane %v639, 5
        %v913 = vsel %vm559, %v911, %v912
        %v914 = vrot.slane %v840, 5
        %v915 = vrot.slane %v914, 4
        %v916 = vrot.slane %v632, 5
        %v917 = vsel %vm559, %v915, %v916
        %v918 = vrot.slane %v916, 4
        %v919 = vrot.slane %v640, 5
        %v920 = vsel %vm559, %v918, %v919
        %s921 = scalar_lea.vmem %s303, 24
        %v922 = vld [vmem:[%s921] sm:$0xf]
        %v923 = vld [vmem:[%s921 + $0x4] sm:$0xf]
        %v924 = vld [vmem:[%s921 + $0xc] sm:$0xf]
        %v925 = vld [vmem:[%s921 + $0x10] sm:$0xf]
        %v926 = vld [vmem:[%s921 + $0x18] sm:$0xf]
        %v927 = vld [vmem:[%s921 + $0x1c] sm:$0xf]
        %v928 = vld [vmem:[%s921 + $0x24] sm:$0xf]
        %v929 = vld [vmem:[%s921 + $0x28] sm:$0xf]
        %v930 = vld [vmem:[%s921 + $0x30] sm:$0xf]
        %v931 = vld [vmem:[%s921 + $0x34] sm:$0xf]
        %v932 = vld [vmem:[%s921 + $0x3c] sm:$0xf]
        %v933 = vld [vmem:[%s921 + $0x40] sm:$0xf]
        %v934 = vld [vmem:[%s921 + $0x48] sm:$0xf]
        %v935 = vld [vmem:[%s921 + $0x4c] sm:$0xf]
        %v936 = vld [vmem:[%s921 + $0x54] sm:$0xf]
        %v937 = vld [vmem:[%s921 + $0x58] sm:$0xf]
        %v938 = vld [vmem:[%s921 + $0x8] sm:$0x1]
        %v939 = vld [vmem:[%s921 + $0x14] sm:$0x1]
        %v940 = vld [vmem:[%s921 + $0x20] sm:$0x1]
        %v941 = vld [vmem:[%s921 + $0x2c] sm:$0x1]
        %v942 = vld [vmem:[%s921 + $0x38] sm:$0x1]
        %v943 = vld [vmem:[%s921 + $0x44] sm:$0x1]
        %v944 = vld [vmem:[%s921 + $0x50] sm:$0x1]
        %v945 = vld [vmem:[%s921 + $0x5c] sm:$0x1]
        %v947 = vshrl.u32 %v922, 16
        %v949 = vrot.slane %v947, 4
        %v950 = vshll.u32 %v922, 16
        %v952 = vrot.slane %v950, 5
        %v953 = vor.u32 %v949, %v952
        %v954 = vrot.slane %v953, 4
        %v956 = vshll.u32 %v923, 16
        %v958 = vrot.slane %v956, 5
        %v959 = vsel %vm332, %v954, %v958
        %v960 = vshrl.u32 %v923, 16
        %v962 = vrot.slane %v960, 4
        %v963 = vor.u32 %v962, %v958
        %v964 = vrot.slane %v963, 4
        %v966 = vshll.u32 %v938, 16
        %v968 = vrot.slane %v966, 5
        %v969 = vsel %vm332, %v964, %v968
        %v971 = vshrl.u32 %v924, 16
        %v973 = vrot.slane %v971, 4
        %v974 = vshll.u32 %v924, 16
        %v976 = vrot.slane %v974, 5
        %v977 = vor.u32 %v973, %v976
        %v978 = vrot.slane %v977, 4
        %v980 = vshll.u32 %v925, 16
        %v982 = vrot.slane %v980, 5
        %v983 = vsel %vm332, %v978, %v982
        %v984 = vshrl.u32 %v925, 16
        %v986 = vrot.slane %v984, 4
        %v987 = vor.u32 %v986, %v982
        %v988 = vrot.slane %v987, 4
        %v990 = vshll.u32 %v939, 16
        %v992 = vrot.slane %v990, 5
        %v993 = vsel %vm332, %v988, %v992
        %v995 = vshrl.u32 %v926, 16
        %v997 = vrot.slane %v995, 4
        %v998 = vshll.u32 %v926, 16
        %v1000 = vrot.slane %v998, 5
        %v1001 = vor.u32 %v997, %v1000
        %v1002 = vrot.slane %v1001, 4
        %v1004 = vshll.u32 %v927, 16
        %v1006 = vrot.slane %v1004, 5
        %v1007 = vsel %vm332, %v1002, %v1006
        %v1008 = vshrl.u32 %v927, 16
        %v1010 = vrot.slane %v1008, 4
        %v1011 = vor.u32 %v1010, %v1006
        %v1012 = vrot.slane %v1011, 4
        %v1014 = vshll.u32 %v940, 16
        %v1016 = vrot.slane %v1014, 5
        %v1017 = vsel %vm332, %v1012, %v1016
        %v1019 = vshrl.u32 %v928, 16
        %v1021 = vrot.slane %v1019, 4
        %v1022 = vshll.u32 %v928, 16
        %v1024 = vrot.slane %v1022, 5
        %v1025 = vor.u32 %v1021, %v1024
        %v1026 = vrot.slane %v1025, 4
        %v1028 = vshll.u32 %v929, 16
        %v1030 = vrot.slane %v1028, 5
        %v1031 = vsel %vm332, %v1026, %v1030
        %v1032 = vshrl.u32 %v929, 16
        %v1034 = vrot.slane %v1032, 4
        %v1035 = vor.u32 %v1034, %v1030
        %v1036 = vrot.slane %v1035, 4
        %v1038 = vshll.u32 %v941, 16
        %v1040 = vrot.slane %v1038, 5
        %v1041 = vsel %vm332, %v1036, %v1040
        %v1043 = vshrl.u32 %v930, 16
        %v1045 = vrot.slane %v1043, 4
        %v1046 = vshll.u32 %v930, 16
        %v1048 = vrot.slane %v1046, 5
        %v1049 = vor.u32 %v1045, %v1048
        %v1050 = vrot.slane %v1049, 4
        %v1052 = vshll.u32 %v931, 16
        %v1054 = vrot.slane %v1052, 5
        %v1055 = vsel %vm332, %v1050, %v1054
        %v1056 = vshrl.u32 %v931, 16
        %v1058 = vrot.slane %v1056, 4
        %v1059 = vor.u32 %v1058, %v1054
        %v1060 = vrot.slane %v1059, 4
        %v1062 = vshll.u32 %v942, 16
        %v1064 = vrot.slane %v1062, 5
        %v1065 = vsel %vm332, %v1060, %v1064
        %v1067 = vshrl.u32 %v932, 16
        %v1069 = vrot.slane %v1067, 4
        %v1070 = vshll.u32 %v932, 16
        %v1072 = vrot.slane %v1070, 5
        %v1073 = vor.u32 %v1069, %v1072
        %v1074 = vrot.slane %v1073, 4
        %v1076 = vshll.u32 %v933, 16
        %v1078 = vrot.slane %v1076, 5
        %v1079 = vsel %vm332, %v1074, %v1078
        %v1080 = vshrl.u32 %v933, 16
        %v1082 = vrot.slane %v1080, 4
        %v1083 = vor.u32 %v1082, %v1078
        %v1084 = vrot.slane %v1083, 4
        %v1086 = vshll.u32 %v943, 16
        %v1088 = vrot.slane %v1086, 5
        %v1089 = vsel %vm332, %v1084, %v1088
        %v1091 = vshrl.u32 %v934, 16
        %v1093 = vrot.slane %v1091, 4
        %v1094 = vshll.u32 %v934, 16
        %v1096 = vrot.slane %v1094, 5
        %v1097 = vor.u32 %v1093, %v1096
        %v1098 = vrot.slane %v1097, 4
        %v1100 = vshll.u32 %v935, 16
        %v1102 = vrot.slane %v1100, 5
        %v1103 = vsel %vm332, %v1098, %v1102
        %v1104 = vshrl.u32 %v935, 16
        %v1106 = vrot.slane %v1104, 4
        %v1107 = vor.u32 %v1106, %v1102
        %v1108 = vrot.slane %v1107, 4
        %v1110 = vshll.u32 %v944, 16
        %v1112 = vrot.slane %v1110, 5
        %v1113 = vsel %vm332, %v1108, %v1112
        %v1115 = vshrl.u32 %v936, 16
        %v1117 = vrot.slane %v1115, 4
        %v1118 = vshll.u32 %v936, 16
        %v1120 = vrot.slane %v1118, 5
        %v1121 = vor.u32 %v1117, %v1120
        %v1122 = vrot.slane %v1121, 4
        %v1124 = vshll.u32 %v937, 16
        %v1126 = vrot.slane %v1124, 5
        %v1127 = vsel %vm332, %v1122, %v1126
        %v1128 = vshrl.u32 %v937, 16
        %v1130 = vrot.slane %v1128, 4
        %v1131 = vor.u32 %v1130, %v1126
        %v1132 = vrot.slane %v1131, 4
        %v1134 = vshll.u32 %v945, 16
        %v1136 = vrot.slane %v1134, 5
        %v1137 = vsel %vm332, %v1132, %v1136
        %v1138 = vld [vmem:[%s921] sm:$0xe]
        %v1139 = vld [vmem:[%s921 + $0xc] sm:$0xe]
        %v1140 = vld [vmem:[%s921 + $0x18] sm:$0xe]
        %v1141 = vld [vmem:[%s921 + $0x24] sm:$0xe]
        %v1142 = vld [vmem:[%s921 + $0x30] sm:$0xe]
        %v1143 = vld [vmem:[%s921 + $0x3c] sm:$0xe]
        %v1144 = vld [vmem:[%s921 + $0x48] sm:$0xe]
        %v1145 = vld [vmem:[%s921 + $0x54] sm:$0xe]
        %v1170 = vrot.slane %v1138, 5
        %v1171 = vrot.slane %v1170, 4
        %v1172 = vrot.slane %v923, 5
        %v1173 = vsel %vm559, %v1171, %v1172
        %v1174 = vrot.slane %v1172, 4
        %v1175 = vrot.slane %v938, 5
        %v1176 = vsel %vm559, %v1174, %v1175
        %v1177 = vrot.slane %v1139, 5
        %v1178 = vrot.slane %v1177, 4
        %v1179 = vrot.slane %v925, 5
        %v1180 = vsel %vm559, %v1178, %v1179
        %v1181 = vrot.slane %v1179, 4
        %v1182 = vrot.slane %v939, 5
        %v1183 = vsel %vm559, %v1181, %v1182
        %v1184 = vrot.slane %v1140, 5
        %v1185 = vrot.slane %v1184, 4
        %v1186 = vrot.slane %v927, 5
        %v1187 = vsel %vm559, %v1185, %v1186
        %v1188 = vrot.slane %v1186, 4
        %v1189 = vrot.slane %v940, 5
        %v1190 = vsel %vm559, %v1188, %v1189
        %v1191 = vrot.slane %v1141, 5
        %v1192 = vrot.slane %v1191, 4
        %v1193 = vrot.slane %v929, 5
        %v1194 = vsel %vm559, %v1192, %v1193
        %v1195 = vrot.slane %v1193, 4
        %v1196 = vrot.slane %v941, 5
        %v1197 = vsel %vm559, %v1195, %v1196
        %v1198 = vrot.slane %v1142, 5
        %v1199 = vrot.slane %v1198, 4
        %v1200 = vrot.slane %v931, 5
        %v1201 = vsel %vm559, %v1199, %v1200
        %v1202 = vrot.slane %v1200, 4
        %v1203 = vrot.slane %v942, 5
        %v1204 = vsel %vm559, %v1202, %v1203
        %v1205 = vrot.slane %v1143, 5
        %v1206 = vrot.slane %v1205, 4
        %v1207 = vrot.slane %v933, 5
        %v1208 = vsel %vm559, %v1206, %v1207
        %v1209 = vrot.slane %v1207, 4
        %v1210 = vrot.slane %v943, 5
        %v1211 = vsel %vm559, %v1209, %v1210
        %v1212 = vrot.slane %v1144, 5
        %v1213 = vrot.slane %v1212, 4
        %v1214 = vrot.slane %v935, 5
        %v1215 = vsel %vm559, %v1213, %v1214
        %v1216 = vrot.slane %v1214, 4
        %v1217 = vrot.slane %v944, 5
        %v1218 = vsel %vm559, %v1216, %v1217
        %v1219 = vrot.slane %v1145, 5
        %v1220 = vrot.slane %v1219, 4
        %v1221 = vrot.slane %v937, 5
        %v1222 = vsel %vm559, %v1220, %v1221
        %v1223 = vrot.slane %v1221, 4
        %v1224 = vrot.slane %v945, 5
        %v1225 = vsel %vm559, %v1223, %v1224
        %v1234 = vunpack.c.l.b16 %v306
        %v1235 = vunpack.c.l.b16 %v307
        %v1236 = vunpack.c.l.b16 %v308
        %v1237 = vunpack.c.l.b16 %v309
        %v1238 = vunpack.c.l.b16 %v310
        %v1239 = vunpack.c.l.b16 %v311
        %v1240 = vunpack.c.l.b16 %v312
        %v1241 = vunpack.c.l.b16 %v313
        %v1242 = vunpack.c.l.b16 %v314
        %v1243 = vunpack.c.l.b16 %v315
        %v1244 = vunpack.c.l.b16 %v316
        %v1245 = vunpack.c.l.b16 %v317
        %v1246 = vunpack.c.l.b16 %v318
        %v1247 = vunpack.c.l.b16 %v319
        %v1248 = vunpack.c.l.b16 %v320
        %v1249 = vunpack.c.l.b16 %v321
        %v1250 = vpack.c.b16 %v1235, %v1234
        %v1251 = vpack.c.b16 %v1237, %v1236
        %v1252 = vpack.c.b16 %v1239, %v1238
        %v1253 = vpack.c.b16 %v1241, %v1240
        %v1254 = vpack.c.b16 %v1243, %v1242
        %v1255 = vpack.c.b16 %v1245, %v1244
        %v1256 = vpack.c.b16 %v1247, %v1246
        %v1257 = vpack.c.b16 %v1249, %v1248
        %v1258 = vunpack.c.l.b16 %v346
        %v1259 = vunpack.c.l.b16 %v356
        %v1260 = vunpack.c.l.b16 %v370
        %v1261 = vunpack.c.l.b16 %v380
        %v1262 = vunpack.c.l.b16 %v394
        %v1263 = vunpack.c.l.b16 %v404
        %v1264 = vunpack.c.l.b16 %v418
        %v1265 = vunpack.c.l.b16 %v428
        %v1266 = vunpack.c.l.b16 %v442
        %v1267 = vunpack.c.l.b16 %v452
        %v1268 = vunpack.c.l.b16 %v466
        %v1269 = vunpack.c.l.b16 %v476
        %v1270 = vunpack.c.l.b16 %v490
        %v1271 = vunpack.c.l.b16 %v500
        %v1272 = vunpack.c.l.b16 %v514
        %v1273 = vunpack.c.l.b16 %v524
        %v1274 = vpack.c.b16 %v1259, %v1258
        %v1275 = vpack.c.b16 %v1261, %v1260
        %v1276 = vpack.c.b16 %v1263, %v1262
        %v1277 = vpack.c.b16 %v1265, %v1264
        %v1278 = vpack.c.b16 %v1267, %v1266
        %v1279 = vpack.c.b16 %v1269, %v1268
        %v1280 = vpack.c.b16 %v1271, %v1270
        %v1281 = vpack.c.b16 %v1273, %v1272
        %v1282 = vunpack.c.l.b16 %v563
        %v1283 = vunpack.c.l.b16 %v566
        %v1284 = vunpack.c.l.b16 %v570
        %v1285 = vunpack.c.l.b16 %v573
        %v1286 = vunpack.c.l.b16 %v577
        %v1287 = vunpack.c.l.b16 %v580
        %v1288 = vunpack.c.l.b16 %v584
        %v1289 = vunpack.c.l.b16 %v587
        %v1290 = vunpack.c.l.b16 %v591
        %v1291 = vunpack.c.l.b16 %v594
        %v1292 = vunpack.c.l.b16 %v598
        %v1293 = vunpack.c.l.b16 %v601
        %v1294 = vunpack.c.l.b16 %v605
        %v1295 = vunpack.c.l.b16 %v608
        %v1296 = vunpack.c.l.b16 %v612
        %v1297 = vunpack.c.l.b16 %v615
        %v1298 = vpack.c.b16 %v1283, %v1282
        %v1299 = vpack.c.b16 %v1285, %v1284
        %v1300 = vpack.c.b16 %v1287, %v1286
        %v1301 = vpack.c.b16 %v1289, %v1288
        %v1302 = vpack.c.b16 %v1291, %v1290
        %v1303 = vpack.c.b16 %v1293, %v1292
        %v1304 = vpack.c.b16 %v1295, %v1294
        %v1305 = vpack.c.b16 %v1297, %v1296
        %v1314 = vunpack.c.l.b16 %v617
        %v1315 = vunpack.c.l.b16 %v618
        %v1316 = vunpack.c.l.b16 %v619
        %v1317 = vunpack.c.l.b16 %v620
        %v1318 = vunpack.c.l.b16 %v621
        %v1319 = vunpack.c.l.b16 %v622
        %v1320 = vunpack.c.l.b16 %v623
        %v1321 = vunpack.c.l.b16 %v624
        %v1322 = vunpack.c.l.b16 %v625
        %v1323 = vunpack.c.l.b16 %v626
        %v1324 = vunpack.c.l.b16 %v627
        %v1325 = vunpack.c.l.b16 %v628
        %v1326 = vunpack.c.l.b16 %v629
        %v1327 = vunpack.c.l.b16 %v630
        %v1328 = vunpack.c.l.b16 %v631
        %v1329 = vunpack.c.l.b16 %v632
        %v1330 = vpack.c.b16 %v1315, %v1314
        %v1331 = vpack.c.b16 %v1317, %v1316
        %v1332 = vpack.c.b16 %v1319, %v1318
        %v1333 = vpack.c.b16 %v1321, %v1320
        %v1334 = vpack.c.b16 %v1323, %v1322
        %v1335 = vpack.c.b16 %v1325, %v1324
        %v1336 = vpack.c.b16 %v1327, %v1326
        %v1337 = vpack.c.b16 %v1329, %v1328
        %v1338 = vunpack.c.l.b16 %v654
        %v1339 = vunpack.c.l.b16 %v664
        %v1340 = vunpack.c.l.b16 %v678
        %v1341 = vunpack.c.l.b16 %v688
        %v1342 = vunpack.c.l.b16 %v702
        %v1343 = vunpack.c.l.b16 %v712
        %v1344 = vunpack.c.l.b16 %v726
        %v1345 = vunpack.c.l.b16 %v736
        %v1346 = vunpack.c.l.b16 %v750
        %v1347 = vunpack.c.l.b16 %v760
        %v1348 = vunpack.c.l.b16 %v774
        %v1349 = vunpack.c.l.b16 %v784
        %v1350 = vunpack.c.l.b16 %v798
        %v1351 = vunpack.c.l.b16 %v808
        %v1352 = vunpack.c.l.b16 %v822
        %v1353 = vunpack.c.l.b16 %v832
        %v1354 = vpack.c.b16 %v1339, %v1338
        %v1355 = vpack.c.b16 %v1341, %v1340
        %v1356 = vpack.c.b16 %v1343, %v1342
        %v1357 = vpack.c.b16 %v1345, %v1344
        %v1358 = vpack.c.b16 %v1347, %v1346
        %v1359 = vpack.c.b16 %v1349, %v1348
        %v1360 = vpack.c.b16 %v1351, %v1350
        %v1361 = vpack.c.b16 %v1353, %v1352
        %v1362 = vunpack.c.l.b16 %v868
        %v1363 = vunpack.c.l.b16 %v871
        %v1364 = vunpack.c.l.b16 %v875
        %v1365 = vunpack.c.l.b16 %v878
        %v1366 = vunpack.c.l.b16 %v882
        %v1367 = vunpack.c.l.b16 %v885
        %v1368 = vunpack.c.l.b16 %v889
        %v1369 = vunpack.c.l.b16 %v892
        %v1370 = vunpack.c.l.b16 %v896
        %v1371 = vunpack.c.l.b16 %v899
        %v1372 = vunpack.c.l.b16 %v903
        %v1373 = vunpack.c.l.b16 %v906
        %v1374 = vunpack.c.l.b16 %v910
        %v1375 = vunpack.c.l.b16 %v913
        %v1376 = vunpack.c.l.b16 %v917
        %v1377 = vunpack.c.l.b16 %v920
        %v1378 = vpack.c.b16 %v1363, %v1362
        %v1379 = vpack.c.b16 %v1365, %v1364
        %v1380 = vpack.c.b16 %v1367, %v1366
        %v1381 = vpack.c.b16 %v1369, %v1368
        %v1382 = vpack.c.b16 %v1371, %v1370
        %v1383 = vpack.c.b16 %v1373, %v1372
        %v1384 = vpack.c.b16 %v1375, %v1374
        %v1385 = vpack.c.b16 %v1377, %v1376
        %v1394 = vunpack.c.l.b16 %v922
        %v1395 = vunpack.c.l.b16 %v923
        %v1396 = vunpack.c.l.b16 %v924
        %v1397 = vunpack.c.l.b16 %v925
        %v1398 = vunpack.c.l.b16 %v926
        %v1399 = vunpack.c.l.b16 %v927
        %v1400 = vunpack.c.l.b16 %v928
        %v1401 = vunpack.c.l.b16 %v929
        %v1402 = vunpack.c.l.b16 %v930
        %v1403 = vunpack.c.l.b16 %v931
        %v1404 = vunpack.c.l.b16 %v932
        %v1405 = vunpack.c.l.b16 %v933
        %v1406 = vunpack.c.l.b16 %v934
        %v1407 = vunpack.c.l.b16 %v935
        %v1408 = vunpack.c.l.b16 %v936
        %v1409 = vunpack.c.l.b16 %v937
        %v1410 = vpack.c.b16 %v1395, %v1394
        %v1411 = vpack.c.b16 %v1397, %v1396
        %v1412 = vpack.c.b16 %v1399, %v1398
        %v1413 = vpack.c.b16 %v1401, %v1400
        %v1414 = vpack.c.b16 %v1403, %v1402
        %v1415 = vpack.c.b16 %v1405, %v1404
        %v1416 = vpack.c.b16 %v1407, %v1406
        %v1417 = vpack.c.b16 %v1409, %v1408
        %v1418 = vunpack.c.l.b16 %v959
        %v1419 = vunpack.c.l.b16 %v969
        %v1420 = vunpack.c.l.b16 %v983
        %v1421 = vunpack.c.l.b16 %v993
        %v1422 = vunpack.c.l.b16 %v1007
        %v1423 = vunpack.c.l.b16 %v1017
        %v1424 = vunpack.c.l.b16 %v1031
        %v1425 = vunpack.c.l.b16 %v1041
        %v1426 = vunpack.c.l.b16 %v1055
        %v1427 = vunpack.c.l.b16 %v1065
        %v1428 = vunpack.c.l.b16 %v1079
        %v1429 = vunpack.c.l.b16 %v1089
        %v1430 = vunpack.c.l.b16 %v1103
        %v1431 = vunpack.c.l.b16 %v1113
        %v1432 = vunpack.c.l.b16 %v1127
        %v1433 = vunpack.c.l.b16 %v1137
        %v1434 = vpack.c.b16 %v1419, %v1418
        %v1435 = vpack.c.b16 %v1421, %v1420
        %v1436 = vpack.c.b16 %v1423, %v1422
        %v1437 = vpack.c.b16 %v1425, %v1424
        %v1438 = vpack.c.b16 %v1427, %v1426
        %v1439 = vpack.c.b16 %v1429, %v1428
        %v1440 = vpack.c.b16 %v1431, %v1430
        %v1441 = vpack.c.b16 %v1433, %v1432
        %v1442 = vunpack.c.l.b16 %v1173
        %v1443 = vunpack.c.l.b16 %v1176
        %v1444 = vunpack.c.l.b16 %v1180
        %v1445 = vunpack.c.l.b16 %v1183
        %v1446 = vunpack.c.l.b16 %v1187
        %v1447 = vunpack.c.l.b16 %v1190
        %v1448 = vunpack.c.l.b16 %v1194
        %v1449 = vunpack.c.l.b16 %v1197
        %v1450 = vunpack.c.l.b16 %v1201
        %v1451 = vunpack.c.l.b16 %v1204
        %v1452 = vunpack.c.l.b16 %v1208
        %v1453 = vunpack.c.l.b16 %v1211
        %v1454 = vunpack.c.l.b16 %v1215
        %v1455 = vunpack.c.l.b16 %v1218
        %v1456 = vunpack.c.l.b16 %v1222
        %v1457 = vunpack.c.l.b16 %v1225
        %v1458 = vpack.c.b16 %v1443, %v1442
        %v1459 = vpack.c.b16 %v1445, %v1444
        %v1460 = vpack.c.b16 %v1447, %v1446
        %v1461 = vpack.c.b16 %v1449, %v1448
        %v1462 = vpack.c.b16 %v1451, %v1450
        %v1463 = vpack.c.b16 %v1453, %v1452
        %v1464 = vpack.c.b16 %v1455, %v1454
        %v1465 = vpack.c.b16 %v1457, %v1456
        %v1466 = vld [vmem:[%s1] sm:$0xf]
        %v1467 = vld [vmem:[%s1 + $0x4] sm:$0xf]
        %v1468 = vld [vmem:[%s1 + $0x8] sm:$0xf]
        %v1469 = vld [vmem:[%s1 + $0xc] sm:$0xf]
        %v1470 = vld [vmem:[%s1 + $0x10] sm:$0x1]
        %v1476 = vunpack.c.l.b16 %v1466
        %v1477 = vunpack.c.l.b16 %v1467
        %v1478 = vunpack.c.l.b16 %v1468
        %v1479 = vunpack.c.l.b16 %v1469
        %v1480 = vunpack.c.l.b16 %v1470
        %v1481 = vpack.c.b16 %v1477, %v1476
        %v1482 = vpack.c.b16 %v1479, %v1478
        %v1483 = vpack.c.b16 %v1480, %v1480
        %vm1486 = vcmask 277504
        %v1488 = vsel %vm1486, %v1250, 0
        %v1491 = vsel %vm1486, %v1251, 0
        %v1494 = vsel %vm1486, %v1252, 0
        %v1497 = vsel %vm1486, %v1253, 0
        %v1500 = vsel %vm1486, %v1254, 0
        %v1503 = vsel %vm1486, %v1255, 0
        %v1506 = vsel %vm1486, %v1256, 0
        %v1509 = vsel %vm1486, %v1257, 0
        %v1512 = vsel %vm1486, %v1274, 0
        %v1515 = vsel %vm1486, %v1275, 0
        %v1518 = vsel %vm1486, %v1276, 0
        %v1521 = vsel %vm1486, %v1277, 0
        %v1524 = vsel %vm1486, %v1278, 0
        %v1527 = vsel %vm1486, %v1279, 0
        %v1530 = vsel %vm1486, %v1280, 0
        %v1533 = vsel %vm1486, %v1281, 0
        %v1536 = vsel %vm1486, %v1298, 0
        %v1539 = vsel %vm1486, %v1299, 0
        %v1542 = vsel %vm1486, %v1300, 0
        %v1545 = vsel %vm1486, %v1301, 0
        %v1548 = vsel %vm1486, %v1302, 0
        %v1551 = vsel %vm1486, %v1303, 0
        %v1554 = vsel %vm1486, %v1304, 0
        %v1557 = vsel %vm1486, %v1305, 0
        %v1560 = vsel %vm1486, %v1330, 0
        %v1563 = vsel %vm1486, %v1331, 0
        %v1566 = vsel %vm1486, %v1332, 0
        %v1569 = vsel %vm1486, %v1333, 0
        %v1572 = vsel %vm1486, %v1334, 0
        %v1575 = vsel %vm1486, %v1335, 0
        %v1578 = vsel %vm1486, %v1336, 0
        %v1581 = vsel %vm1486, %v1337, 0
        %v1584 = vsel %vm1486, %v1354, 0
        %v1587 = vsel %vm1486, %v1355, 0
        %v1590 = vsel %vm1486, %v1356, 0
        %v1593 = vsel %vm1486, %v1357, 0
        %v1596 = vsel %vm1486, %v1358, 0
        %v1599 = vsel %vm1486, %v1359, 0
        %v1602 = vsel %vm1486, %v1360, 0
        %v1605 = vsel %vm1486, %v1361, 0
        %v1608 = vsel %vm1486, %v1378, 0
        %v1611 = vsel %vm1486, %v1379, 0
        %v1614 = vsel %vm1486, %v1380, 0
        %v1617 = vsel %vm1486, %v1381, 0
        %v1620 = vsel %vm1486, %v1382, 0
        %v1623 = vsel %vm1486, %v1383, 0
        %v1626 = vsel %vm1486, %v1384, 0
        %v1629 = vsel %vm1486, %v1385, 0
        %v1632 = vsel %vm1486, %v1410, 0
        %v1635 = vsel %vm1486, %v1411, 0
        %v1638 = vsel %vm1486, %v1412, 0
        %v1641 = vsel %vm1486, %v1413, 0
        %v1644 = vsel %vm1486, %v1414, 0
        %v1647 = vsel %vm1486, %v1415, 0
        %v1650 = vsel %vm1486, %v1416, 0
        %v1653 = vsel %vm1486, %v1417, 0
        %v1656 = vsel %vm1486, %v1434, 0
        %v1659 = vsel %vm1486, %v1435, 0
        %v1662 = vsel %vm1486, %v1436, 0
        %v1665 = vsel %vm1486, %v1437, 0
        %v1668 = vsel %vm1486, %v1438, 0
        %v1671 = vsel %vm1486, %v1439, 0
        %v1674 = vsel %vm1486, %v1440, 0
        %v1677 = vsel %vm1486, %v1441, 0
        %v1680 = vsel %vm1486, %v1458, 0
        %v1683 = vsel %vm1486, %v1459, 0
        %v1686 = vsel %vm1486, %v1460, 0
        %v1689 = vsel %vm1486, %v1461, 0
        %v1692 = vsel %vm1486, %v1462, 0
        %v1695 = vsel %vm1486, %v1463, 0
        %v1698 = vsel %vm1486, %v1464, 0
        %v1701 = vsel %vm1486, %v1465, 0
        %vm1703 = vcmask 1040384
        %v1705 = vsel %vm1703, %v1483, 0
        %1707 = vmatprep.subr.bf16.mxu0 0
        %1708 = vmatpush1.bf16.msra.mxu0 %v1481
        %1709 = vmatprep.subr.bf16.mxu0 0
        %1710 = vmatpush1.bf16.msra.mxu0 %v1482
        %1711 = vmatprep.subr.bf16.mxu0 0
        %1712 = vmatpush1.bf16.msra.mxu0 %v1705
        %1713 = vmatprep.subr.bf16.mxu0 0
        %1714 = vmatpush1.bf16.msra.mxu0 0
        %1715 = vmatprep.subr.bf16.mxu0 0
        %1716 = vmatpush1.bf16.msra.mxu0 0
        %1717 = vmatprep.subr.bf16.mxu0 0
        %1718 = vmatpush1.bf16.msra.mxu0 0
        %1719 = vmatprep.subr.bf16.mxu0 0
        %1720 = vmatpush1.bf16.msra.mxu0 0
        %1721 = vmatprep.subr.bf16.mxu0 0
        %1722 = vmatpush1.bf16.msra.mxu0 0
        %1723 = vmatprep.subr.bf16.mxu0 0
        %1724 = vmatpush1.bf16.msra.mxu0 0
        %1725 = vmatprep.subr.bf16.mxu0 0
        %1726 = vmatpush1.bf16.msra.mxu0 0
        %1727 = vmatprep.subr.bf16.mxu0 0
        %1728 = vmatpush1.bf16.msra.mxu0 0
        %1729 = vmatprep.subr.bf16.mxu0 0
        %1730 = vmatpush1.bf16.msra.mxu0 0
        %1731 = vmatprep.subr.bf16.mxu0 0
        %1732 = vmatpush1.bf16.msra.mxu0 0
        %1733 = vmatprep.subr.bf16.mxu0 0
        %1734 = vmatpush1.bf16.msra.mxu0 0
        %1735 = vmatprep.subr.bf16.mxu0 0
        %1736 = vmatpush1.bf16.msra.mxu0 0
        %1737 = vmatprep.subr.bf16.mxu0 0
        %1738 = vmatpush1.bf16.msra.mxu0 0
        %1739 = vmatprep.mubr.bf16.mxu0 0
        %1740 = vmatmul.mubr.bf16.gmra.mrb[0].mxu0 %v1488
        %v1741 = vpop.f32.mrb[0].mxu0
        %v1742 = vadd.f32 0.0, %v1741
        %v1743 = vpop.f32.mrb[0].mxu0
        %v1744 = vpop.f32.mrb[0].mxu0
        %v1745 = vadd.f32 0.0, %v1744
        %v1746 = vpop.f32.mrb[0].mxu0
        %1747 = vmatprep.mubr.bf16.mxu0 0
        %1748 = vmatmul.mubr.bf16.gmra.mrb[0].mxu0 %v1491
        %v1749 = vpop.f32.mrb[0].mxu0
        %v1750 = vadd.f32 0.0, %v1749
        %v1751 = vpop.f32.mrb[0].mxu0
        %v1752 = vpop.f32.mrb[0].mxu0
        %v1753 = vadd.f32 0.0, %v1752
        %v1754 = vpop.f32.mrb[0].mxu0
        %1755 = vmatprep.mubr.bf16.mxu0 0
        %1756 = vmatmul.mubr.bf16.gmra.mrb[0].mxu0 %v1494
        %v1757 = vpop.f32.mrb[0].mxu0
        %v1758 = vadd.f32 0.0, %v1757
        %v1759 = vpop.f32.mrb[0].mxu0
        %v1760 = vpop.f32.mrb[0].mxu0
        %v1761 = vadd.f32 0.0, %v1760
        %v1762 = vpop.f32.mrb[0].mxu0
        %1763 = vmatprep.mubr.bf16.mxu0 0
        %1764 = vmatmul.mubr.bf16.gmra.mrb[0].mxu0 %v1497
        %v1765 = vpop.f32.mrb[0].mxu0
        %v1766 = vadd.f32 0.0, %v1765
        %v1767 = vpop.f32.mrb[0].mxu0
        %v1768 = vpop.f32.mrb[0].mxu0
        %v1769 = vadd.f32 0.0, %v1768
        %v1770 = vpop.f32.mrb[0].mxu0
        %1771 = vmatprep.mubr.bf16.mxu0 0
        %1772 = vmatmul.mubr.bf16.gmra.mrb[0].mxu0 %v1500
        %v1773 = vpop.f32.mrb[0].mxu0
        %v1774 = vadd.f32 0.0, %v1773
        %v1775 = vpop.f32.mrb[0].mxu0
        %v1776 = vpop.f32.mrb[0].mxu0
        %v1777 = vadd.f32 0.0, %v1776
        %v1778 = vpop.f32.mrb[0].mxu0
        %1779 = vmatprep.mubr.bf16.mxu0 0
        %1780 = vmatmul.mubr.bf16.gmra.mrb[0].mxu0 %v1503
        %v1781 = vpop.f32.mrb[0].mxu0
        %v1782 = vadd.f32 0.0, %v1781
        %v1783 = vpop.f32.mrb[0].mxu0
        %v1784 = vpop.f32.mrb[0].mxu0
        %v1785 = vadd.f32 0.0, %v1784
        %v1786 = vpop.f32.mrb[0].mxu0
        %1787 = vmatprep.mubr.bf16.mxu0 0
        %1788 = vmatmul.mubr.bf16.gmra.mrb[0].mxu0 %v1506
        %v1789 = vpop.f32.mrb[0].mxu0
        %v1790 = vadd.f32 0.0, %v1789
        %v1791 = vpop.f32.mrb[0].mxu0
        %v1792 = vpop.f32.mrb[0].mxu0
        %v1793 = vadd.f32 0.0, %v1792
        %v1794 = vpop.f32.mrb[0].mxu0
        %1795 = vmatprep.mubr.bf16.mxu0 0
        %1796 = vmatmul.mubr.bf16.gmra.mrb[0].mxu0 %v1509
        %v1797 = vpop.f32.mrb[0].mxu0
        %v1798 = vadd.f32 0.0, %v1797
        %v1799 = vpop.f32.mrb[0].mxu0
        %v1800 = vpop.f32.mrb[0].mxu0
        %v1801 = vadd.f32 0.0, %v1800
        %v1802 = vpop.f32.mrb[0].mxu0
        %1803 = vmatprep.mubr.bf16.mxu0 0
        %1804 = vmatmul.mubr.bf16.gmra.mrb[0].mxu0 %v1512
        %v1805 = vpop.f32.mrb[0].mxu0
        %v1806 = vadd.f32 0.0, %v1805
        %v1807 = vpop.f32.mrb[0].mxu0
        %v1808 = vpop.f32.mrb[0].mxu0
        %v1809 = vadd.f32 0.0, %v1808
        %v1810 = vpop.f32.mrb[0].mxu0
        %1811 = vmatprep.mubr.bf16.mxu0 0
        %1812 = vmatmul.mubr.bf16.gmra.mrb[0].mxu0 %v1515
        %v1813 = vpop.f32.mrb[0].mxu0
        %v1814 = vadd.f32 0.0, %v1813
        %v1815 = vpop.f32.mrb[0].mxu0
        %v1816 = vpop.f32.mrb[0].mxu0
        %v1817 = vadd.f32 0.0, %v1816
        %v1818 = vpop.f32.mrb[0].mxu0
        %1819 = vmatprep.mubr.bf16.mxu0 0
        %1820 = vmatmul.mubr.bf16.gmra.mrb[0].mxu0 %v1518
        %v1821 = vpop.f32.mrb[0].mxu0
        %v1822 = vadd.f32 0.0, %v1821
        %v1823 = vpop.f32.mrb[0].mxu0
        %v1824 = vpop.f32.mrb[0].mxu0
        %v1825 = vadd.f32 0.0, %v1824
        %v1826 = vpop.f32.mrb[0].mxu0
        %1827 = vmatprep.mubr.bf16.mxu0 0
        %1828 = vmatmul.mubr.bf16.gmra.mrb[0].mxu0 %v1521
        %v1829 = vpop.f32.mrb[0].mxu0
        %v1830 = vadd.f32 0.0, %v1829
        %v1831 = vpop.f32.mrb[0].mxu0
        %v1832 = vpop.f32.mrb[0].mxu0
        %v1833 = vadd.f32 0.0, %v1832
        %v1834 = vpop.f32.mrb[0].mxu0
        %1835 = vmatprep.mubr.bf16.mxu0 0
        %1836 = vmatmul.mubr.bf16.gmra.mrb[0].mxu0 %v1524
        %v1837 = vpop.f32.mrb[0].mxu0
        %v1838 = vadd.f32 0.0, %v1837
        %v1839 = vpop.f32.mrb[0].mxu0
        %v1840 = vpop.f32.mrb[0].mxu0
        %v1841 = vadd.f32 0.0, %v1840
        %v1842 = vpop.f32.mrb[0].mxu0
        %1843 = vmatprep.mubr.bf16.mxu0 0
        %1844 = vmatmul.mubr.bf16.gmra.mrb[0].mxu0 %v1527
        %v1845 = vpop.f32.mrb[0].mxu0
        %v1846 = vadd.f32 0.0, %v1845
        %v1847 = vpop.f32.mrb[0].mxu0
        %v1848 = vpop.f32.mrb[0].mxu0
        %v1849 = vadd.f32 0.0, %v1848
        %v1850 = vpop.f32.mrb[0].mxu0
        %1851 = vmatprep.mubr.bf16.mxu0 0
        %1852 = vmatmul.mubr.bf16.gmra.mrb[0].mxu0 %v1530
        %v1853 = vpop.f32.mrb[0].mxu0
        %v1854 = vadd.f32 0.0, %v1853
        %v1855 = vpop.f32.mrb[0].mxu0
        %v1856 = vpop.f32.mrb[0].mxu0
        %v1857 = vadd.f32 0.0, %v1856
        %v1858 = vpop.f32.mrb[0].mxu0
        %1859 = vmatprep.mubr.bf16.mxu0 0
        %1860 = vmatmul.mubr.bf16.gmra.mrb[0].mxu0 %v1533
        %v1861 = vpop.f32.mrb[0].mxu0
        %v1862 = vadd.f32 0.0, %v1861
        %v1863 = vpop.f32.mrb[0].mxu0
        %v1864 = vpop.f32.mrb[0].mxu0
        %v1865 = vadd.f32 0.0, %v1864
        %v1866 = vpop.f32.mrb[0].mxu0
        %1867 = vmatprep.mubr.bf16.mxu0 0
        %1868 = vmatmul.mubr.bf16.gmra.mrb[0].mxu0 %v1536
        %v1869 = vpop.f32.mrb[0].mxu0
        %v1870 = vadd.f32 0.0, %v1869
        %v1871 = vpop.f32.mrb[0].mxu0
        %v1872 = vpop.f32.mrb[0].mxu0
        %v1873 = vadd.f32 0.0, %v1872
        %v1874 = vpop.f32.mrb[0].mxu0
        %1875 = vmatprep.mubr.bf16.mxu0 0
        %1876 = vmatmul.mubr.bf16.gmra.mrb[0].mxu0 %v1539
        %v1877 = vpop.f32.mrb[0].mxu0
        %v1878 = vadd.f32 0.0, %v1877
        %v1879 = vpop.f32.mrb[0].mxu0
        %v1880 = vpop.f32.mrb[0].mxu0
        %v1881 = vadd.f32 0.0, %v1880
        %v1882 = vpop.f32.mrb[0].mxu0
        %1883 = vmatprep.mubr.bf16.mxu0 0
        %1884 = vmatmul.mubr.bf16.gmra.mrb[0].mxu0 %v1542
        %v1885 = vpop.f32.mrb[0].mxu0
        %v1886 = vadd.f32 0.0, %v1885
        %v1887 = vpop.f32.mrb[0].mxu0
        %v1888 = vpop.f32.mrb[0].mxu0
        %v1889 = vadd.f32 0.0, %v1888
        %v1890 = vpop.f32.mrb[0].mxu0
        %1891 = vmatprep.mubr.bf16.mxu0 0
        %1892 = vmatmul.mubr.bf16.gmra.mrb[0].mxu0 %v1545
        %v1893 = vpop.f32.mrb[0].mxu0
        %v1894 = vadd.f32 0.0, %v1893
        %v1895 = vpop.f32.mrb[0].mxu0
        %v1896 = vpop.f32.mrb[0].mxu0
        %v1897 = vadd.f32 0.0, %v1896
        %v1898 = vpop.f32.mrb[0].mxu0
        %1899 = vmatprep.mubr.bf16.mxu0 0
        %1900 = vmatmul.mubr.bf16.gmra.mrb[0].mxu0 %v1548
        %v1901 = vpop.f32.mrb[0].mxu0
        %v1902 = vadd.f32 0.0, %v1901
        %v1903 = vpop.f32.mrb[0].mxu0
        %v1904 = vpop.f32.mrb[0].mxu0
        %v1905 = vadd.f32 0.0, %v1904
        %v1906 = vpop.f32.mrb[0].mxu0
        %1907 = vmatprep.mubr.bf16.mxu0 0
        %1908 = vmatmul.mubr.bf16.gmra.mrb[0].mxu0 %v1551
        %v1909 = vpop.f32.mrb[0].mxu0
        %v1910 = vadd.f32 0.0, %v1909
        %v1911 = vpop.f32.mrb[0].mxu0
        %v1912 = vpop.f32.mrb[0].mxu0
        %v1913 = vadd.f32 0.0, %v1912
        %v1914 = vpop.f32.mrb[0].mxu0
        %1915 = vmatprep.mubr.bf16.mxu0 0
        %1916 = vmatmul.mubr.bf16.gmra.mrb[0].mxu0 %v1554
        %v1917 = vpop.f32.mrb[0].mxu0
        %v1918 = vadd.f32 0.0, %v1917
        %v1919 = vpop.f32.mrb[0].mxu0
        %v1920 = vpop.f32.mrb[0].mxu0
        %v1921 = vadd.f32 0.0, %v1920
        %v1922 = vpop.f32.mrb[0].mxu0
        %1923 = vmatprep.mubr.bf16.mxu0 0
        %1924 = vmatmul.mubr.bf16.gmra.mrb[0].mxu0 %v1557
        %v1925 = vpop.f32.mrb[0].mxu0
        %v1926 = vadd.f32 0.0, %v1925
        %v1927 = vpop.f32.mrb[0].mxu0
        %v1928 = vpop.f32.mrb[0].mxu0
        %v1929 = vadd.f32 0.0, %v1928
        %v1930 = vpop.f32.mrb[0].mxu0
        %1931 = vmatprep.mubr.bf16.mxu0 0
        %1932 = vmatmul.mubr.bf16.gmra.mrb[0].mxu0 %v1560
        %v1933 = vpop.f32.mrb[0].mxu0
        %v1934 = vadd.f32 0.0, %v1933
        %v1935 = vpop.f32.mrb[0].mxu0
        %v1936 = vpop.f32.mrb[0].mxu0
        %v1937 = vadd.f32 0.0, %v1936
        %v1938 = vpop.f32.mrb[0].mxu0
        %1939 = vmatprep.mubr.bf16.mxu0 0
        %1940 = vmatmul.mubr.bf16.gmra.mrb[0].mxu0 %v1563
        %v1941 = vpop.f32.mrb[0].mxu0
        %v1942 = vadd.f32 0.0, %v1941
        %v1943 = vpop.f32.mrb[0].mxu0
        %v1944 = vpop.f32.mrb[0].mxu0
        %v1945 = vadd.f32 0.0, %v1944
        %v1946 = vpop.f32.mrb[0].mxu0
        %1947 = vmatprep.mubr.bf16.mxu0 0
        %1948 = vmatmul.mubr.bf16.gmra.mrb[0].mxu0 %v1566
        %v1949 = vpop.f32.mrb[0].mxu0
        %v1950 = vadd.f32 0.0, %v1949
        %v1951 = vpop.f32.mrb[0].mxu0
        %v1952 = vpop.f32.mrb[0].mxu0
        %v1953 = vadd.f32 0.0, %v1952
        %v1954 = vpop.f32.mrb[0].mxu0
        %1955 = vmatprep.mubr.bf16.mxu0 0
        %1956 = vmatmul.mubr.bf16.gmra.mrb[0].mxu0 %v1569
        %v1957 = vpop.f32.mrb[0].mxu0
        %v1958 = vadd.f32 0.0, %v1957
        %v1959 = vpop.f32.mrb[0].mxu0
        %v1960 = vpop.f32.mrb[0].mxu0
        %v1961 = vadd.f32 0.0, %v1960
        %v1962 = vpop.f32.mrb[0].mxu0
        %1963 = vmatprep.mubr.bf16.mxu0 0
        %1964 = vmatmul.mubr.bf16.gmra.mrb[0].mxu0 %v1572
        %v1965 = vpop.f32.mrb[0].mxu0
        %v1966 = vadd.f32 0.0, %v1965
        %v1967 = vpop.f32.mrb[0].mxu0
        %v1968 = vpop.f32.mrb[0].mxu0
        %v1969 = vadd.f32 0.0, %v1968
        %v1970 = vpop.f32.mrb[0].mxu0
        %1971 = vmatprep.mubr.bf16.mxu0 0
        %1972 = vmatmul.mubr.bf16.gmra.mrb[0].mxu0 %v1575
        %v1973 = vpop.f32.mrb[0].mxu0
        %v1974 = vadd.f32 0.0, %v1973
        %v1975 = vpop.f32.mrb[0].mxu0
        %v1976 = vpop.f32.mrb[0].mxu0
        %v1977 = vadd.f32 0.0, %v1976
        %v1978 = vpop.f32.mrb[0].mxu0
        %1979 = vmatprep.mubr.bf16.mxu0 0
        %1980 = vmatmul.mubr.bf16.gmra.mrb[0].mxu0 %v1578
        %v1981 = vpop.f32.mrb[0].mxu0
        %v1982 = vadd.f32 0.0, %v1981
        %v1983 = vpop.f32.mrb[0].mxu0
        %v1984 = vpop.f32.mrb[0].mxu0
        %v1985 = vadd.f32 0.0, %v1984
        %v1986 = vpop.f32.mrb[0].mxu0
        %1987 = vmatprep.mubr.bf16.mxu0 0
        %1988 = vmatmul.mubr.bf16.gmra.mrb[0].mxu0 %v1581
        %v1989 = vpop.f32.mrb[0].mxu0
        %v1990 = vadd.f32 0.0, %v1989
        %v1991 = vpop.f32.mrb[0].mxu0
        %v1992 = vpop.f32.mrb[0].mxu0
        %v1993 = vadd.f32 0.0, %v1992
        %v1994 = vpop.f32.mrb[0].mxu0
        %1995 = vmatprep.mubr.bf16.mxu0 0
        %1996 = vmatmul.mubr.bf16.gmra.mrb[0].mxu0 %v1584
        %v1997 = vpop.f32.mrb[0].mxu0
        %v1998 = vadd.f32 0.0, %v1997
        %v1999 = vpop.f32.mrb[0].mxu0
        %v2000 = vpop.f32.mrb[0].mxu0
        %v2001 = vadd.f32 0.0, %v2000
        %v2002 = vpop.f32.mrb[0].mxu0
        %2003 = vmatprep.mubr.bf16.mxu0 0
        %2004 = vmatmul.mubr.bf16.gmra.mrb[0].mxu0 %v1587
        %v2005 = vpop.f32.mrb[0].mxu0
        %v2006 = vadd.f32 0.0, %v2005
        %v2007 = vpop.f32.mrb[0].mxu0
        %v2008 = vpop.f32.mrb[0].mxu0
        %v2009 = vadd.f32 0.0, %v2008
        %v2010 = vpop.f32.mrb[0].mxu0
        %2011 = vmatprep.mubr.bf16.mxu0 0
        %2012 = vmatmul.mubr.bf16.gmra.mrb[0].mxu0 %v1590
        %v2013 = vpop.f32.mrb[0].mxu0
        %v2014 = vadd.f32 0.0, %v2013
        %v2015 = vpop.f32.mrb[0].mxu0
        %v2016 = vpop.f32.mrb[0].mxu0
        %v2017 = vadd.f32 0.0, %v2016
        %v2018 = vpop.f32.mrb[0].mxu0
        %2019 = vmatprep.mubr.bf16.mxu0 0
        %2020 = vmatmul.mubr.bf16.gmra.mrb[0].mxu0 %v1593
        %v2021 = vpop.f32.mrb[0].mxu0
        %v2022 = vadd.f32 0.0, %v2021
        %v2023 = vpop.f32.mrb[0].mxu0
        %v2024 = vpop.f32.mrb[0].mxu0
        %v2025 = vadd.f32 0.0, %v2024
        %v2026 = vpop.f32.mrb[0].mxu0
        %2027 = vmatprep.mubr.bf16.mxu0 0
        %2028 = vmatmul.mubr.bf16.gmra.mrb[0].mxu0 %v1596
        %v2029 = vpop.f32.mrb[0].mxu0
        %v2030 = vadd.f32 0.0, %v2029
        %v2031 = vpop.f32.mrb[0].mxu0
        %v2032 = vpop.f32.mrb[0].mxu0
        %v2033 = vadd.f32 0.0, %v2032
        %v2034 = vpop.f32.mrb[0].mxu0
        %2035 = vmatprep.mubr.bf16.mxu0 0
        %2036 = vmatmul.mubr.bf16.gmra.mrb[0].mxu0 %v1599
        %v2037 = vpop.f32.mrb[0].mxu0
        %v2038 = vadd.f32 0.0, %v2037
        %v2039 = vpop.f32.mrb[0].mxu0
        %v2040 = vpop.f32.mrb[0].mxu0
        %v2041 = vadd.f32 0.0, %v2040
        %v2042 = vpop.f32.mrb[0].mxu0
        %2043 = vmatprep.mubr.bf16.mxu0 0
        %2044 = vmatmul.mubr.bf16.gmra.mrb[0].mxu0 %v1602
        %v2045 = vpop.f32.mrb[0].mxu0
        %v2046 = vadd.f32 0.0, %v2045
        %v2047 = vpop.f32.mrb[0].mxu0
        %v2048 = vpop.f32.mrb[0].mxu0
        %v2049 = vadd.f32 0.0, %v2048
        %v2050 = vpop.f32.mrb[0].mxu0
        %2051 = vmatprep.mubr.bf16.mxu0 0
        %2052 = vmatmul.mubr.bf16.gmra.mrb[0].mxu0 %v1605
        %v2053 = vpop.f32.mrb[0].mxu0
        %v2054 = vadd.f32 0.0, %v2053
        %v2055 = vpop.f32.mrb[0].mxu0
        %v2056 = vpop.f32.mrb[0].mxu0
        %v2057 = vadd.f32 0.0, %v2056
        %v2058 = vpop.f32.mrb[0].mxu0
        %2059 = vmatprep.mubr.bf16.mxu0 0
        %2060 = vmatmul.mubr.bf16.gmra.mrb[0].mxu0 %v1608
        %v2061 = vpop.f32.mrb[0].mxu0
        %v2062 = vadd.f32 0.0, %v2061
        %v2063 = vpop.f32.mrb[0].mxu0
        %v2064 = vpop.f32.mrb[0].mxu0
        %v2065 = vadd.f32 0.0, %v2064
        %v2066 = vpop.f32.mrb[0].mxu0
        %2067 = vmatprep.mubr.bf16.mxu0 0
        %2068 = vmatmul.mubr.bf16.gmra.mrb[0].mxu0 %v1611
        %v2069 = vpop.f32.mrb[0].mxu0
        %v2070 = vadd.f32 0.0, %v2069
        %v2071 = vpop.f32.mrb[0].mxu0
        %v2072 = vpop.f32.mrb[0].mxu0
        %v2073 = vadd.f32 0.0, %v2072
        %v2074 = vpop.f32.mrb[0].mxu0
        %2075 = vmatprep.mubr.bf16.mxu0 0
        %2076 = vmatmul.mubr.bf16.gmra.mrb[0].mxu0 %v1614
        %v2077 = vpop.f32.mrb[0].mxu0
        %v2078 = vadd.f32 0.0, %v2077
        %v2079 = vpop.f32.mrb[0].mxu0
        %v2080 = vpop.f32.mrb[0].mxu0
        %v2081 = vadd.f32 0.0, %v2080
        %v2082 = vpop.f32.mrb[0].mxu0
        %2083 = vmatprep.mubr.bf16.mxu0 0
        %2084 = vmatmul.mubr.bf16.gmra.mrb[0].mxu0 %v1617
        %v2085 = vpop.f32.mrb[0].mxu0
        %v2086 = vadd.f32 0.0, %v2085
        %v2087 = vpop.f32.mrb[0].mxu0
        %v2088 = vpop.f32.mrb[0].mxu0
        %v2089 = vadd.f32 0.0, %v2088
        %v2090 = vpop.f32.mrb[0].mxu0
        %2091 = vmatprep.mubr.bf16.mxu0 0
        %2092 = vmatmul.mubr.bf16.gmra.mrb[0].mxu0 %v1620
        %v2093 = vpop.f32.mrb[0].mxu0
        %v2094 = vadd.f32 0.0, %v2093
        %v2095 = vpop.f32.mrb[0].mxu0
        %v2096 = vpop.f32.mrb[0].mxu0
        %v2097 = vadd.f32 0.0, %v2096
        %v2098 = vpop.f32.mrb[0].mxu0
        %2099 = vmatprep.mubr.bf16.mxu0 0
        %2100 = vmatmul.mubr.bf16.gmra.mrb[0].mxu0 %v1623
        %v2101 = vpop.f32.mrb[0].mxu0
        %v2102 = vadd.f32 0.0, %v2101
        %v2103 = vpop.f32.mrb[0].mxu0
        %v2104 = vpop.f32.mrb[0].mxu0
        %v2105 = vadd.f32 0.0, %v2104
        %v2106 = vpop.f32.mrb[0].mxu0
        %2107 = vmatprep.mubr.bf16.mxu0 0
        %2108 = vmatmul.mubr.bf16.gmra.mrb[0].mxu0 %v1626
        %v2109 = vpop.f32.mrb[0].mxu0
        %v2110 = vadd.f32 0.0, %v2109
        %v2111 = vpop.f32.mrb[0].mxu0
        %v2112 = vpop.f32.mrb[0].mxu0
        %v2113 = vadd.f32 0.0, %v2112
        %v2114 = vpop.f32.mrb[0].mxu0
        %2115 = vmatprep.mubr.bf16.mxu0 0
        %2116 = vmatmul.mubr.bf16.gmra.mrb[0].mxu0 %v1629
        %v2117 = vpop.f32.mrb[0].mxu0
        %v2118 = vadd.f32 0.0, %v2117
        %v2119 = vpop.f32.mrb[0].mxu0
        %v2120 = vpop.f32.mrb[0].mxu0
        %v2121 = vadd.f32 0.0, %v2120
        %v2122 = vpop.f32.mrb[0].mxu0
        %2123 = vmatprep.mubr.bf16.mxu0 0
        %2124 = vmatmul.mubr.bf16.gmra.mrb[0].mxu0 %v1632
        %v2125 = vpop.f32.mrb[0].mxu0
        %v2126 = vadd.f32 0.0, %v2125
        %v2127 = vpop.f32.mrb[0].mxu0
        %v2128 = vpop.f32.mrb[0].mxu0
        %v2129 = vadd.f32 0.0, %v2128
        %v2130 = vpop.f32.mrb[0].mxu0
        %2131 = vmatprep.mubr.bf16.mxu0 0
        %2132 = vmatmul.mubr.bf16.gmra.mrb[0].mxu0 %v1635
        %v2133 = vpop.f32.mrb[0].mxu0
        %v2134 = vadd.f32 0.0, %v2133
        %v2135 = vpop.f32.mrb[0].mxu0
        %v2136 = vpop.f32.mrb[0].mxu0
        %v2137 = vadd.f32 0.0, %v2136
        %v2138 = vpop.f32.mrb[0].mxu0
        %2139 = vmatprep.mubr.bf16.mxu0 0
        %2140 = vmatmul.mubr.bf16.gmra.mrb[0].mxu0 %v1638
        %v2141 = vpop.f32.mrb[0].mxu0
        %v2142 = vadd.f32 0.0, %v2141
        %v2143 = vpop.f32.mrb[0].mxu0
        %v2144 = vpop.f32.mrb[0].mxu0
        %v2145 = vadd.f32 0.0, %v2144
        %v2146 = vpop.f32.mrb[0].mxu0
        %2147 = vmatprep.mubr.bf16.mxu0 0
        %2148 = vmatmul.mubr.bf16.gmra.mrb[0].mxu0 %v1641
        %v2149 = vpop.f32.mrb[0].mxu0
        %v2150 = vadd.f32 0.0, %v2149
        %v2151 = vpop.f32.mrb[0].mxu0
        %v2152 = vpop.f32.mrb[0].mxu0
        %v2153 = vadd.f32 0.0, %v2152
        %v2154 = vpop.f32.mrb[0].mxu0
        %2155 = vmatprep.mubr.bf16.mxu0 0
        %2156 = vmatmul.mubr.bf16.gmra.mrb[0].mxu0 %v1644
        %v2157 = vpop.f32.mrb[0].mxu0
        %v2158 = vadd.f32 0.0, %v2157
        %v2159 = vpop.f32.mrb[0].mxu0
        %v2160 = vpop.f32.mrb[0].mxu0
        %v2161 = vadd.f32 0.0, %v2160
        %v2162 = vpop.f32.mrb[0].mxu0
        %2163 = vmatprep.mubr.bf16.mxu0 0
        %2164 = vmatmul.mubr.bf16.gmra.mrb[0].mxu0 %v1647
        %v2165 = vpop.f32.mrb[0].mxu0
        %v2166 = vadd.f32 0.0, %v2165
        %v2167 = vpop.f32.mrb[0].mxu0
        %v2168 = vpop.f32.mrb[0].mxu0
        %v2169 = vadd.f32 0.0, %v2168
        %v2170 = vpop.f32.mrb[0].mxu0
        %2171 = vmatprep.mubr.bf16.mxu0 0
        %2172 = vmatmul.mubr.bf16.gmra.mrb[0].mxu0 %v1650
        %v2173 = vpop.f32.mrb[0].mxu0
        %v2174 = vadd.f32 0.0, %v2173
        %v2175 = vpop.f32.mrb[0].mxu0
        %v2176 = vpop.f32.mrb[0].mxu0
        %v2177 = vadd.f32 0.0, %v2176
        %v2178 = vpop.f32.mrb[0].mxu0
        %2179 = vmatprep.mubr.bf16.mxu0 0
        %2180 = vmatmul.mubr.bf16.gmra.mrb[0].mxu0 %v1653
        %v2181 = vpop.f32.mrb[0].mxu0
        %v2182 = vadd.f32 0.0, %v2181
        %v2183 = vpop.f32.mrb[0].mxu0
        %v2184 = vpop.f32.mrb[0].mxu0
        %v2185 = vadd.f32 0.0, %v2184
        %v2186 = vpop.f32.mrb[0].mxu0
        %2187 = vmatprep.mubr.bf16.mxu0 0
        %2188 = vmatmul.mubr.bf16.gmra.mrb[0].mxu0 %v1656
        %v2189 = vpop.f32.mrb[0].mxu0
        %v2190 = vadd.f32 0.0, %v2189
        %v2191 = vpop.f32.mrb[0].mxu0
        %v2192 = vpop.f32.mrb[0].mxu0
        %v2193 = vadd.f32 0.0, %v2192
        %v2194 = vpop.f32.mrb[0].mxu0
        %2195 = vmatprep.mubr.bf16.mxu0 0
        %2196 = vmatmul.mubr.bf16.gmra.mrb[0].mxu0 %v1659
        %v2197 = vpop.f32.mrb[0].mxu0
        %v2198 = vadd.f32 0.0, %v2197
        %v2199 = vpop.f32.mrb[0].mxu0
        %v2200 = vpop.f32.mrb[0].mxu0
        %v2201 = vadd.f32 0.0, %v2200
        %v2202 = vpop.f32.mrb[0].mxu0
        %2203 = vmatprep.mubr.bf16.mxu0 0
        %2204 = vmatmul.mubr.bf16.gmra.mrb[0].mxu0 %v1662
        %v2205 = vpop.f32.mrb[0].mxu0
        %v2206 = vadd.f32 0.0, %v2205
        %v2207 = vpop.f32.mrb[0].mxu0
        %v2208 = vpop.f32.mrb[0].mxu0
        %v2209 = vadd.f32 0.0, %v2208
        %v2210 = vpop.f32.mrb[0].mxu0
        %2211 = vmatprep.mubr.bf16.mxu0 0
        %2212 = vmatmul.mubr.bf16.gmra.mrb[0].mxu0 %v1665
        %v2213 = vpop.f32.mrb[0].mxu0
        %v2214 = vadd.f32 0.0, %v2213
        %v2215 = vpop.f32.mrb[0].mxu0
        %v2216 = vpop.f32.mrb[0].mxu0
        %v2217 = vadd.f32 0.0, %v2216
        %v2218 = vpop.f32.mrb[0].mxu0
        %2219 = vmatprep.mubr.bf16.mxu0 0
        %2220 = vmatmul.mubr.bf16.gmra.mrb[0].mxu0 %v1668
        %v2221 = vpop.f32.mrb[0].mxu0
        %v2222 = vadd.f32 0.0, %v2221
        %v2223 = vpop.f32.mrb[0].mxu0
        %v2224 = vpop.f32.mrb[0].mxu0
        %v2225 = vadd.f32 0.0, %v2224
        %v2226 = vpop.f32.mrb[0].mxu0
        %2227 = vmatprep.mubr.bf16.mxu0 0
        %2228 = vmatmul.mubr.bf16.gmra.mrb[0].mxu0 %v1671
        %v2229 = vpop.f32.mrb[0].mxu0
        %v2230 = vadd.f32 0.0, %v2229
        %v2231 = vpop.f32.mrb[0].mxu0
        %v2232 = vpop.f32.mrb[0].mxu0
        %v2233 = vadd.f32 0.0, %v2232
        %v2234 = vpop.f32.mrb[0].mxu0
        %2235 = vmatprep.mubr.bf16.mxu0 0
        %2236 = vmatmul.mubr.bf16.gmra.mrb[0].mxu0 %v1674
        %v2237 = vpop.f32.mrb[0].mxu0
        %v2238 = vadd.f32 0.0, %v2237
        %v2239 = vpop.f32.mrb[0].mxu0
        %v2240 = vpop.f32.mrb[0].mxu0
        %v2241 = vadd.f32 0.0, %v2240
        %v2242 = vpop.f32.mrb[0].mxu0
        %2243 = vmatprep.mubr.bf16.mxu0 0
        %2244 = vmatmul.mubr.bf16.gmra.mrb[0].mxu0 %v1677
        %v2245 = vpop.f32.mrb[0].mxu0
        %v2246 = vadd.f32 0.0, %v2245
        %v2247 = vpop.f32.mrb[0].mxu0
        %v2248 = vpop.f32.mrb[0].mxu0
        %v2249 = vadd.f32 0.0, %v2248
        %v2250 = vpop.f32.mrb[0].mxu0
        %2251 = vmatprep.mubr.bf16.mxu0 0
        %2252 = vmatmul.mubr.bf16.gmra.mrb[0].mxu0 %v1680
        %v2253 = vpop.f32.mrb[0].mxu0
        %v2254 = vadd.f32 0.0, %v2253
        %v2255 = vpop.f32.mrb[0].mxu0
        %v2256 = vpop.f32.mrb[0].mxu0
        %v2257 = vadd.f32 0.0, %v2256
        %v2258 = vpop.f32.mrb[0].mxu0
        %2259 = vmatprep.mubr.bf16.mxu0 0
        %2260 = vmatmul.mubr.bf16.gmra.mrb[0].mxu0 %v1683
        %v2261 = vpop.f32.mrb[0].mxu0
        %v2262 = vadd.f32 0.0, %v2261
        %v2263 = vpop.f32.mrb[0].mxu0
        %v2264 = vpop.f32.mrb[0].mxu0
        %v2265 = vadd.f32 0.0, %v2264
        %v2266 = vpop.f32.mrb[0].mxu0
        %2267 = vmatprep.mubr.bf16.mxu0 0
        %2268 = vmatmul.mubr.bf16.gmra.mrb[0].mxu0 %v1686
        %v2269 = vpop.f32.mrb[0].mxu0
        %v2270 = vadd.f32 0.0, %v2269
        %v2271 = vpop.f32.mrb[0].mxu0
        %v2272 = vpop.f32.mrb[0].mxu0
        %v2273 = vadd.f32 0.0, %v2272
        %v2274 = vpop.f32.mrb[0].mxu0
        %2275 = vmatprep.mubr.bf16.mxu0 0
        %2276 = vmatmul.mubr.bf16.gmra.mrb[0].mxu0 %v1689
        %v2277 = vpop.f32.mrb[0].mxu0
        %v2278 = vadd.f32 0.0, %v2277
        %v2279 = vpop.f32.mrb[0].mxu0
        %v2280 = vpop.f32.mrb[0].mxu0
        %v2281 = vadd.f32 0.0, %v2280
        %v2282 = vpop.f32.mrb[0].mxu0
        %2283 = vmatprep.mubr.bf16.mxu0 0
        %2284 = vmatmul.mubr.bf16.gmra.mrb[0].mxu0 %v1692
        %v2285 = vpop.f32.mrb[0].mxu0
        %v2286 = vadd.f32 0.0, %v2285
        %v2287 = vpop.f32.mrb[0].mxu0
        %v2288 = vpop.f32.mrb[0].mxu0
        %v2289 = vadd.f32 0.0, %v2288
        %v2290 = vpop.f32.mrb[0].mxu0
        %2291 = vmatprep.mubr.bf16.mxu0 0
        %2292 = vmatmul.mubr.bf16.gmra.mrb[0].mxu0 %v1695
        %v2293 = vpop.f32.mrb[0].mxu0
        %v2294 = vadd.f32 0.0, %v2293
        %v2295 = vpop.f32.mrb[0].mxu0
        %v2296 = vpop.f32.mrb[0].mxu0
        %v2297 = vadd.f32 0.0, %v2296
        %v2298 = vpop.f32.mrb[0].mxu0
        %2299 = vmatprep.mubr.bf16.mxu0 0
        %2300 = vmatmul.mubr.bf16.gmra.mrb[0].mxu0 %v1698
        %v2301 = vpop.f32.mrb[0].mxu0
        %v2302 = vadd.f32 0.0, %v2301
        %v2303 = vpop.f32.mrb[0].mxu0
        %v2304 = vpop.f32.mrb[0].mxu0
        %v2305 = vadd.f32 0.0, %v2304
        %v2306 = vpop.f32.mrb[0].mxu0
        %2307 = vmatprep.mubr.bf16.mxu0 0
        %2308 = vmatmul.mubr.bf16.gmra.mrb[0].mxu0 %v1701
        %v2309 = vpop.f32.mrb[0].mxu0
        %v2310 = vadd.f32 0.0, %v2309
        %v2311 = vpop.f32.mrb[0].mxu0
        %v2312 = vpop.f32.mrb[0].mxu0
        %v2313 = vadd.f32 0.0, %v2312
        %v2314 = vpop.f32.mrb[0].mxu0
        %2315 = vdwg.mxu0
        %vm2316 = vcmask 130048
        %v2317 = vsel %vm2316, %v1742, -inf
        %v2318 = vsel %vm2316, %v1806, -inf
        %v2319 = vmax.f32 %v2317, %v2318
        %v2320 = vsel %vm2316, %v1870, -inf
        %v2321 = vmax.f32 %v2319, %v2320
        %v2322 = vsel %vm2316, %v1934, -inf
        %v2323 = vmax.f32 %v2321, %v2322
        %v2324 = vsel %vm2316, %v1998, -inf
        %v2325 = vmax.f32 %v2323, %v2324
        %v2326 = vsel %vm2316, %v2062, -inf
        %v2327 = vmax.f32 %v2325, %v2326
        %v2328 = vsel %vm2316, %v2126, -inf
        %v2329 = vmax.f32 %v2327, %v2328
        %v2330 = vsel %vm2316, %v2190, -inf
        %v2331 = vmax.f32 %v2329, %v2330
        %v2332 = vsel %vm2316, %v2254, -inf
        %v2333 = vmax.f32 %v2331, %v2332
        %v2334 = vsel %vm2316, %v1745, -inf
        %v2335 = vsel %vm2316, %v1809, -inf
        %v2336 = vmax.f32 %v2334, %v2335
        %v2337 = vsel %vm2316, %v1873, -inf
        %v2338 = vmax.f32 %v2336, %v2337
        %v2339 = vsel %vm2316, %v1937, -inf
        %v2340 = vmax.f32 %v2338, %v2339
        %v2341 = vsel %vm2316, %v2001, -inf
        %v2342 = vmax.f32 %v2340, %v2341
        %v2343 = vsel %vm2316, %v2065, -inf
        %v2344 = vmax.f32 %v2342, %v2343
        %v2345 = vsel %vm2316, %v2129, -inf
        %v2346 = vmax.f32 %v2344, %v2345
        %v2347 = vsel %vm2316, %v2193, -inf
        %v2348 = vmax.f32 %v2346, %v2347
        %v2349 = vsel %vm2316, %v2257, -inf
        %v2350 = vmax.f32 %v2348, %v2349
        %v2351 = vsel %vm2316, %v1750, -inf
        %v2352 = vsel %vm2316, %v1814, -inf
        %v2353 = vmax.f32 %v2351, %v2352
        %v2354 = vsel %vm2316, %v1878, -inf
        %v2355 = vmax.f32 %v2353, %v2354
        %v2356 = vsel %vm2316, %v1942, -inf
        %v2357 = vmax.f32 %v2355, %v2356
        %v2358 = vsel %vm2316, %v2006, -inf
        %v2359 = vmax.f32 %v2357, %v2358
        %v2360 = vsel %vm2316, %v2070, -inf
        %v2361 = vmax.f32 %v2359, %v2360
        %v2362 = vsel %vm2316, %v2134, -inf
        %v2363 = vmax.f32 %v2361, %v2362
        %v2364 = vsel %vm2316, %v2198, -inf
        %v2365 = vmax.f32 %v2363, %v2364
        %v2366 = vsel %vm2316, %v2262, -inf
        %v2367 = vmax.f32 %v2365, %v2366
        %v2368 = vsel %vm2316, %v1753, -inf
        %v2369 = vsel %vm2316, %v1817, -inf
        %v2370 = vmax.f32 %v2368, %v2369
        %v2371 = vsel %vm2316, %v1881, -inf
        %v2372 = vmax.f32 %v2370, %v2371
        %v2373 = vsel %vm2316, %v1945, -inf
        %v2374 = vmax.f32 %v2372, %v2373
        %v2375 = vsel %vm2316, %v2009, -inf
        %v2376 = vmax.f32 %v2374, %v2375
        %v2377 = vsel %vm2316, %v2073, -inf
        %v2378 = vmax.f32 %v2376, %v2377
        %v2379 = vsel %vm2316, %v2137, -inf
        %v2380 = vmax.f32 %v2378, %v2379
        %v2381 = vsel %vm2316, %v2201, -inf
        %v2382 = vmax.f32 %v2380, %v2381
        %v2383 = vsel %vm2316, %v2265, -inf
        %v2384 = vmax.f32 %v2382, %v2383
        %v2385 = vsel %vm2316, %v1758, -inf
        %v2386 = vsel %vm2316, %v1822, -inf
        %v2387 = vmax.f32 %v2385, %v2386
        %v2388 = vsel %vm2316, %v1886, -inf
        %v2389 = vmax.f32 %v2387, %v2388
        %v2390 = vsel %vm2316, %v1950, -inf
        %v2391 = vmax.f32 %v2389, %v2390
        %v2392 = vsel %vm2316, %v2014, -inf
        %v2393 = vmax.f32 %v2391, %v2392
        %v2394 = vsel %vm2316, %v2078, -inf
        %v2395 = vmax.f32 %v2393, %v2394
        %v2396 = vsel %vm2316, %v2142, -inf
        %v2397 = vmax.f32 %v2395, %v2396
        %v2398 = vsel %vm2316, %v2206, -inf
        %v2399 = vmax.f32 %v2397, %v2398
        %v2400 = vsel %vm2316, %v2270, -inf
        %v2401 = vmax.f32 %v2399, %v2400
        %v2402 = vsel %vm2316, %v1761, -inf
        %v2403 = vsel %vm2316, %v1825, -inf
        %v2404 = vmax.f32 %v2402, %v2403
        %v2405 = vsel %vm2316, %v1889, -inf
        %v2406 = vmax.f32 %v2404, %v2405
        %v2407 = vsel %vm2316, %v1953, -inf
        %v2408 = vmax.f32 %v2406, %v2407
        %v2409 = vsel %vm2316, %v2017, -inf
        %v2410 = vmax.f32 %v2408, %v2409
        %v2411 = vsel %vm2316, %v2081, -inf
        %v2412 = vmax.f32 %v2410, %v2411
        %v2413 = vsel %vm2316, %v2145, -inf
        %v2414 = vmax.f32 %v2412, %v2413
        %v2415 = vsel %vm2316, %v2209, -inf
        %v2416 = vmax.f32 %v2414, %v2415
        %v2417 = vsel %vm2316, %v2273, -inf
        %v2418 = vmax.f32 %v2416, %v2417
        %v2419 = vsel %vm2316, %v1766, -inf
        %v2420 = vsel %vm2316, %v1830, -inf
        %v2421 = vmax.f32 %v2419, %v2420
        %v2422 = vsel %vm2316, %v1894, -inf
        %v2423 = vmax.f32 %v2421, %v2422
        %v2424 = vsel %vm2316, %v1958, -inf
        %v2425 = vmax.f32 %v2423, %v2424
        %v2426 = vsel %vm2316, %v2022, -inf
        %v2427 = vmax.f32 %v2425, %v2426
        %v2428 = vsel %vm2316, %v2086, -inf
        %v2429 = vmax.f32 %v2427, %v2428
        %v2430 = vsel %vm2316, %v2150, -inf
        %v2431 = vmax.f32 %v2429, %v2430
        %v2432 = vsel %vm2316, %v2214, -inf
        %v2433 = vmax.f32 %v2431, %v2432
        %v2434 = vsel %vm2316, %v2278, -inf
        %v2435 = vmax.f32 %v2433, %v2434
        %v2436 = vsel %vm2316, %v1769, -inf
        %v2437 = vsel %vm2316, %v1833, -inf
        %v2438 = vmax.f32 %v2436, %v2437
        %v2439 = vsel %vm2316, %v1897, -inf
        %v2440 = vmax.f32 %v2438, %v2439
        %v2441 = vsel %vm2316, %v1961, -inf
        %v2442 = vmax.f32 %v2440, %v2441
        %v2443 = vsel %vm2316, %v2025, -inf
        %v2444 = vmax.f32 %v2442, %v2443
        %v2445 = vsel %vm2316, %v2089, -inf
        %v2446 = vmax.f32 %v2444, %v2445
        %v2447 = vsel %vm2316, %v2153, -inf
        %v2448 = vmax.f32 %v2446, %v2447
        %v2449 = vsel %vm2316, %v2217, -inf
        %v2450 = vmax.f32 %v2448, %v2449
        %v2451 = vsel %vm2316, %v2281, -inf
        %v2452 = vmax.f32 %v2450, %v2451
        %v2453 = vsel %vm2316, %v1774, -inf
        %v2454 = vsel %vm2316, %v1838, -inf
        %v2455 = vmax.f32 %v2453, %v2454
        %v2456 = vsel %vm2316, %v1902, -inf
        %v2457 = vmax.f32 %v2455, %v2456
        %v2458 = vsel %vm2316, %v1966, -inf
        %v2459 = vmax.f32 %v2457, %v2458
        %v2460 = vsel %vm2316, %v2030, -inf
        %v2461 = vmax.f32 %v2459, %v2460
        %v2462 = vsel %vm2316, %v2094, -inf
        %v2463 = vmax.f32 %v2461, %v2462
        %v2464 = vsel %vm2316, %v2158, -inf
        %v2465 = vmax.f32 %v2463, %v2464
        %v2466 = vsel %vm2316, %v2222, -inf
        %v2467 = vmax.f32 %v2465, %v2466
        %v2468 = vsel %vm2316, %v2286, -inf
        %v2469 = vmax.f32 %v2467, %v2468
        %v2470 = vsel %vm2316, %v1777, -inf
        %v2471 = vsel %vm2316, %v1841, -inf
        %v2472 = vmax.f32 %v2470, %v2471
        %v2473 = vsel %vm2316, %v1905, -inf
        %v2474 = vmax.f32 %v2472, %v2473
        %v2475 = vsel %vm2316, %v1969, -inf
        %v2476 = vmax.f32 %v2474, %v2475
        %v2477 = vsel %vm2316, %v2033, -inf
        %v2478 = vmax.f32 %v2476, %v2477
        %v2479 = vsel %vm2316, %v2097, -inf
        %v2480 = vmax.f32 %v2478, %v2479
        %v2481 = vsel %vm2316, %v2161, -inf
        %v2482 = vmax.f32 %v2480, %v2481
        %v2483 = vsel %vm2316, %v2225, -inf
        %v2484 = vmax.f32 %v2482, %v2483
        %v2485 = vsel %vm2316, %v2289, -inf
        %v2486 = vmax.f32 %v2484, %v2485
        %v2487 = vsel %vm2316, %v1782, -inf
        %v2488 = vsel %vm2316, %v1846, -inf
        %v2489 = vmax.f32 %v2487, %v2488
        %v2490 = vsel %vm2316, %v1910, -inf
        %v2491 = vmax.f32 %v2489, %v2490
        %v2492 = vsel %vm2316, %v1974, -inf
        %v2493 = vmax.f32 %v2491, %v2492
        %v2494 = vsel %vm2316, %v2038, -inf
        %v2495 = vmax.f32 %v2493, %v2494
        %v2496 = vsel %vm2316, %v2102, -inf
        %v2497 = vmax.f32 %v2495, %v2496
        %v2498 = vsel %vm2316, %v2166, -inf
        %v2499 = vmax.f32 %v2497, %v2498
        %v2500 = vsel %vm2316, %v2230, -inf
        %v2501 = vmax.f32 %v2499, %v2500
        %v2502 = vsel %vm2316, %v2294, -inf
        %v2503 = vmax.f32 %v2501, %v2502
        %v2504 = vsel %vm2316, %v1785, -inf
        %v2505 = vsel %vm2316, %v1849, -inf
        %v2506 = vmax.f32 %v2504, %v2505
        %v2507 = vsel %vm2316, %v1913, -inf
        %v2508 = vmax.f32 %v2506, %v2507
        %v2509 = vsel %vm2316, %v1977, -inf
        %v2510 = vmax.f32 %v2508, %v2509
        %v2511 = vsel %vm2316, %v2041, -inf
        %v2512 = vmax.f32 %v2510, %v2511
        %v2513 = vsel %vm2316, %v2105, -inf
        %v2514 = vmax.f32 %v2512, %v2513
        %v2515 = vsel %vm2316, %v2169, -inf
        %v2516 = vmax.f32 %v2514, %v2515
        %v2517 = vsel %vm2316, %v2233, -inf
        %v2518 = vmax.f32 %v2516, %v2517
        %v2519 = vsel %vm2316, %v2297, -inf
        %v2520 = vmax.f32 %v2518, %v2519
        %v2521 = vsel %vm2316, %v1790, -inf
        %v2522 = vsel %vm2316, %v1854, -inf
        %v2523 = vmax.f32 %v2521, %v2522
        %v2524 = vsel %vm2316, %v1918, -inf
        %v2525 = vmax.f32 %v2523, %v2524
        %v2526 = vsel %vm2316, %v1982, -inf
        %v2527 = vmax.f32 %v2525, %v2526
        %v2528 = vsel %vm2316, %v2046, -inf
        %v2529 = vmax.f32 %v2527, %v2528
        %v2530 = vsel %vm2316, %v2110, -inf
        %v2531 = vmax.f32 %v2529, %v2530
        %v2532 = vsel %vm2316, %v2174, -inf
        %v2533 = vmax.f32 %v2531, %v2532
        %v2534 = vsel %vm2316, %v2238, -inf
        %v2535 = vmax.f32 %v2533, %v2534
        %v2536 = vsel %vm2316, %v2302, -inf
        %v2537 = vmax.f32 %v2535, %v2536
        %v2538 = vsel %vm2316, %v1793, -inf
        %v2539 = vsel %vm2316, %v1857, -inf
        %v2540 = vmax.f32 %v2538, %v2539
        %v2541 = vsel %vm2316, %v1921, -inf
        %v2542 = vmax.f32 %v2540, %v2541
        %v2543 = vsel %vm2316, %v1985, -inf
        %v2544 = vmax.f32 %v2542, %v2543
        %v2545 = vsel %vm2316, %v2049, -inf
        %v2546 = vmax.f32 %v2544, %v2545
        %v2547 = vsel %vm2316, %v2113, -inf
        %v2548 = vmax.f32 %v2546, %v2547
        %v2549 = vsel %vm2316, %v2177, -inf
        %v2550 = vmax.f32 %v2548, %v2549
        %v2551 = vsel %vm2316, %v2241, -inf
        %v2552 = vmax.f32 %v2550, %v2551
        %v2553 = vsel %vm2316, %v2305, -inf
        %v2554 = vmax.f32 %v2552, %v2553
        %v2555 = vsel %vm2316, %v1798, -inf
        %v2556 = vsel %vm2316, %v1862, -inf
        %v2557 = vmax.f32 %v2555, %v2556
        %v2558 = vsel %vm2316, %v1926, -inf
        %v2559 = vmax.f32 %v2557, %v2558
        %v2560 = vsel %vm2316, %v1990, -inf
        %v2561 = vmax.f32 %v2559, %v2560
        %v2562 = vsel %vm2316, %v2054, -inf
        %v2563 = vmax.f32 %v2561, %v2562
        %v2564 = vsel %vm2316, %v2118, -inf
        %v2565 = vmax.f32 %v2563, %v2564
        %v2566 = vsel %vm2316, %v2182, -inf
        %v2567 = vmax.f32 %v2565, %v2566
        %v2568 = vsel %vm2316, %v2246, -inf
        %v2569 = vmax.f32 %v2567, %v2568
        %v2570 = vsel %vm2316, %v2310, -inf
        %v2571 = vmax.f32 %v2569, %v2570
        %v2572 = vsel %vm2316, %v1801, -inf
        %v2573 = vsel %vm2316, %v1865, -inf
        %v2574 = vmax.f32 %v2572, %v2573
        %v2575 = vsel %vm2316, %v1929, -inf
        %v2576 = vmax.f32 %v2574, %v2575
        %v2577 = vsel %vm2316, %v1993, -inf
        %v2578 = vmax.f32 %v2576, %v2577
        %v2579 = vsel %vm2316, %v2057, -inf
        %v2580 = vmax.f32 %v2578, %v2579
        %v2581 = vsel %vm2316, %v2121, -inf
        %v2582 = vmax.f32 %v2580, %v2581
        %v2583 = vsel %vm2316, %v2185, -inf
        %v2584 = vmax.f32 %v2582, %v2583
        %v2585 = vsel %vm2316, %v2249, -inf
        %v2586 = vmax.f32 %v2584, %v2585
        %v2587 = vsel %vm2316, %v2313, -inf
        %v2588 = vmax.f32 %v2586, %v2587
        %v2589 = vsub.f32 %v1742, %v2333
        %v2590 = vsub.f32 %v1745, %v2350
        %v2591 = vsub.f32 %v1750, %v2367
        %v2592 = vsub.f32 %v1753, %v2384
        %v2593 = vsub.f32 %v1758, %v2401
        %v2594 = vsub.f32 %v1761, %v2418
        %v2595 = vsub.f32 %v1766, %v2435
        %v2596 = vsub.f32 %v1769, %v2452
        %v2597 = vsub.f32 %v1774, %v2469
        %v2598 = vsub.f32 %v1777, %v2486
        %v2599 = vsub.f32 %v1782, %v2503
        %v2600 = vsub.f32 %v1785, %v2520
        %v2601 = vsub.f32 %v1790, %v2537
        %v2602 = vsub.f32 %v1793, %v2554
        %v2603 = vsub.f32 %v1798, %v2571
        %v2604 = vsub.f32 %v1801, %v2588
        %v2605 = vsub.f32 %v1806, %v2333
        %v2606 = vsub.f32 %v1809, %v2350
        %v2607 = vsub.f32 %v1814, %v2367
        %v2608 = vsub.f32 %v1817, %v2384
        %v2609 = vsub.f32 %v1822, %v2401
        %v2610 = vsub.f32 %v1825, %v2418
        %v2611 = vsub.f32 %v1830, %v2435
        %v2612 = vsub.f32 %v1833, %v2452
        %v2613 = vsub.f32 %v1838, %v2469
        %v2614 = vsub.f32 %v1841, %v2486
        %v2615 = vsub.f32 %v1846, %v2503
        %v2616 = vsub.f32 %v1849, %v2520
        %v2617 = vsub.f32 %v1854, %v2537
        %v2618 = vsub.f32 %v1857, %v2554
        %v2619 = vsub.f32 %v1862, %v2571
        %v2620 = vsub.f32 %v1865, %v2588
        %v2621 = vsub.f32 %v1870, %v2333
        %v2622 = vsub.f32 %v1873, %v2350
        %v2623 = vsub.f32 %v1878, %v2367
        %v2624 = vsub.f32 %v1881, %v2384
        %v2625 = vsub.f32 %v1886, %v2401
        %v2626 = vsub.f32 %v1889, %v2418
        %v2627 = vsub.f32 %v1894, %v2435
        %v2628 = vsub.f32 %v1897, %v2452
        %v2629 = vsub.f32 %v1902, %v2469
        %v2630 = vsub.f32 %v1905, %v2486
        %v2631 = vsub.f32 %v1910, %v2503
        %v2632 = vsub.f32 %v1913, %v2520
        %v2633 = vsub.f32 %v1918, %v2537
        %v2634 = vsub.f32 %v1921, %v2554
        %v2635 = vsub.f32 %v1926, %v2571
        %v2636 = vsub.f32 %v1929, %v2588
        %v2637 = vsub.f32 %v1934, %v2333
        %v2638 = vsub.f32 %v1937, %v2350
        %v2639 = vsub.f32 %v1942, %v2367
        %v2640 = vsub.f32 %v1945, %v2384
        %v2641 = vsub.f32 %v1950, %v2401
        %v2642 = vsub.f32 %v1953, %v2418
        %v2643 = vsub.f32 %v1958, %v2435
        %v2644 = vsub.f32 %v1961, %v2452
        %v2645 = vsub.f32 %v1966, %v2469
        %v2646 = vsub.f32 %v1969, %v2486
        %v2647 = vsub.f32 %v1974, %v2503
        %v2648 = vsub.f32 %v1977, %v2520
        %v2649 = vsub.f32 %v1982, %v2537
        %v2650 = vsub.f32 %v1985, %v2554
        %v2651 = vsub.f32 %v1990, %v2571
        %v2652 = vsub.f32 %v1993, %v2588
        %v2653 = vsub.f32 %v1998, %v2333
        %v2654 = vsub.f32 %v2001, %v2350
        %v2655 = vsub.f32 %v2006, %v2367
        %v2656 = vsub.f32 %v2009, %v2384
        %v2657 = vsub.f32 %v2014, %v2401
        %v2658 = vsub.f32 %v2017, %v2418
        %v2659 = vsub.f32 %v2022, %v2435
        %v2660 = vsub.f32 %v2025, %v2452
        %v2661 = vsub.f32 %v2030, %v2469
        %v2662 = vsub.f32 %v2033, %v2486
        %v2663 = vsub.f32 %v2038, %v2503
        %v2664 = vsub.f32 %v2041, %v2520
        %v2665 = vsub.f32 %v2046, %v2537
        %v2666 = vsub.f32 %v2049, %v2554
        %v2667 = vsub.f32 %v2054, %v2571
        %v2668 = vsub.f32 %v2057, %v2588
        %v2669 = vsub.f32 %v2062, %v2333
        %v2670 = vsub.f32 %v2065, %v2350
        %v2671 = vsub.f32 %v2070, %v2367
        %v2672 = vsub.f32 %v2073, %v2384
        %v2673 = vsub.f32 %v2078, %v2401
        %v2674 = vsub.f32 %v2081, %v2418
        %v2675 = vsub.f32 %v2086, %v2435
        %v2676 = vsub.f32 %v2089, %v2452
        %v2677 = vsub.f32 %v2094, %v2469
        %v2678 = vsub.f32 %v2097, %v2486
        %v2679 = vsub.f32 %v2102, %v2503
        %v2680 = vsub.f32 %v2105, %v2520
        %v2681 = vsub.f32 %v2110, %v2537
        %v2682 = vsub.f32 %v2113, %v2554
        %v2683 = vsub.f32 %v2118, %v2571
        %v2684 = vsub.f32 %v2121, %v2588
        %v2685 = vsub.f32 %v2126, %v2333
        %v2686 = vsub.f32 %v2129, %v2350
        %v2687 = vsub.f32 %v2134, %v2367
        %v2688 = vsub.f32 %v2137, %v2384
        %v2689 = vsub.f32 %v2142, %v2401
        %v2690 = vsub.f32 %v2145, %v2418
        %v2691 = vsub.f32 %v2150, %v2435
        %v2692 = vsub.f32 %v2153, %v2452
        %v2693 = vsub.f32 %v2158, %v2469
        %v2694 = vsub.f32 %v2161, %v2486
        %v2695 = vsub.f32 %v2166, %v2503
        %v2696 = vsub.f32 %v2169, %v2520
        %v2697 = vsub.f32 %v2174, %v2537
        %v2698 = vsub.f32 %v2177, %v2554
        %v2699 = vsub.f32 %v2182, %v2571
        %v2700 = vsub.f32 %v2185, %v2588
        %v2701 = vsub.f32 %v2190, %v2333
        %v2702 = vsub.f32 %v2193, %v2350
        %v2703 = vsub.f32 %v2198, %v2367
        %v2704 = vsub.f32 %v2201, %v2384
        %v2705 = vsub.f32 %v2206, %v2401
        %v2706 = vsub.f32 %v2209, %v2418
        %v2707 = vsub.f32 %v2214, %v2435
        %v2708 = vsub.f32 %v2217, %v2452
        %v2709 = vsub.f32 %v2222, %v2469
        %v2710 = vsub.f32 %v2225, %v2486
        %v2711 = vsub.f32 %v2230, %v2503
        %v2712 = vsub.f32 %v2233, %v2520
        %v2713 = vsub.f32 %v2238, %v2537
        %v2714 = vsub.f32 %v2241, %v2554
        %v2715 = vsub.f32 %v2246, %v2571
        %v2716 = vsub.f32 %v2249, %v2588
        %v2717 = vsub.f32 %v2254, %v2333
        %v2718 = vsub.f32 %v2257, %v2350
        %v2719 = vsub.f32 %v2262, %v2367
        %v2720 = vsub.f32 %v2265, %v2384
        %v2721 = vsub.f32 %v2270, %v2401
        %v2722 = vsub.f32 %v2273, %v2418
        %v2723 = vsub.f32 %v2278, %v2435
        %v2724 = vsub.f32 %v2281, %v2452
        %v2725 = vsub.f32 %v2286, %v2469
        %v2726 = vsub.f32 %v2289, %v2486
        %v2727 = vsub.f32 %v2294, %v2503
        %v2728 = vsub.f32 %v2297, %v2520
        %v2729 = vsub.f32 %v2302, %v2537
        %v2730 = vsub.f32 %v2305, %v2554
        %v2731 = vsub.f32 %v2310, %v2571
        %v2732 = vsub.f32 %v2313, %v2588
        %v2733 = vmul.f32 %v2589, 1.442695
        %v2734 = vpow.pop %v2733
        %v2735 = vmul.f32 %v2590, 1.442695
        %v2736 = vpow.pop %v2735
        %v2737 = vmul.f32 %v2591, 1.442695
        %v2738 = vpow.pop %v2737
        %v2739 = vmul.f32 %v2592, 1.442695
        %v2740 = vpow.pop %v2739
        %v2741 = vmul.f32 %v2593, 1.442695
        %v2742 = vpow.pop %v2741
        %v2743 = vmul.f32 %v2594, 1.442695
        %v2744 = vpow.pop %v2743
        %v2745 = vmul.f32 %v2595, 1.442695
        %v2746 = vpow.pop %v2745
        %v2747 = vmul.f32 %v2596, 1.442695
        %v2748 = vpow.pop %v2747
        %v2749 = vmul.f32 %v2597, 1.442695
        %v2750 = vpow.pop %v2749
        %v2751 = vmul.f32 %v2598, 1.442695
        %v2752 = vpow.pop %v2751
        %v2753 = vmul.f32 %v2599, 1.442695
        %v2754 = vpow.pop %v2753
        %v2755 = vmul.f32 %v2600, 1.442695
        %v2756 = vpow.pop %v2755
        %v2757 = vmul.f32 %v2601, 1.442695
        %v2758 = vpow.pop %v2757
        %v2759 = vmul.f32 %v2602, 1.442695
        %v2760 = vpow.pop %v2759
        %v2761 = vmul.f32 %v2603, 1.442695
        %v2762 = vpow.pop %v2761
        %v2763 = vmul.f32 %v2604, 1.442695
        %v2764 = vpow.pop %v2763
        %v2765 = vmul.f32 %v2605, 1.442695
        %v2766 = vpow.pop %v2765
        %v2767 = vmul.f32 %v2606, 1.442695
        %v2768 = vpow.pop %v2767
        %v2769 = vmul.f32 %v2607, 1.442695
        %v2770 = vpow.pop %v2769
        %v2771 = vmul.f32 %v2608, 1.442695
        %v2772 = vpow.pop %v2771
        %v2773 = vmul.f32 %v2609, 1.442695
        %v2774 = vpow.pop %v2773
        %v2775 = vmul.f32 %v2610, 1.442695
        %v2776 = vpow.pop %v2775
        %v2777 = vmul.f32 %v2611, 1.442695
        %v2778 = vpow.pop %v2777
        %v2779 = vmul.f32 %v2612, 1.442695
        %v2780 = vpow.pop %v2779
        %v2781 = vmul.f32 %v2613, 1.442695
        %v2782 = vpow.pop %v2781
        %v2783 = vmul.f32 %v2614, 1.442695
        %v2784 = vpow.pop %v2783
        %v2785 = vmul.f32 %v2615, 1.442695
        %v2786 = vpow.pop %v2785
        %v2787 = vmul.f32 %v2616, 1.442695
        %v2788 = vpow.pop %v2787
        %v2789 = vmul.f32 %v2617, 1.442695
        %v2790 = vpow.pop %v2789
        %v2791 = vmul.f32 %v2618, 1.442695
        %v2792 = vpow.pop %v2791
        %v2793 = vmul.f32 %v2619, 1.442695
        %v2794 = vpow.pop %v2793
        %v2795 = vmul.f32 %v2620, 1.442695
        %v2796 = vpow.pop %v2795
        %v2797 = vmul.f32 %v2621, 1.442695
        %v2798 = vpow.pop %v2797
        %v2799 = vmul.f32 %v2622, 1.442695
        %v2800 = vpow.pop %v2799
        %v2801 = vmul.f32 %v2623, 1.442695
        %v2802 = vpow.pop %v2801
        %v2803 = vmul.f32 %v2624, 1.442695
        %v2804 = vpow.pop %v2803
        %v2805 = vmul.f32 %v2625, 1.442695
        %v2806 = vpow.pop %v2805
        %v2807 = vmul.f32 %v2626, 1.442695
        %v2808 = vpow.pop %v2807
        %v2809 = vmul.f32 %v2627, 1.442695
        %v2810 = vpow.pop %v2809
        %v2811 = vmul.f32 %v2628, 1.442695
        %v2812 = vpow.pop %v2811
        %v2813 = vmul.f32 %v2629, 1.442695
        %v2814 = vpow.pop %v2813
        %v2815 = vmul.f32 %v2630, 1.442695
        %v2816 = vpow.pop %v2815
        %v2817 = vmul.f32 %v2631, 1.442695
        %v2818 = vpow.pop %v2817
        %v2819 = vmul.f32 %v2632, 1.442695
        %v2820 = vpow.pop %v2819
        %v2821 = vmul.f32 %v2633, 1.442695
        %v2822 = vpow.pop %v2821
        %v2823 = vmul.f32 %v2634, 1.442695
        %v2824 = vpow.pop %v2823
        %v2825 = vmul.f32 %v2635, 1.442695
        %v2826 = vpow.pop %v2825
        %v2827 = vmul.f32 %v2636, 1.442695
        %v2828 = vpow.pop %v2827
        %v2829 = vmul.f32 %v2637, 1.442695
        %v2830 = vpow.pop %v2829
        %v2831 = vmul.f32 %v2638, 1.442695
        %v2832 = vpow.pop %v2831
        %v2833 = vmul.f32 %v2639, 1.442695
        %v2834 = vpow.pop %v2833
        %v2835 = vmul.f32 %v2640, 1.442695
        %v2836 = vpow.pop %v2835
        %v2837 = vmul.f32 %v2641, 1.442695
        %v2838 = vpow.pop %v2837
        %v2839 = vmul.f32 %v2642, 1.442695
        %v2840 = vpow.pop %v2839
        %v2841 = vmul.f32 %v2643, 1.442695
        %v2842 = vpow.pop %v2841
        %v2843 = vmul.f32 %v2644, 1.442695
        %v2844 = vpow.pop %v2843
        %v2845 = vmul.f32 %v2645, 1.442695
        %v2846 = vpow.pop %v2845
        %v2847 = vmul.f32 %v2646, 1.442695
        %v2848 = vpow.pop %v2847
        %v2849 = vmul.f32 %v2647, 1.442695
        %v2850 = vpow.pop %v2849
        %v2851 = vmul.f32 %v2648, 1.442695
        %v2852 = vpow.pop %v2851
        %v2853 = vmul.f32 %v2649, 1.442695
        %v2854 = vpow.pop %v2853
        %v2855 = vmul.f32 %v2650, 1.442695
        %v2856 = vpow.pop %v2855
        %v2857 = vmul.f32 %v2651, 1.442695
        %v2858 = vpow.pop %v2857
        %v2859 = vmul.f32 %v2652, 1.442695
        %v2860 = vpow.pop %v2859
        %v2861 = vmul.f32 %v2653, 1.442695
        %v2862 = vpow.pop %v2861
        %v2863 = vmul.f32 %v2654, 1.442695
        %v2864 = vpow.pop %v2863
        %v2865 = vmul.f32 %v2655, 1.442695
        %v2866 = vpow.pop %v2865
        %v2867 = vmul.f32 %v2656, 1.442695
        %v2868 = vpow.pop %v2867
        %v2869 = vmul.f32 %v2657, 1.442695
        %v2870 = vpow.pop %v2869
        %v2871 = vmul.f32 %v2658, 1.442695
        %v2872 = vpow.pop %v2871
        %v2873 = vmul.f32 %v2659, 1.442695
        %v2874 = vpow.pop %v2873
        %v2875 = vmul.f32 %v2660, 1.442695
        %v2876 = vpow.pop %v2875
        %v2877 = vmul.f32 %v2661, 1.442695
        %v2878 = vpow.pop %v2877
        %v2879 = vmul.f32 %v2662, 1.442695
        %v2880 = vpow.pop %v2879
        %v2881 = vmul.f32 %v2663, 1.442695
        %v2882 = vpow.pop %v2881
        %v2883 = vmul.f32 %v2664, 1.442695
        %v2884 = vpow.pop %v2883
        %v2885 = vmul.f32 %v2665, 1.442695
        %v2886 = vpow.pop %v2885
        %v2887 = vmul.f32 %v2666, 1.442695
        %v2888 = vpow.pop %v2887
        %v2889 = vmul.f32 %v2667, 1.442695
        %v2890 = vpow.pop %v2889
        %v2891 = vmul.f32 %v2668, 1.442695
        %v2892 = vpow.pop %v2891
        %v2893 = vmul.f32 %v2669, 1.442695
        %v2894 = vpow.pop %v2893
        %v2895 = vmul.f32 %v2670, 1.442695
        %v2896 = vpow.pop %v2895
        %v2897 = vmul.f32 %v2671, 1.442695
        %v2898 = vpow.pop %v2897
        %v2899 = vmul.f32 %v2672, 1.442695
        %v2900 = vpow.pop %v2899
        %v2901 = vmul.f32 %v2673, 1.442695
        %v2902 = vpow.pop %v2901
        %v2903 = vmul.f32 %v2674, 1.442695
        %v2904 = vpow.pop %v2903
        %v2905 = vmul.f32 %v2675, 1.442695
        %v2906 = vpow.pop %v2905
        %v2907 = vmul.f32 %v2676, 1.442695
        %v2908 = vpow.pop %v2907
        %v2909 = vmul.f32 %v2677, 1.442695
        %v2910 = vpow.pop %v2909
        %v2911 = vmul.f32 %v2678, 1.442695
        %v2912 = vpow.pop %v2911
        %v2913 = vmul.f32 %v2679, 1.442695
        %v2914 = vpow.pop %v2913
        %v2915 = vmul.f32 %v2680, 1.442695
        %v2916 = vpow.pop %v2915
        %v2917 = vmul.f32 %v2681, 1.442695
        %v2918 = vpow.pop %v2917
        %v2919 = vmul.f32 %v2682, 1.442695
        %v2920 = vpow.pop %v2919
        %v2921 = vmul.f32 %v2683, 1.442695
        %v2922 = vpow.pop %v2921
        %v2923 = vmul.f32 %v2684, 1.442695
        %v2924 = vpow.pop %v2923
        %v2925 = vmul.f32 %v2685, 1.442695
        %v2926 = vpow.pop %v2925
        %v2927 = vmul.f32 %v2686, 1.442695
        %v2928 = vpow.pop %v2927
        %v2929 = vmul.f32 %v2687, 1.442695
        %v2930 = vpow.pop %v2929
        %v2931 = vmul.f32 %v2688, 1.442695
        %v2932 = vpow.pop %v2931
        %v2933 = vmul.f32 %v2689, 1.442695
        %v2934 = vpow.pop %v2933
        %v2935 = vmul.f32 %v2690, 1.442695
        %v2936 = vpow.pop %v2935
        %v2937 = vmul.f32 %v2691, 1.442695
        %v2938 = vpow.pop %v2937
        %v2939 = vmul.f32 %v2692, 1.442695
        %v2940 = vpow.pop %v2939
        %v2941 = vmul.f32 %v2693, 1.442695
        %v2942 = vpow.pop %v2941
        %v2943 = vmul.f32 %v2694, 1.442695
        %v2944 = vpow.pop %v2943
        %v2945 = vmul.f32 %v2695, 1.442695
        %v2946 = vpow.pop %v2945
        %v2947 = vmul.f32 %v2696, 1.442695
        %v2948 = vpow.pop %v2947
        %v2949 = vmul.f32 %v2697, 1.442695
        %v2950 = vpow.pop %v2949
        %v2951 = vmul.f32 %v2698, 1.442695
        %v2952 = vpow.pop %v2951
        %v2953 = vmul.f32 %v2699, 1.442695
        %v2954 = vpow.pop %v2953
        %v2955 = vmul.f32 %v2700, 1.442695
        %v2956 = vpow.pop %v2955
        %v2957 = vmul.f32 %v2701, 1.442695
        %v2958 = vpow.pop %v2957
        %v2959 = vmul.f32 %v2702, 1.442695
        %v2960 = vpow.pop %v2959
        %v2961 = vmul.f32 %v2703, 1.442695
        %v2962 = vpow.pop %v2961
        %v2963 = vmul.f32 %v2704, 1.442695
        %v2964 = vpow.pop %v2963
        %v2965 = vmul.f32 %v2705, 1.442695
        %v2966 = vpow.pop %v2965
        %v2967 = vmul.f32 %v2706, 1.442695
        %v2968 = vpow.pop %v2967
        %v2969 = vmul.f32 %v2707, 1.442695
        %v2970 = vpow.pop %v2969
        %v2971 = vmul.f32 %v2708, 1.442695
        %v2972 = vpow.pop %v2971
        %v2973 = vmul.f32 %v2709, 1.442695
        %v2974 = vpow.pop %v2973
        %v2975 = vmul.f32 %v2710, 1.442695
        %v2976 = vpow.pop %v2975
        %v2977 = vmul.f32 %v2711, 1.442695
        %v2978 = vpow.pop %v2977
        %v2979 = vmul.f32 %v2712, 1.442695
        %v2980 = vpow.pop %v2979
        %v2981 = vmul.f32 %v2713, 1.442695
        %v2982 = vpow.pop %v2981
        %v2983 = vmul.f32 %v2714, 1.442695
        %v2984 = vpow.pop %v2983
        %v2985 = vmul.f32 %v2715, 1.442695
        %v2986 = vpow.pop %v2985
        %v2987 = vmul.f32 %v2716, 1.442695
        %v2988 = vpow.pop %v2987
        %v2989 = vmul.f32 %v2717, 1.442695
        %v2990 = vpow.pop %v2989
        %v2991 = vmul.f32 %v2718, 1.442695
        %v2992 = vpow.pop %v2991
        %v2993 = vmul.f32 %v2719, 1.442695
        %v2994 = vpow.pop %v2993
        %v2995 = vmul.f32 %v2720, 1.442695
        %v2996 = vpow.pop %v2995
        %v2997 = vmul.f32 %v2721, 1.442695
        %v2998 = vpow.pop %v2997
        %v2999 = vmul.f32 %v2722, 1.442695
        %v3000 = vpow.pop %v2999
        %v3001 = vmul.f32 %v2723, 1.442695
        %v3002 = vpow.pop %v3001
        %v3003 = vmul.f32 %v2724, 1.442695
        %v3004 = vpow.pop %v3003
        %v3005 = vmul.f32 %v2725, 1.442695
        %v3006 = vpow.pop %v3005
        %v3007 = vmul.f32 %v2726, 1.442695
        %v3008 = vpow.pop %v3007
        %v3009 = vmul.f32 %v2727, 1.442695
        %v3010 = vpow.pop %v3009
        %v3011 = vmul.f32 %v2728, 1.442695
        %v3012 = vpow.pop %v3011
        %v3013 = vmul.f32 %v2729, 1.442695
        %v3014 = vpow.pop %v3013
        %v3015 = vmul.f32 %v2730, 1.442695
        %v3016 = vpow.pop %v3015
        %v3017 = vmul.f32 %v2731, 1.442695
        %v3018 = vpow.pop %v3017
        %v3019 = vmul.f32 %v2732, 1.442695
        %v3020 = vpow.pop %v3019
        %v3021 = vsel %vm2316, %v2734, 0.0
        %v3022 = vsel %vm2316, %v2766, 0.0
        %v3023 = vadd.f32 %v3021, %v3022
        %v3024 = vsel %vm2316, %v2798, 0.0
        %v3025 = vadd.f32 %v3023, %v3024
        %v3026 = vsel %vm2316, %v2830, 0.0
        %v3027 = vadd.f32 %v3025, %v3026
        %v3028 = vsel %vm2316, %v2862, 0.0
        %v3029 = vadd.f32 %v3027, %v3028
        %v3030 = vsel %vm2316, %v2894, 0.0
        %v3031 = vadd.f32 %v3029, %v3030
        %v3032 = vsel %vm2316, %v2926, 0.0
        %v3033 = vadd.f32 %v3031, %v3032
        %v3034 = vsel %vm2316, %v2958, 0.0
        %v3035 = vadd.f32 %v3033, %v3034
        %v3036 = vsel %vm2316, %v2990, 0.0
        %v3037 = vadd.f32 %v3035, %v3036
        %v3038 = vsel %vm2316, %v2736, 0.0
        %v3039 = vsel %vm2316, %v2768, 0.0
        %v3040 = vadd.f32 %v3038, %v3039
        %v3041 = vsel %vm2316, %v2800, 0.0
        %v3042 = vadd.f32 %v3040, %v3041
        %v3043 = vsel %vm2316, %v2832, 0.0
        %v3044 = vadd.f32 %v3042, %v3043
        %v3045 = vsel %vm2316, %v2864, 0.0
        %v3046 = vadd.f32 %v3044, %v3045
        %v3047 = vsel %vm2316, %v2896, 0.0
        %v3048 = vadd.f32 %v3046, %v3047
        %v3049 = vsel %vm2316, %v2928, 0.0
        %v3050 = vadd.f32 %v3048, %v3049
        %v3051 = vsel %vm2316, %v2960, 0.0
        %v3052 = vadd.f32 %v3050, %v3051
        %v3053 = vsel %vm2316, %v2992, 0.0
        %v3054 = vadd.f32 %v3052, %v3053
        %v3055 = vsel %vm2316, %v2738, 0.0
        %v3056 = vsel %vm2316, %v2770, 0.0
        %v3057 = vadd.f32 %v3055, %v3056
        %v3058 = vsel %vm2316, %v2802, 0.0
        %v3059 = vadd.f32 %v3057, %v3058
        %v3060 = vsel %vm2316, %v2834, 0.0
        %v3061 = vadd.f32 %v3059, %v3060
        %v3062 = vsel %vm2316, %v2866, 0.0
        %v3063 = vadd.f32 %v3061, %v3062
        %v3064 = vsel %vm2316, %v2898, 0.0
        %v3065 = vadd.f32 %v3063, %v3064
        %v3066 = vsel %vm2316, %v2930, 0.0
        %v3067 = vadd.f32 %v3065, %v3066
        %v3068 = vsel %vm2316, %v2962, 0.0
        %v3069 = vadd.f32 %v3067, %v3068
        %v3070 = vsel %vm2316, %v2994, 0.0
        %v3071 = vadd.f32 %v3069, %v3070
        %v3072 = vsel %vm2316, %v2740, 0.0
        %v3073 = vsel %vm2316, %v2772, 0.0
        %v3074 = vadd.f32 %v3072, %v3073
        %v3075 = vsel %vm2316, %v2804, 0.0
        %v3076 = vadd.f32 %v3074, %v3075
        %v3077 = vsel %vm2316, %v2836, 0.0
        %v3078 = vadd.f32 %v3076, %v3077
        %v3079 = vsel %vm2316, %v2868, 0.0
        %v3080 = vadd.f32 %v3078, %v3079
        %v3081 = vsel %vm2316, %v2900, 0.0
        %v3082 = vadd.f32 %v3080, %v3081
        %v3083 = vsel %vm2316, %v2932, 0.0
        %v3084 = vadd.f32 %v3082, %v3083
        %v3085 = vsel %vm2316, %v2964, 0.0
        %v3086 = vadd.f32 %v3084, %v3085
        %v3087 = vsel %vm2316, %v2996, 0.0
        %v3088 = vadd.f32 %v3086, %v3087
        %v3089 = vsel %vm2316, %v2742, 0.0
        %v3090 = vsel %vm2316, %v2774, 0.0
        %v3091 = vadd.f32 %v3089, %v3090
        %v3092 = vsel %vm2316, %v2806, 0.0
        %v3093 = vadd.f32 %v3091, %v3092
        %v3094 = vsel %vm2316, %v2838, 0.0
        %v3095 = vadd.f32 %v3093, %v3094
        %v3096 = vsel %vm2316, %v2870, 0.0
        %v3097 = vadd.f32 %v3095, %v3096
        %v3098 = vsel %vm2316, %v2902, 0.0
        %v3099 = vadd.f32 %v3097, %v3098
        %v3100 = vsel %vm2316, %v2934, 0.0
        %v3101 = vadd.f32 %v3099, %v3100
        %v3102 = vsel %vm2316, %v2966, 0.0
        %v3103 = vadd.f32 %v3101, %v3102
        %v3104 = vsel %vm2316, %v2998, 0.0
        %v3105 = vadd.f32 %v3103, %v3104
        %v3106 = vsel %vm2316, %v2744, 0.0
        %v3107 = vsel %vm2316, %v2776, 0.0
        %v3108 = vadd.f32 %v3106, %v3107
        %v3109 = vsel %vm2316, %v2808, 0.0
        %v3110 = vadd.f32 %v3108, %v3109
        %v3111 = vsel %vm2316, %v2840, 0.0
        %v3112 = vadd.f32 %v3110, %v3111
        %v3113 = vsel %vm2316, %v2872, 0.0
        %v3114 = vadd.f32 %v3112, %v3113
        %v3115 = vsel %vm2316, %v2904, 0.0
        %v3116 = vadd.f32 %v3114, %v3115
        %v3117 = vsel %vm2316, %v2936, 0.0
        %v3118 = vadd.f32 %v3116, %v3117
        %v3119 = vsel %vm2316, %v2968, 0.0
        %v3120 = vadd.f32 %v3118, %v3119
        %v3121 = vsel %vm2316, %v3000, 0.0
        %v3122 = vadd.f32 %v3120, %v3121
        %v3123 = vsel %vm2316, %v2746, 0.0
        %v3124 = vsel %vm2316, %v2778, 0.0
        %v3125 = vadd.f32 %v3123, %v3124
        %v3126 = vsel %vm2316, %v2810, 0.0
        %v3127 = vadd.f32 %v3125, %v3126
        %v3128 = vsel %vm2316, %v2842, 0.0
        %v3129 = vadd.f32 %v3127, %v3128
        %v3130 = vsel %vm2316, %v2874, 0.0
        %v3131 = vadd.f32 %v3129, %v3130
        %v3132 = vsel %vm2316, %v2906, 0.0
        %v3133 = vadd.f32 %v3131, %v3132
        %v3134 = vsel %vm2316, %v2938, 0.0
        %v3135 = vadd.f32 %v3133, %v3134
        %v3136 = vsel %vm2316, %v2970, 0.0
        %v3137 = vadd.f32 %v3135, %v3136
        %v3138 = vsel %vm2316, %v3002, 0.0
        %v3139 = vadd.f32 %v3137, %v3138
        %v3140 = vsel %vm2316, %v2748, 0.0
        %v3141 = vsel %vm2316, %v2780, 0.0
        %v3142 = vadd.f32 %v3140, %v3141
        %v3143 = vsel %vm2316, %v2812, 0.0
        %v3144 = vadd.f32 %v3142, %v3143
        %v3145 = vsel %vm2316, %v2844, 0.0
        %v3146 = vadd.f32 %v3144, %v3145
        %v3147 = vsel %vm2316, %v2876, 0.0
        %v3148 = vadd.f32 %v3146, %v3147
        %v3149 = vsel %vm2316, %v2908, 0.0
        %v3150 = vadd.f32 %v3148, %v3149
        %v3151 = vsel %vm2316, %v2940, 0.0
        %v3152 = vadd.f32 %v3150, %v3151
        %v3153 = vsel %vm2316, %v2972, 0.0
        %v3154 = vadd.f32 %v3152, %v3153
        %v3155 = vsel %vm2316, %v3004, 0.0
        %v3156 = vadd.f32 %v3154, %v3155
        %v3157 = vsel %vm2316, %v2750, 0.0
        %v3158 = vsel %vm2316, %v2782, 0.0
        %v3159 = vadd.f32 %v3157, %v3158
        %v3160 = vsel %vm2316, %v2814, 0.0
        %v3161 = vadd.f32 %v3159, %v3160
        %v3162 = vsel %vm2316, %v2846, 0.0
        %v3163 = vadd.f32 %v3161, %v3162
        %v3164 = vsel %vm2316, %v2878, 0.0
        %v3165 = vadd.f32 %v3163, %v3164
        %v3166 = vsel %vm2316, %v2910, 0.0
        %v3167 = vadd.f32 %v3165, %v3166
        %v3168 = vsel %vm2316, %v2942, 0.0
        %v3169 = vadd.f32 %v3167, %v3168
        %v3170 = vsel %vm2316, %v2974, 0.0
        %v3171 = vadd.f32 %v3169, %v3170
        %v3172 = vsel %vm2316, %v3006, 0.0
        %v3173 = vadd.f32 %v3171, %v3172
        %v3174 = vsel %vm2316, %v2752, 0.0
        %v3175 = vsel %vm2316, %v2784, 0.0
        %v3176 = vadd.f32 %v3174, %v3175
        %v3177 = vsel %vm2316, %v2816, 0.0
        %v3178 = vadd.f32 %v3176, %v3177
        %v3179 = vsel %vm2316, %v2848, 0.0
        %v3180 = vadd.f32 %v3178, %v3179
        %v3181 = vsel %vm2316, %v2880, 0.0
        %v3182 = vadd.f32 %v3180, %v3181
        %v3183 = vsel %vm2316, %v2912, 0.0
        %v3184 = vadd.f32 %v3182, %v3183
        %v3185 = vsel %vm2316, %v2944, 0.0
        %v3186 = vadd.f32 %v3184, %v3185
        %v3187 = vsel %vm2316, %v2976, 0.0
        %v3188 = vadd.f32 %v3186, %v3187
        %v3189 = vsel %vm2316, %v3008, 0.0
        %v3190 = vadd.f32 %v3188, %v3189
        %v3191 = vsel %vm2316, %v2754, 0.0
        %v3192 = vsel %vm2316, %v2786, 0.0
        %v3193 = vadd.f32 %v3191, %v3192
        %v3194 = vsel %vm2316, %v2818, 0.0
        %v3195 = vadd.f32 %v3193, %v3194
        %v3196 = vsel %vm2316, %v2850, 0.0
        %v3197 = vadd.f32 %v3195, %v3196
        %v3198 = vsel %vm2316, %v2882, 0.0
        %v3199 = vadd.f32 %v3197, %v3198
        %v3200 = vsel %vm2316, %v2914, 0.0
        %v3201 = vadd.f32 %v3199, %v3200
        %v3202 = vsel %vm2316, %v2946, 0.0
        %v3203 = vadd.f32 %v3201, %v3202
        %v3204 = vsel %vm2316, %v2978, 0.0
        %v3205 = vadd.f32 %v3203, %v3204
        %v3206 = vsel %vm2316, %v3010, 0.0
        %v3207 = vadd.f32 %v3205, %v3206
        %v3208 = vsel %vm2316, %v2756, 0.0
        %v3209 = vsel %vm2316, %v2788, 0.0
        %v3210 = vadd.f32 %v3208, %v3209
        %v3211 = vsel %vm2316, %v2820, 0.0
        %v3212 = vadd.f32 %v3210, %v3211
        %v3213 = vsel %vm2316, %v2852, 0.0
        %v3214 = vadd.f32 %v3212, %v3213
        %v3215 = vsel %vm2316, %v2884, 0.0
        %v3216 = vadd.f32 %v3214, %v3215
        %v3217 = vsel %vm2316, %v2916, 0.0
        %v3218 = vadd.f32 %v3216, %v3217
        %v3219 = vsel %vm2316, %v2948, 0.0
        %v3220 = vadd.f32 %v3218, %v3219
        %v3221 = vsel %vm2316, %v2980, 0.0
        %v3222 = vadd.f32 %v3220, %v3221
        %v3223 = vsel %vm2316, %v3012, 0.0
        %v3224 = vadd.f32 %v3222, %v3223
        %v3225 = vsel %vm2316, %v2758, 0.0
        %v3226 = vsel %vm2316, %v2790, 0.0
        %v3227 = vadd.f32 %v3225, %v3226
        %v3228 = vsel %vm2316, %v2822, 0.0
        %v3229 = vadd.f32 %v3227, %v3228
        %v3230 = vsel %vm2316, %v2854, 0.0
        %v3231 = vadd.f32 %v3229, %v3230
        %v3232 = vsel %vm2316, %v2886, 0.0
        %v3233 = vadd.f32 %v3231, %v3232
        %v3234 = vsel %vm2316, %v2918, 0.0
        %v3235 = vadd.f32 %v3233, %v3234
        %v3236 = vsel %vm2316, %v2950, 0.0
        %v3237 = vadd.f32 %v3235, %v3236
        %v3238 = vsel %vm2316, %v2982, 0.0
        %v3239 = vadd.f32 %v3237, %v3238
        %v3240 = vsel %vm2316, %v3014, 0.0
        %v3241 = vadd.f32 %v3239, %v3240
        %v3242 = vsel %vm2316, %v2760, 0.0
        %v3243 = vsel %vm2316, %v2792, 0.0
        %v3244 = vadd.f32 %v3242, %v3243
        %v3245 = vsel %vm2316, %v2824, 0.0
        %v3246 = vadd.f32 %v3244, %v3245
        %v3247 = vsel %vm2316, %v2856, 0.0
        %v3248 = vadd.f32 %v3246, %v3247
        %v3249 = vsel %vm2316, %v2888, 0.0
        %v3250 = vadd.f32 %v3248, %v3249
        %v3251 = vsel %vm2316, %v2920, 0.0
        %v3252 = vadd.f32 %v3250, %v3251
        %v3253 = vsel %vm2316, %v2952, 0.0
        %v3254 = vadd.f32 %v3252, %v3253
        %v3255 = vsel %vm2316, %v2984, 0.0
        %v3256 = vadd.f32 %v3254, %v3255
        %v3257 = vsel %vm2316, %v3016, 0.0
        %v3258 = vadd.f32 %v3256, %v3257
        %v3259 = vsel %vm2316, %v2762, 0.0
        %v3260 = vsel %vm2316, %v2794, 0.0
        %v3261 = vadd.f32 %v3259, %v3260
        %v3262 = vsel %vm2316, %v2826, 0.0
        %v3263 = vadd.f32 %v3261, %v3262
        %v3264 = vsel %vm2316, %v2858, 0.0
        %v3265 = vadd.f32 %v3263, %v3264
        %v3266 = vsel %vm2316, %v2890, 0.0
        %v3267 = vadd.f32 %v3265, %v3266
        %v3268 = vsel %vm2316, %v2922, 0.0
        %v3269 = vadd.f32 %v3267, %v3268
        %v3270 = vsel %vm2316, %v2954, 0.0
        %v3271 = vadd.f32 %v3269, %v3270
        %v3272 = vsel %vm2316, %v2986, 0.0
        %v3273 = vadd.f32 %v3271, %v3272
        %v3274 = vsel %vm2316, %v3018, 0.0
        %v3275 = vadd.f32 %v3273, %v3274
        %v3276 = vsel %vm2316, %v2764, 0.0
        %v3277 = vsel %vm2316, %v2796, 0.0
        %v3278 = vadd.f32 %v3276, %v3277
        %v3279 = vsel %vm2316, %v2828, 0.0
        %v3280 = vadd.f32 %v3278, %v3279
        %v3281 = vsel %vm2316, %v2860, 0.0
        %v3282 = vadd.f32 %v3280, %v3281
        %v3283 = vsel %vm2316, %v2892, 0.0
        %v3284 = vadd.f32 %v3282, %v3283
        %v3285 = vsel %vm2316, %v2924, 0.0
        %v3286 = vadd.f32 %v3284, %v3285
        %v3287 = vsel %vm2316, %v2956, 0.0
        %v3288 = vadd.f32 %v3286, %v3287
        %v3289 = vsel %vm2316, %v2988, 0.0
        %v3290 = vadd.f32 %v3288, %v3289
        %v3291 = vsel %vm2316, %v3020, 0.0
        %v3292 = vadd.f32 %v3290, %v3291
        %v3293 = vrcp.pop %v3037
        %v3294 = vrcp.pop %v3054
        %v3295 = vrcp.pop %v3071
        %v3296 = vrcp.pop %v3088
        %v3297 = vrcp.pop %v3105
        %v3298 = vrcp.pop %v3122
        %v3299 = vrcp.pop %v3139
        %v3300 = vrcp.pop %v3156
        %v3301 = vrcp.pop %v3173
        %v3302 = vrcp.pop %v3190
        %v3303 = vrcp.pop %v3207
        %v3304 = vrcp.pop %v3224
        %v3305 = vrcp.pop %v3241
        %v3306 = vrcp.pop %v3258
        %v3307 = vrcp.pop %v3275
        %v3308 = vrcp.pop %v3292
        %v3309 = vmul.f32 %v2734, %v3293
        %v3310 = vmul.f32 %v2736, %v3294
        %v3311 = vmul.f32 %v2738, %v3295
        %v3312 = vmul.f32 %v2740, %v3296
        %v3313 = vmul.f32 %v2742, %v3297
        %v3314 = vmul.f32 %v2744, %v3298
        %v3315 = vmul.f32 %v2746, %v3299
        %v3316 = vmul.f32 %v2748, %v3300
        %v3317 = vmul.f32 %v2750, %v3301
        %v3318 = vmul.f32 %v2752, %v3302
        %v3319 = vmul.f32 %v2754, %v3303
        %v3320 = vmul.f32 %v2756, %v3304
        %v3321 = vmul.f32 %v2758, %v3305
        %v3322 = vmul.f32 %v2760, %v3306
        %v3323 = vmul.f32 %v2762, %v3307
        %v3324 = vmul.f32 %v2764, %v3308
        %v3325 = vmul.f32 %v2766, %v3293
        %v3326 = vmul.f32 %v2768, %v3294
        %v3327 = vmul.f32 %v2770, %v3295
        %v3328 = vmul.f32 %v2772, %v3296
        %v3329 = vmul.f32 %v2774, %v3297
        %v3330 = vmul.f32 %v2776, %v3298
        %v3331 = vmul.f32 %v2778, %v3299
        %v3332 = vmul.f32 %v2780, %v3300
        %v3333 = vmul.f32 %v2782, %v3301
        %v3334 = vmul.f32 %v2784, %v3302
        %v3335 = vmul.f32 %v2786, %v3303
        %v3336 = vmul.f32 %v2788, %v3304
        %v3337 = vmul.f32 %v2790, %v3305
        %v3338 = vmul.f32 %v2792, %v3306
        %v3339 = vmul.f32 %v2794, %v3307
        %v3340 = vmul.f32 %v2796, %v3308
        %v3341 = vmul.f32 %v2798, %v3293
        %v3342 = vmul.f32 %v2800, %v3294
        %v3343 = vmul.f32 %v2802, %v3295
        %v3344 = vmul.f32 %v2804, %v3296
        %v3345 = vmul.f32 %v2806, %v3297
        %v3346 = vmul.f32 %v2808, %v3298
        %v3347 = vmul.f32 %v2810, %v3299
        %v3348 = vmul.f32 %v2812, %v3300
        %v3349 = vmul.f32 %v2814, %v3301
        %v3350 = vmul.f32 %v2816, %v3302
        %v3351 = vmul.f32 %v2818, %v3303
        %v3352 = vmul.f32 %v2820, %v3304
        %v3353 = vmul.f32 %v2822, %v3305
        %v3354 = vmul.f32 %v2824, %v3306
        %v3355 = vmul.f32 %v2826, %v3307
        %v3356 = vmul.f32 %v2828, %v3308
        %v3357 = vmul.f32 %v2830, %v3293
        %v3358 = vmul.f32 %v2832, %v3294
        %v3359 = vmul.f32 %v2834, %v3295
        %v3360 = vmul.f32 %v2836, %v3296
        %v3361 = vmul.f32 %v2838, %v3297
        %v3362 = vmul.f32 %v2840, %v3298
        %v3363 = vmul.f32 %v2842, %v3299
        %v3364 = vmul.f32 %v2844, %v3300
        %v3365 = vmul.f32 %v2846, %v3301
        %v3366 = vmul.f32 %v2848, %v3302
        %v3367 = vmul.f32 %v2850, %v3303
        %v3368 = vmul.f32 %v2852, %v3304
        %v3369 = vmul.f32 %v2854, %v3305
        %v3370 = vmul.f32 %v2856, %v3306
        %v3371 = vmul.f32 %v2858, %v3307
        %v3372 = vmul.f32 %v2860, %v3308
        %v3373 = vmul.f32 %v2862, %v3293
        %v3374 = vmul.f32 %v2864, %v3294
        %v3375 = vmul.f32 %v2866, %v3295
        %v3376 = vmul.f32 %v2868, %v3296
        %v3377 = vmul.f32 %v2870, %v3297
        %v3378 = vmul.f32 %v2872, %v3298
        %v3379 = vmul.f32 %v2874, %v3299
        %v3380 = vmul.f32 %v2876, %v3300
        %v3381 = vmul.f32 %v2878, %v3301
        %v3382 = vmul.f32 %v2880, %v3302
        %v3383 = vmul.f32 %v2882, %v3303
        %v3384 = vmul.f32 %v2884, %v3304
        %v3385 = vmul.f32 %v2886, %v3305
        %v3386 = vmul.f32 %v2888, %v3306
        %v3387 = vmul.f32 %v2890, %v3307
        %v3388 = vmul.f32 %v2892, %v3308
        %v3389 = vmul.f32 %v2894, %v3293
        %v3390 = vmul.f32 %v2896, %v3294
        %v3391 = vmul.f32 %v2898, %v3295
        %v3392 = vmul.f32 %v2900, %v3296
        %v3393 = vmul.f32 %v2902, %v3297
        %v3394 = vmul.f32 %v2904, %v3298
        %v3395 = vmul.f32 %v2906, %v3299
        %v3396 = vmul.f32 %v2908, %v3300
        %v3397 = vmul.f32 %v2910, %v3301
        %v3398 = vmul.f32 %v2912, %v3302
        %v3399 = vmul.f32 %v2914, %v3303
        %v3400 = vmul.f32 %v2916, %v3304
        %v3401 = vmul.f32 %v2918, %v3305
        %v3402 = vmul.f32 %v2920, %v3306
        %v3403 = vmul.f32 %v2922, %v3307
        %v3404 = vmul.f32 %v2924, %v3308
        %v3405 = vmul.f32 %v2926, %v3293
        %v3406 = vmul.f32 %v2928, %v3294
        %v3407 = vmul.f32 %v2930, %v3295
        %v3408 = vmul.f32 %v2932, %v3296
        %v3409 = vmul.f32 %v2934, %v3297
        %v3410 = vmul.f32 %v2936, %v3298
        %v3411 = vmul.f32 %v2938, %v3299
        %v3412 = vmul.f32 %v2940, %v3300
        %v3413 = vmul.f32 %v2942, %v3301
        %v3414 = vmul.f32 %v2944, %v3302
        %v3415 = vmul.f32 %v2946, %v3303
        %v3416 = vmul.f32 %v2948, %v3304
        %v3417 = vmul.f32 %v2950, %v3305
        %v3418 = vmul.f32 %v2952, %v3306
        %v3419 = vmul.f32 %v2954, %v3307
        %v3420 = vmul.f32 %v2956, %v3308
        %v3421 = vmul.f32 %v2958, %v3293
        %v3422 = vmul.f32 %v2960, %v3294
        %v3423 = vmul.f32 %v2962, %v3295
        %v3424 = vmul.f32 %v2964, %v3296
        %v3425 = vmul.f32 %v2966, %v3297
        %v3426 = vmul.f32 %v2968, %v3298
        %v3427 = vmul.f32 %v2970, %v3299
        %v3428 = vmul.f32 %v2972, %v3300
        %v3429 = vmul.f32 %v2974, %v3301
        %v3430 = vmul.f32 %v2976, %v3302
        %v3431 = vmul.f32 %v2978, %v3303
        %v3432 = vmul.f32 %v2980, %v3304
        %v3433 = vmul.f32 %v2982, %v3305
        %v3434 = vmul.f32 %v2984, %v3306
        %v3435 = vmul.f32 %v2986, %v3307
        %v3436 = vmul.f32 %v2988, %v3308
        %v3437 = vmul.f32 %v2990, %v3293
        %v3438 = vmul.f32 %v2992, %v3294
        %v3439 = vmul.f32 %v2994, %v3295
        %v3440 = vmul.f32 %v2996, %v3296
        %v3441 = vmul.f32 %v2998, %v3297
        %v3442 = vmul.f32 %v3000, %v3298
        %v3443 = vmul.f32 %v3002, %v3299
        %v3444 = vmul.f32 %v3004, %v3300
        %v3445 = vmul.f32 %v3006, %v3301
        %v3446 = vmul.f32 %v3008, %v3302
        %v3447 = vmul.f32 %v3010, %v3303
        %v3448 = vmul.f32 %v3012, %v3304
        %v3449 = vmul.f32 %v3014, %v3305
        %v3450 = vmul.f32 %v3016, %v3306
        %v3451 = vmul.f32 %v3018, %v3307
        %v3452 = vmul.f32 %v3020, %v3308
        %v3453 = vpack.c.bf16 %v3310, %v3309
        %v3454 = vpack.c.bf16 %v3312, %v3311
        %v3455 = vpack.c.bf16 %v3314, %v3313
        %v3456 = vpack.c.bf16 %v3316, %v3315
        %v3457 = vpack.c.bf16 %v3318, %v3317
        %v3458 = vpack.c.bf16 %v3320, %v3319
        %v3459 = vpack.c.bf16 %v3322, %v3321
        %v3460 = vpack.c.bf16 %v3324, %v3323
        %v3461 = vpack.c.bf16 %v3326, %v3325
        %v3462 = vpack.c.bf16 %v3328, %v3327
        %v3463 = vpack.c.bf16 %v3330, %v3329
        %v3464 = vpack.c.bf16 %v3332, %v3331
        %v3465 = vpack.c.bf16 %v3334, %v3333
        %v3466 = vpack.c.bf16 %v3336, %v3335
        %v3467 = vpack.c.bf16 %v3338, %v3337
        %v3468 = vpack.c.bf16 %v3340, %v3339
        %v3469 = vpack.c.bf16 %v3342, %v3341
        %v3470 = vpack.c.bf16 %v3344, %v3343
        %v3471 = vpack.c.bf16 %v3346, %v3345
        %v3472 = vpack.c.bf16 %v3348, %v3347
        %v3473 = vpack.c.bf16 %v3350, %v3349
        %v3474 = vpack.c.bf16 %v3352, %v3351
        %v3475 = vpack.c.bf16 %v3354, %v3353
        %v3476 = vpack.c.bf16 %v3356, %v3355
        %v3477 = vpack.c.bf16 %v3358, %v3357
        %v3478 = vpack.c.bf16 %v3360, %v3359
        %v3479 = vpack.c.bf16 %v3362, %v3361
        %v3480 = vpack.c.bf16 %v3364, %v3363
        %v3481 = vpack.c.bf16 %v3366, %v3365
        %v3482 = vpack.c.bf16 %v3368, %v3367
        %v3483 = vpack.c.bf16 %v3370, %v3369
        %v3484 = vpack.c.bf16 %v3372, %v3371
        %v3485 = vpack.c.bf16 %v3374, %v3373
        %v3486 = vpack.c.bf16 %v3376, %v3375
        %v3487 = vpack.c.bf16 %v3378, %v3377
        %v3488 = vpack.c.bf16 %v3380, %v3379
        %v3489 = vpack.c.bf16 %v3382, %v3381
        %v3490 = vpack.c.bf16 %v3384, %v3383
        %v3491 = vpack.c.bf16 %v3386, %v3385
        %v3492 = vpack.c.bf16 %v3388, %v3387
        %v3493 = vpack.c.bf16 %v3390, %v3389
        %v3494 = vpack.c.bf16 %v3392, %v3391
        %v3495 = vpack.c.bf16 %v3394, %v3393
        %v3496 = vpack.c.bf16 %v3396, %v3395
        %v3497 = vpack.c.bf16 %v3398, %v3397
        %v3498 = vpack.c.bf16 %v3400, %v3399
        %v3499 = vpack.c.bf16 %v3402, %v3401
        %v3500 = vpack.c.bf16 %v3404, %v3403
        %v3501 = vpack.c.bf16 %v3406, %v3405
        %v3502 = vpack.c.bf16 %v3408, %v3407
        %v3503 = vpack.c.bf16 %v3410, %v3409
        %v3504 = vpack.c.bf16 %v3412, %v3411
        %v3505 = vpack.c.bf16 %v3414, %v3413
        %v3506 = vpack.c.bf16 %v3416, %v3415
        %v3507 = vpack.c.bf16 %v3418, %v3417
        %v3508 = vpack.c.bf16 %v3420, %v3419
        %v3509 = vpack.c.bf16 %v3422, %v3421
        %v3510 = vpack.c.bf16 %v3424, %v3423
        %v3511 = vpack.c.bf16 %v3426, %v3425
        %v3512 = vpack.c.bf16 %v3428, %v3427
        %v3513 = vpack.c.bf16 %v3430, %v3429
        %v3514 = vpack.c.bf16 %v3432, %v3431
        %v3515 = vpack.c.bf16 %v3434, %v3433
        %v3516 = vpack.c.bf16 %v3436, %v3435
        %v3517 = vpack.c.bf16 %v3438, %v3437
        %v3518 = vpack.c.bf16 %v3440, %v3439
        %v3519 = vpack.c.bf16 %v3442, %v3441
        %v3520 = vpack.c.bf16 %v3444, %v3443
        %v3521 = vpack.c.bf16 %v3446, %v3445
        %v3522 = vpack.c.bf16 %v3448, %v3447
        %v3523 = vpack.c.bf16 %v3450, %v3449
        %v3524 = vpack.c.bf16 %v3452, %v3451
        %v3525 = vld [vmem:[%s2] sm:$0xf]
        %v3526 = vld [vmem:[%s2 + $0x4] sm:$0xf]
        %v3529 = vunpack.c.l.b16 %v3525
        %v3530 = vunpack.c.l.b16 %v3526
        %v3531 = vpack.c.b16 %v3530, %v3529
        %v3534 = vsel %vm2316, %v3453, 0
        %v3537 = vsel %vm2316, %v3454, 0
        %v3540 = vsel %vm2316, %v3455, 0
        %v3543 = vsel %vm2316, %v3456, 0
        %v3546 = vsel %vm2316, %v3457, 0
        %v3549 = vsel %vm2316, %v3458, 0
        %v3552 = vsel %vm2316, %v3459, 0
        %v3555 = vsel %vm2316, %v3460, 0
        %v3558 = vsel %vm2316, %v3461, 0
        %v3561 = vsel %vm2316, %v3462, 0
        %v3564 = vsel %vm2316, %v3463, 0
        %v3567 = vsel %vm2316, %v3464, 0
        %v3570 = vsel %vm2316, %v3465, 0
        %v3573 = vsel %vm2316, %v3466, 0
        %v3576 = vsel %vm2316, %v3467, 0
        %v3579 = vsel %vm2316, %v3468, 0
        %v3582 = vsel %vm2316, %v3469, 0
        %v3585 = vsel %vm2316, %v3470, 0
        %v3588 = vsel %vm2316, %v3471, 0
        %v3591 = vsel %vm2316, %v3472, 0
        %v3594 = vsel %vm2316, %v3473, 0
        %v3597 = vsel %vm2316, %v3474, 0
        %v3600 = vsel %vm2316, %v3475, 0
        %v3603 = vsel %vm2316, %v3476, 0
        %v3606 = vsel %vm2316, %v3477, 0
        %v3609 = vsel %vm2316, %v3478, 0
        %v3612 = vsel %vm2316, %v3479, 0
        %v3615 = vsel %vm2316, %v3480, 0
        %v3618 = vsel %vm2316, %v3481, 0
        %v3621 = vsel %vm2316, %v3482, 0
        %v3624 = vsel %vm2316, %v3483, 0
        %v3627 = vsel %vm2316, %v3484, 0
        %v3630 = vsel %vm2316, %v3485, 0
        %v3633 = vsel %vm2316, %v3486, 0
        %v3636 = vsel %vm2316, %v3487, 0
        %v3639 = vsel %vm2316, %v3488, 0
        %v3642 = vsel %vm2316, %v3489, 0
        %v3645 = vsel %vm2316, %v3490, 0
        %v3648 = vsel %vm2316, %v3491, 0
        %v3651 = vsel %vm2316, %v3492, 0
        %v3654 = vsel %vm2316, %v3493, 0
        %v3657 = vsel %vm2316, %v3494, 0
        %v3660 = vsel %vm2316, %v3495, 0
        %v3663 = vsel %vm2316, %v3496, 0
        %v3666 = vsel %vm2316, %v3497, 0
        %v3669 = vsel %vm2316, %v3498, 0
        %v3672 = vsel %vm2316, %v3499, 0
        %v3675 = vsel %vm2316, %v3500, 0
        %v3678 = vsel %vm2316, %v3501, 0
        %v3681 = vsel %vm2316, %v3502, 0
        %v3684 = vsel %vm2316, %v3503, 0
        %v3687 = vsel %vm2316, %v3504, 0
        %v3690 = vsel %vm2316, %v3505, 0
        %v3693 = vsel %vm2316, %v3506, 0
        %v3696 = vsel %vm2316, %v3507, 0
        %v3699 = vsel %vm2316, %v3508, 0
        %v3702 = vsel %vm2316, %v3509, 0
        %v3705 = vsel %vm2316, %v3510, 0
        %v3708 = vsel %vm2316, %v3511, 0
        %v3711 = vsel %vm2316, %v3512, 0
        %v3714 = vsel %vm2316, %v3513, 0
        %v3717 = vsel %vm2316, %v3514, 0
        %v3720 = vsel %vm2316, %v3515, 0
        %v3723 = vsel %vm2316, %v3516, 0
        %v3726 = vsel %vm2316, %v3517, 0
        %v3729 = vsel %vm2316, %v3518, 0
        %v3732 = vsel %vm2316, %v3519, 0
        %v3735 = vsel %vm2316, %v3520, 0
        %v3738 = vsel %vm2316, %v3521, 0
        %v3741 = vsel %vm2316, %v3522, 0
        %v3744 = vsel %vm2316, %v3523, 0
        %v3747 = vsel %vm2316, %v3524, 0
        %3749 = vmatprep.subr.bf16.mxu0 0
        %3750 = vmatpush1.bf16.msra.mxu0 %v3531
        %3751 = vmatprep.subr.bf16.mxu0 0
        %3752 = vmatpush1.bf16.msra.mxu0 0
        %3753 = vmatprep.subr.bf16.mxu0 0
        %3754 = vmatpush1.bf16.msra.mxu0 0
        %3755 = vmatprep.subr.bf16.mxu0 0
        %3756 = vmatpush1.bf16.msra.mxu0 0
        %3757 = vmatprep.subr.bf16.mxu0 0
        %3758 = vmatpush1.bf16.msra.mxu0 0
        %3759 = vmatprep.subr.bf16.mxu0 0
        %3760 = vmatpush1.bf16.msra.mxu0 0
        %3761 = vmatprep.subr.bf16.mxu0 0
        %3762 = vmatpush1.bf16.msra.mxu0 0
        %3763 = vmatprep.subr.bf16.mxu0 0
        %3764 = vmatpush1.bf16.msra.mxu0 0
        %3765 = vmatprep.subr.bf16.mxu0 0
        %3766 = vmatpush1.bf16.msra.mxu0 0
        %3767 = vmatprep.subr.bf16.mxu0 0
        %3768 = vmatpush1.bf16.msra.mxu0 0
        %3769 = vmatprep.subr.bf16.mxu0 0
        %3770 = vmatpush1.bf16.msra.mxu0 0
        %3771 = vmatprep.subr.bf16.mxu0 0
        %3772 = vmatpush1.bf16.msra.mxu0 0
        %3773 = vmatprep.subr.bf16.mxu0 0
        %3774 = vmatpush1.bf16.msra.mxu0 0
        %3775 = vmatprep.subr.bf16.mxu0 0
        %3776 = vmatpush1.bf16.msra.mxu0 0
        %3777 = vmatprep.subr.bf16.mxu0 0
        %3778 = vmatpush1.bf16.msra.mxu0 0
        %3779 = vmatprep.subr.bf16.mxu0 0
        %3780 = vmatpush1.bf16.msra.mxu0 0
        %3781 = vmatprep.mubr.bf16.mxu0 0
        %3782 = vmatmul.mubr.bf16.gmra.mrb[0].mxu0 %v3534
        %v3783 = vpop.f32.mrb[0].mxu0
        %v3784 = vadd.f32 0.0, %v3783
        %v3785 = vpop.f32.mrb[0].mxu0
        %v3786 = vpop.f32.mrb[0].mxu0
        %v3787 = vadd.f32 0.0, %v3786
        %v3788 = vpop.f32.mrb[0].mxu0
        %3789 = vmatprep.mubr.bf16.mxu0 0
        %3790 = vmatmul.mubr.bf16.gmra.mrb[0].mxu0 %v3537
        %v3791 = vpop.f32.mrb[0].mxu0
        %v3792 = vadd.f32 0.0, %v3791
        %v3793 = vpop.f32.mrb[0].mxu0
        %v3794 = vpop.f32.mrb[0].mxu0
        %v3795 = vadd.f32 0.0, %v3794
        %v3796 = vpop.f32.mrb[0].mxu0
        %3797 = vmatprep.mubr.bf16.mxu0 0
        %3798 = vmatmul.mubr.bf16.gmra.mrb[0].mxu0 %v3540
        %v3799 = vpop.f32.mrb[0].mxu0
        %v3800 = vadd.f32 0.0, %v3799
        %v3801 = vpop.f32.mrb[0].mxu0
        %v3802 = vpop.f32.mrb[0].mxu0
        %v3803 = vadd.f32 0.0, %v3802
        %v3804 = vpop.f32.mrb[0].mxu0
        %3805 = vmatprep.mubr.bf16.mxu0 0
        %3806 = vmatmul.mubr.bf16.gmra.mrb[0].mxu0 %v3543
        %v3807 = vpop.f32.mrb[0].mxu0
        %v3808 = vadd.f32 0.0, %v3807
        %v3809 = vpop.f32.mrb[0].mxu0
        %v3810 = vpop.f32.mrb[0].mxu0
        %v3811 = vadd.f32 0.0, %v3810
        %v3812 = vpop.f32.mrb[0].mxu0
        %3813 = vmatprep.mubr.bf16.mxu0 0
        %3814 = vmatmul.mubr.bf16.gmra.mrb[0].mxu0 %v3546
        %v3815 = vpop.f32.mrb[0].mxu0
        %v3816 = vadd.f32 0.0, %v3815
        %v3817 = vpop.f32.mrb[0].mxu0
        %v3818 = vpop.f32.mrb[0].mxu0
        %v3819 = vadd.f32 0.0, %v3818
        %v3820 = vpop.f32.mrb[0].mxu0
        %3821 = vmatprep.mubr.bf16.mxu0 0
        %3822 = vmatmul.mubr.bf16.gmra.mrb[0].mxu0 %v3549
        %v3823 = vpop.f32.mrb[0].mxu0
        %v3824 = vadd.f32 0.0, %v3823
        %v3825 = vpop.f32.mrb[0].mxu0
        %v3826 = vpop.f32.mrb[0].mxu0
        %v3827 = vadd.f32 0.0, %v3826
        %v3828 = vpop.f32.mrb[0].mxu0
        %3829 = vmatprep.mubr.bf16.mxu0 0
        %3830 = vmatmul.mubr.bf16.gmra.mrb[0].mxu0 %v3552
        %v3831 = vpop.f32.mrb[0].mxu0
        %v3832 = vadd.f32 0.0, %v3831
        %v3833 = vpop.f32.mrb[0].mxu0
        %v3834 = vpop.f32.mrb[0].mxu0
        %v3835 = vadd.f32 0.0, %v3834
        %v3836 = vpop.f32.mrb[0].mxu0
        %3837 = vmatprep.mubr.bf16.mxu0 0
        %3838 = vmatmul.mubr.bf16.gmra.mrb[0].mxu0 %v3555
        %v3839 = vpop.f32.mrb[0].mxu0
        %v3840 = vadd.f32 0.0, %v3839
        %v3841 = vpop.f32.mrb[0].mxu0
        %v3842 = vpop.f32.mrb[0].mxu0
        %v3843 = vadd.f32 0.0, %v3842
        %v3844 = vpop.f32.mrb[0].mxu0
        %3845 = vmatprep.mubr.bf16.mxu0 0
        %3846 = vmatmul.mubr.bf16.gmra.mrb[0].mxu0 %v3558
        %v3847 = vpop.f32.mrb[0].mxu0
        %v3848 = vadd.f32 0.0, %v3847
        %v3849 = vpop.f32.mrb[0].mxu0
        %v3850 = vpop.f32.mrb[0].mxu0
        %v3851 = vadd.f32 0.0, %v3850
        %v3852 = vpop.f32.mrb[0].mxu0
        %3853 = vmatprep.mubr.bf16.mxu0 0
        %3854 = vmatmul.mubr.bf16.gmra.mrb[0].mxu0 %v3561
        %v3855 = vpop.f32.mrb[0].mxu0
        %v3856 = vadd.f32 0.0, %v3855
        %v3857 = vpop.f32.mrb[0].mxu0
        %v3858 = vpop.f32.mrb[0].mxu0
        %v3859 = vadd.f32 0.0, %v3858
        %v3860 = vpop.f32.mrb[0].mxu0
        %3861 = vmatprep.mubr.bf16.mxu0 0
        %3862 = vmatmul.mubr.bf16.gmra.mrb[0].mxu0 %v3564
        %v3863 = vpop.f32.mrb[0].mxu0
        %v3864 = vadd.f32 0.0, %v3863
        %v3865 = vpop.f32.mrb[0].mxu0
        %v3866 = vpop.f32.mrb[0].mxu0
        %v3867 = vadd.f32 0.0, %v3866
        %v3868 = vpop.f32.mrb[0].mxu0
        %3869 = vmatprep.mubr.bf16.mxu0 0
        %3870 = vmatmul.mubr.bf16.gmra.mrb[0].mxu0 %v3567
        %v3871 = vpop.f32.mrb[0].mxu0
        %v3872 = vadd.f32 0.0, %v3871
        %v3873 = vpop.f32.mrb[0].mxu0
        %v3874 = vpop.f32.mrb[0].mxu0
        %v3875 = vadd.f32 0.0, %v3874
        %v3876 = vpop.f32.mrb[0].mxu0
        %3877 = vmatprep.mubr.bf16.mxu0 0
        %3878 = vmatmul.mubr.bf16.gmra.mrb[0].mxu0 %v3570
        %v3879 = vpop.f32.mrb[0].mxu0
        %v3880 = vadd.f32 0.0, %v3879
        %v3881 = vpop.f32.mrb[0].mxu0
        %v3882 = vpop.f32.mrb[0].mxu0
        %v3883 = vadd.f32 0.0, %v3882
        %v3884 = vpop.f32.mrb[0].mxu0
        %3885 = vmatprep.mubr.bf16.mxu0 0
        %3886 = vmatmul.mubr.bf16.gmra.mrb[0].mxu0 %v3573
        %v3887 = vpop.f32.mrb[0].mxu0
        %v3888 = vadd.f32 0.0, %v3887
        %v3889 = vpop.f32.mrb[0].mxu0
        %v3890 = vpop.f32.mrb[0].mxu0
        %v3891 = vadd.f32 0.0, %v3890
        %v3892 = vpop.f32.mrb[0].mxu0
        %3893 = vmatprep.mubr.bf16.mxu0 0
        %3894 = vmatmul.mubr.bf16.gmra.mrb[0].mxu0 %v3576
        %v3895 = vpop.f32.mrb[0].mxu0
        %v3896 = vadd.f32 0.0, %v3895
        %v3897 = vpop.f32.mrb[0].mxu0
        %v3898 = vpop.f32.mrb[0].mxu0
        %v3899 = vadd.f32 0.0, %v3898
        %v3900 = vpop.f32.mrb[0].mxu0
        %3901 = vmatprep.mubr.bf16.mxu0 0
        %3902 = vmatmul.mubr.bf16.gmra.mrb[0].mxu0 %v3579
        %v3903 = vpop.f32.mrb[0].mxu0
        %v3904 = vadd.f32 0.0, %v3903
        %v3905 = vpop.f32.mrb[0].mxu0
        %v3906 = vpop.f32.mrb[0].mxu0
        %v3907 = vadd.f32 0.0, %v3906
        %v3908 = vpop.f32.mrb[0].mxu0
        %3909 = vmatprep.mubr.bf16.mxu0 0
        %3910 = vmatmul.mubr.bf16.gmra.mrb[0].mxu0 %v3582
        %v3911 = vpop.f32.mrb[0].mxu0
        %v3912 = vadd.f32 0.0, %v3911
        %v3913 = vpop.f32.mrb[0].mxu0
        %v3914 = vpop.f32.mrb[0].mxu0
        %v3915 = vadd.f32 0.0, %v3914
        %v3916 = vpop.f32.mrb[0].mxu0
        %3917 = vmatprep.mubr.bf16.mxu0 0
        %3918 = vmatmul.mubr.bf16.gmra.mrb[0].mxu0 %v3585
        %v3919 = vpop.f32.mrb[0].mxu0
        %v3920 = vadd.f32 0.0, %v3919
        %v3921 = vpop.f32.mrb[0].mxu0
        %v3922 = vpop.f32.mrb[0].mxu0
        %v3923 = vadd.f32 0.0, %v3922
        %v3924 = vpop.f32.mrb[0].mxu0
        %3925 = vmatprep.mubr.bf16.mxu0 0
        %3926 = vmatmul.mubr.bf16.gmra.mrb[0].mxu0 %v3588
        %v3927 = vpop.f32.mrb[0].mxu0
        %v3928 = vadd.f32 0.0, %v3927
        %v3929 = vpop.f32.mrb[0].mxu0
        %v3930 = vpop.f32.mrb[0].mxu0
        %v3931 = vadd.f32 0.0, %v3930
        %v3932 = vpop.f32.mrb[0].mxu0
        %3933 = vmatprep.mubr.bf16.mxu0 0
        %3934 = vmatmul.mubr.bf16.gmra.mrb[0].mxu0 %v3591
        %v3935 = vpop.f32.mrb[0].mxu0
        %v3936 = vadd.f32 0.0, %v3935
        %v3937 = vpop.f32.mrb[0].mxu0
        %v3938 = vpop.f32.mrb[0].mxu0
        %v3939 = vadd.f32 0.0, %v3938
        %v3940 = vpop.f32.mrb[0].mxu0
        %3941 = vmatprep.mubr.bf16.mxu0 0
        %3942 = vmatmul.mubr.bf16.gmra.mrb[0].mxu0 %v3594
        %v3943 = vpop.f32.mrb[0].mxu0
        %v3944 = vadd.f32 0.0, %v3943
        %v3945 = vpop.f32.mrb[0].mxu0
        %v3946 = vpop.f32.mrb[0].mxu0
        %v3947 = vadd.f32 0.0, %v3946
        %v3948 = vpop.f32.mrb[0].mxu0
        %3949 = vmatprep.mubr.bf16.mxu0 0
        %3950 = vmatmul.mubr.bf16.gmra.mrb[0].mxu0 %v3597
        %v3951 = vpop.f32.mrb[0].mxu0
        %v3952 = vadd.f32 0.0, %v3951
        %v3953 = vpop.f32.mrb[0].mxu0
        %v3954 = vpop.f32.mrb[0].mxu0
        %v3955 = vadd.f32 0.0, %v3954
        %v3956 = vpop.f32.mrb[0].mxu0
        %3957 = vmatprep.mubr.bf16.mxu0 0
        %3958 = vmatmul.mubr.bf16.gmra.mrb[0].mxu0 %v3600
        %v3959 = vpop.f32.mrb[0].mxu0
        %v3960 = vadd.f32 0.0, %v3959
        %v3961 = vpop.f32.mrb[0].mxu0
        %v3962 = vpop.f32.mrb[0].mxu0
        %v3963 = vadd.f32 0.0, %v3962
        %v3964 = vpop.f32.mrb[0].mxu0
        %3965 = vmatprep.mubr.bf16.mxu0 0
        %3966 = vmatmul.mubr.bf16.gmra.mrb[0].mxu0 %v3603
        %v3967 = vpop.f32.mrb[0].mxu0
        %v3968 = vadd.f32 0.0, %v3967
        %v3969 = vpop.f32.mrb[0].mxu0
        %v3970 = vpop.f32.mrb[0].mxu0
        %v3971 = vadd.f32 0.0, %v3970
        %v3972 = vpop.f32.mrb[0].mxu0
        %3973 = vmatprep.mubr.bf16.mxu0 0
        %3974 = vmatmul.mubr.bf16.gmra.mrb[0].mxu0 %v3606
        %v3975 = vpop.f32.mrb[0].mxu0
        %v3976 = vadd.f32 0.0, %v3975
        %v3977 = vpop.f32.mrb[0].mxu0
        %v3978 = vpop.f32.mrb[0].mxu0
        %v3979 = vadd.f32 0.0, %v3978
        %v3980 = vpop.f32.mrb[0].mxu0
        %3981 = vmatprep.mubr.bf16.mxu0 0
        %3982 = vmatmul.mubr.bf16.gmra.mrb[0].mxu0 %v3609
        %v3983 = vpop.f32.mrb[0].mxu0
        %v3984 = vadd.f32 0.0, %v3983
        %v3985 = vpop.f32.mrb[0].mxu0
        %v3986 = vpop.f32.mrb[0].mxu0
        %v3987 = vadd.f32 0.0, %v3986
        %v3988 = vpop.f32.mrb[0].mxu0
        %3989 = vmatprep.mubr.bf16.mxu0 0
        %3990 = vmatmul.mubr.bf16.gmra.mrb[0].mxu0 %v3612
        %v3991 = vpop.f32.mrb[0].mxu0
        %v3992 = vadd.f32 0.0, %v3991
        %v3993 = vpop.f32.mrb[0].mxu0
        %v3994 = vpop.f32.mrb[0].mxu0
        %v3995 = vadd.f32 0.0, %v3994
        %v3996 = vpop.f32.mrb[0].mxu0
        %3997 = vmatprep.mubr.bf16.mxu0 0
        %3998 = vmatmul.mubr.bf16.gmra.mrb[0].mxu0 %v3615
        %v3999 = vpop.f32.mrb[0].mxu0
        %v4000 = vadd.f32 0.0, %v3999
        %v4001 = vpop.f32.mrb[0].mxu0
        %v4002 = vpop.f32.mrb[0].mxu0
        %v4003 = vadd.f32 0.0, %v4002
        %v4004 = vpop.f32.mrb[0].mxu0
        %4005 = vmatprep.mubr.bf16.mxu0 0
        %4006 = vmatmul.mubr.bf16.gmra.mrb[0].mxu0 %v3618
        %v4007 = vpop.f32.mrb[0].mxu0
        %v4008 = vadd.f32 0.0, %v4007
        %v4009 = vpop.f32.mrb[0].mxu0
        %v4010 = vpop.f32.mrb[0].mxu0
        %v4011 = vadd.f32 0.0, %v4010
        %v4012 = vpop.f32.mrb[0].mxu0
        %4013 = vmatprep.mubr.bf16.mxu0 0
        %4014 = vmatmul.mubr.bf16.gmra.mrb[0].mxu0 %v3621
        %v4015 = vpop.f32.mrb[0].mxu0
        %v4016 = vadd.f32 0.0, %v4015
        %v4017 = vpop.f32.mrb[0].mxu0
        %v4018 = vpop.f32.mrb[0].mxu0
        %v4019 = vadd.f32 0.0, %v4018
        %v4020 = vpop.f32.mrb[0].mxu0
        %4021 = vmatprep.mubr.bf16.mxu0 0
        %4022 = vmatmul.mubr.bf16.gmra.mrb[0].mxu0 %v3624
        %v4023 = vpop.f32.mrb[0].mxu0
        %v4024 = vadd.f32 0.0, %v4023
        %v4025 = vpop.f32.mrb[0].mxu0
        %v4026 = vpop.f32.mrb[0].mxu0
        %v4027 = vadd.f32 0.0, %v4026
        %v4028 = vpop.f32.mrb[0].mxu0
        %4029 = vmatprep.mubr.bf16.mxu0 0
        %4030 = vmatmul.mubr.bf16.gmra.mrb[0].mxu0 %v3627
        %v4031 = vpop.f32.mrb[0].mxu0
        %v4032 = vadd.f32 0.0, %v4031
        %v4033 = vpop.f32.mrb[0].mxu0
        %v4034 = vpop.f32.mrb[0].mxu0
        %v4035 = vadd.f32 0.0, %v4034
        %v4036 = vpop.f32.mrb[0].mxu0
        %4037 = vmatprep.mubr.bf16.mxu0 0
        %4038 = vmatmul.mubr.bf16.gmra.mrb[0].mxu0 %v3630
        %v4039 = vpop.f32.mrb[0].mxu0
        %v4040 = vadd.f32 0.0, %v4039
        %v4041 = vpop.f32.mrb[0].mxu0
        %v4042 = vpop.f32.mrb[0].mxu0
        %v4043 = vadd.f32 0.0, %v4042
        %v4044 = vpop.f32.mrb[0].mxu0
        %4045 = vmatprep.mubr.bf16.mxu0 0
        %4046 = vmatmul.mubr.bf16.gmra.mrb[0].mxu0 %v3633
        %v4047 = vpop.f32.mrb[0].mxu0
        %v4048 = vadd.f32 0.0, %v4047
        %v4049 = vpop.f32.mrb[0].mxu0
        %v4050 = vpop.f32.mrb[0].mxu0
        %v4051 = vadd.f32 0.0, %v4050
        %v4052 = vpop.f32.mrb[0].mxu0
        %4053 = vmatprep.mubr.bf16.mxu0 0
        %4054 = vmatmul.mubr.bf16.gmra.mrb[0].mxu0 %v3636
        %v4055 = vpop.f32.mrb[0].mxu0
        %v4056 = vadd.f32 0.0, %v4055
        %v4057 = vpop.f32.mrb[0].mxu0
        %v4058 = vpop.f32.mrb[0].mxu0
        %v4059 = vadd.f32 0.0, %v4058
        %v4060 = vpop.f32.mrb[0].mxu0
        %4061 = vmatprep.mubr.bf16.mxu0 0
        %4062 = vmatmul.mubr.bf16.gmra.mrb[0].mxu0 %v3639
        %v4063 = vpop.f32.mrb[0].mxu0
        %v4064 = vadd.f32 0.0, %v4063
        %v4065 = vpop.f32.mrb[0].mxu0
        %v4066 = vpop.f32.mrb[0].mxu0
        %v4067 = vadd.f32 0.0, %v4066
        %v4068 = vpop.f32.mrb[0].mxu0
        %4069 = vmatprep.mubr.bf16.mxu0 0
        %4070 = vmatmul.mubr.bf16.gmra.mrb[0].mxu0 %v3642
        %v4071 = vpop.f32.mrb[0].mxu0
        %v4072 = vadd.f32 0.0, %v4071
        %v4073 = vpop.f32.mrb[0].mxu0
        %v4074 = vpop.f32.mrb[0].mxu0
        %v4075 = vadd.f32 0.0, %v4074
        %v4076 = vpop.f32.mrb[0].mxu0
        %4077 = vmatprep.mubr.bf16.mxu0 0
        %4078 = vmatmul.mubr.bf16.gmra.mrb[0].mxu0 %v3645
        %v4079 = vpop.f32.mrb[0].mxu0
        %v4080 = vadd.f32 0.0, %v4079
        %v4081 = vpop.f32.mrb[0].mxu0
        %v4082 = vpop.f32.mrb[0].mxu0
        %v4083 = vadd.f32 0.0, %v4082
        %v4084 = vpop.f32.mrb[0].mxu0
        %4085 = vmatprep.mubr.bf16.mxu0 0
        %4086 = vmatmul.mubr.bf16.gmra.mrb[0].mxu0 %v3648
        %v4087 = vpop.f32.mrb[0].mxu0
        %v4088 = vadd.f32 0.0, %v4087
        %v4089 = vpop.f32.mrb[0].mxu0
        %v4090 = vpop.f32.mrb[0].mxu0
        %v4091 = vadd.f32 0.0, %v4090
        %v4092 = vpop.f32.mrb[0].mxu0
        %4093 = vmatprep.mubr.bf16.mxu0 0
        %4094 = vmatmul.mubr.bf16.gmra.mrb[0].mxu0 %v3651
        %v4095 = vpop.f32.mrb[0].mxu0
        %v4096 = vadd.f32 0.0, %v4095
        %v4097 = vpop.f32.mrb[0].mxu0
        %v4098 = vpop.f32.mrb[0].mxu0
        %v4099 = vadd.f32 0.0, %v4098
        %v4100 = vpop.f32.mrb[0].mxu0
        %4101 = vmatprep.mubr.bf16.mxu0 0
        %4102 = vmatmul.mubr.bf16.gmra.mrb[0].mxu0 %v3654
        %v4103 = vpop.f32.mrb[0].mxu0
        %v4104 = vadd.f32 0.0, %v4103
        %v4105 = vpop.f32.mrb[0].mxu0
        %v4106 = vpop.f32.mrb[0].mxu0
        %v4107 = vadd.f32 0.0, %v4106
        %v4108 = vpop.f32.mrb[0].mxu0
        %4109 = vmatprep.mubr.bf16.mxu0 0
        %4110 = vmatmul.mubr.bf16.gmra.mrb[0].mxu0 %v3657
        %v4111 = vpop.f32.mrb[0].mxu0
        %v4112 = vadd.f32 0.0, %v4111
        %v4113 = vpop.f32.mrb[0].mxu0
        %v4114 = vpop.f32.mrb[0].mxu0
        %v4115 = vadd.f32 0.0, %v4114
        %v4116 = vpop.f32.mrb[0].mxu0
        %4117 = vmatprep.mubr.bf16.mxu0 0
        %4118 = vmatmul.mubr.bf16.gmra.mrb[0].mxu0 %v3660
        %v4119 = vpop.f32.mrb[0].mxu0
        %v4120 = vadd.f32 0.0, %v4119
        %v4121 = vpop.f32.mrb[0].mxu0
        %v4122 = vpop.f32.mrb[0].mxu0
        %v4123 = vadd.f32 0.0, %v4122
        %v4124 = vpop.f32.mrb[0].mxu0
        %4125 = vmatprep.mubr.bf16.mxu0 0
        %4126 = vmatmul.mubr.bf16.gmra.mrb[0].mxu0 %v3663
        %v4127 = vpop.f32.mrb[0].mxu0
        %v4128 = vadd.f32 0.0, %v4127
        %v4129 = vpop.f32.mrb[0].mxu0
        %v4130 = vpop.f32.mrb[0].mxu0
        %v4131 = vadd.f32 0.0, %v4130
        %v4132 = vpop.f32.mrb[0].mxu0
        %4133 = vmatprep.mubr.bf16.mxu0 0
        %4134 = vmatmul.mubr.bf16.gmra.mrb[0].mxu0 %v3666
        %v4135 = vpop.f32.mrb[0].mxu0
        %v4136 = vadd.f32 0.0, %v4135
        %v4137 = vpop.f32.mrb[0].mxu0
        %v4138 = vpop.f32.mrb[0].mxu0
        %v4139 = vadd.f32 0.0, %v4138
        %v4140 = vpop.f32.mrb[0].mxu0
        %4141 = vmatprep.mubr.bf16.mxu0 0
        %4142 = vmatmul.mubr.bf16.gmra.mrb[0].mxu0 %v3669
        %v4143 = vpop.f32.mrb[0].mxu0
        %v4144 = vadd.f32 0.0, %v4143
        %v4145 = vpop.f32.mrb[0].mxu0
        %v4146 = vpop.f32.mrb[0].mxu0
        %v4147 = vadd.f32 0.0, %v4146
        %v4148 = vpop.f32.mrb[0].mxu0
        %4149 = vmatprep.mubr.bf16.mxu0 0
        %4150 = vmatmul.mubr.bf16.gmra.mrb[0].mxu0 %v3672
        %v4151 = vpop.f32.mrb[0].mxu0
        %v4152 = vadd.f32 0.0, %v4151
        %v4153 = vpop.f32.mrb[0].mxu0
        %v4154 = vpop.f32.mrb[0].mxu0
        %v4155 = vadd.f32 0.0, %v4154
        %v4156 = vpop.f32.mrb[0].mxu0
        %4157 = vmatprep.mubr.bf16.mxu0 0
        %4158 = vmatmul.mubr.bf16.gmra.mrb[0].mxu0 %v3675
        %v4159 = vpop.f32.mrb[0].mxu0
        %v4160 = vadd.f32 0.0, %v4159
        %v4161 = vpop.f32.mrb[0].mxu0
        %v4162 = vpop.f32.mrb[0].mxu0
        %v4163 = vadd.f32 0.0, %v4162
        %v4164 = vpop.f32.mrb[0].mxu0
        %4165 = vmatprep.mubr.bf16.mxu0 0
        %4166 = vmatmul.mubr.bf16.gmra.mrb[0].mxu0 %v3678
        %v4167 = vpop.f32.mrb[0].mxu0
        %v4168 = vadd.f32 0.0, %v4167
        %v4169 = vpop.f32.mrb[0].mxu0
        %v4170 = vpop.f32.mrb[0].mxu0
        %v4171 = vadd.f32 0.0, %v4170
        %v4172 = vpop.f32.mrb[0].mxu0
        %4173 = vmatprep.mubr.bf16.mxu0 0
        %4174 = vmatmul.mubr.bf16.gmra.mrb[0].mxu0 %v3681
        %v4175 = vpop.f32.mrb[0].mxu0
        %v4176 = vadd.f32 0.0, %v4175
        %v4177 = vpop.f32.mrb[0].mxu0
        %v4178 = vpop.f32.mrb[0].mxu0
        %v4179 = vadd.f32 0.0, %v4178
        %v4180 = vpop.f32.mrb[0].mxu0
        %4181 = vmatprep.mubr.bf16.mxu0 0
        %4182 = vmatmul.mubr.bf16.gmra.mrb[0].mxu0 %v3684
        %v4183 = vpop.f32.mrb[0].mxu0
        %v4184 = vadd.f32 0.0, %v4183
        %v4185 = vpop.f32.mrb[0].mxu0
        %v4186 = vpop.f32.mrb[0].mxu0
        %v4187 = vadd.f32 0.0, %v4186
        %v4188 = vpop.f32.mrb[0].mxu0
        %4189 = vmatprep.mubr.bf16.mxu0 0
        %4190 = vmatmul.mubr.bf16.gmra.mrb[0].mxu0 %v3687
        %v4191 = vpop.f32.mrb[0].mxu0
        %v4192 = vadd.f32 0.0, %v4191
        %v4193 = vpop.f32.mrb[0].mxu0
        %v4194 = vpop.f32.mrb[0].mxu0
        %v4195 = vadd.f32 0.0, %v4194
        %v4196 = vpop.f32.mrb[0].mxu0
        %4197 = vmatprep.mubr.bf16.mxu0 0
        %4198 = vmatmul.mubr.bf16.gmra.mrb[0].mxu0 %v3690
        %v4199 = vpop.f32.mrb[0].mxu0
        %v4200 = vadd.f32 0.0, %v4199
        %v4201 = vpop.f32.mrb[0].mxu0
        %v4202 = vpop.f32.mrb[0].mxu0
        %v4203 = vadd.f32 0.0, %v4202
        %v4204 = vpop.f32.mrb[0].mxu0
        %4205 = vmatprep.mubr.bf16.mxu0 0
        %4206 = vmatmul.mubr.bf16.gmra.mrb[0].mxu0 %v3693
        %v4207 = vpop.f32.mrb[0].mxu0
        %v4208 = vadd.f32 0.0, %v4207
        %v4209 = vpop.f32.mrb[0].mxu0
        %v4210 = vpop.f32.mrb[0].mxu0
        %v4211 = vadd.f32 0.0, %v4210
        %v4212 = vpop.f32.mrb[0].mxu0
        %4213 = vmatprep.mubr.bf16.mxu0 0
        %4214 = vmatmul.mubr.bf16.gmra.mrb[0].mxu0 %v3696
        %v4215 = vpop.f32.mrb[0].mxu0
        %v4216 = vadd.f32 0.0, %v4215
        %v4217 = vpop.f32.mrb[0].mxu0
        %v4218 = vpop.f32.mrb[0].mxu0
        %v4219 = vadd.f32 0.0, %v4218
        %v4220 = vpop.f32.mrb[0].mxu0
        %4221 = vmatprep.mubr.bf16.mxu0 0
        %4222 = vmatmul.mubr.bf16.gmra.mrb[0].mxu0 %v3699
        %v4223 = vpop.f32.mrb[0].mxu0
        %v4224 = vadd.f32 0.0, %v4223
        %v4225 = vpop.f32.mrb[0].mxu0
        %v4226 = vpop.f32.mrb[0].mxu0
        %v4227 = vadd.f32 0.0, %v4226
        %v4228 = vpop.f32.mrb[0].mxu0
        %4229 = vmatprep.mubr.bf16.mxu0 0
        %4230 = vmatmul.mubr.bf16.gmra.mrb[0].mxu0 %v3702
        %v4231 = vpop.f32.mrb[0].mxu0
        %v4232 = vadd.f32 0.0, %v4231
        %v4233 = vpop.f32.mrb[0].mxu0
        %v4234 = vpop.f32.mrb[0].mxu0
        %v4235 = vadd.f32 0.0, %v4234
        %v4236 = vpop.f32.mrb[0].mxu0
        %4237 = vmatprep.mubr.bf16.mxu0 0
        %4238 = vmatmul.mubr.bf16.gmra.mrb[0].mxu0 %v3705
        %v4239 = vpop.f32.mrb[0].mxu0
        %v4240 = vadd.f32 0.0, %v4239
        %v4241 = vpop.f32.mrb[0].mxu0
        %v4242 = vpop.f32.mrb[0].mxu0
        %v4243 = vadd.f32 0.0, %v4242
        %v4244 = vpop.f32.mrb[0].mxu0
        %4245 = vmatprep.mubr.bf16.mxu0 0
        %4246 = vmatmul.mubr.bf16.gmra.mrb[0].mxu0 %v3708
        %v4247 = vpop.f32.mrb[0].mxu0
        %v4248 = vadd.f32 0.0, %v4247
        %v4249 = vpop.f32.mrb[0].mxu0
        %v4250 = vpop.f32.mrb[0].mxu0
        %v4251 = vadd.f32 0.0, %v4250
        %v4252 = vpop.f32.mrb[0].mxu0
        %4253 = vmatprep.mubr.bf16.mxu0 0
        %4254 = vmatmul.mubr.bf16.gmra.mrb[0].mxu0 %v3711
        %v4255 = vpop.f32.mrb[0].mxu0
        %v4256 = vadd.f32 0.0, %v4255
        %v4257 = vpop.f32.mrb[0].mxu0
        %v4258 = vpop.f32.mrb[0].mxu0
        %v4259 = vadd.f32 0.0, %v4258
        %v4260 = vpop.f32.mrb[0].mxu0
        %4261 = vmatprep.mubr.bf16.mxu0 0
        %4262 = vmatmul.mubr.bf16.gmra.mrb[0].mxu0 %v3714
        %v4263 = vpop.f32.mrb[0].mxu0
        %v4264 = vadd.f32 0.0, %v4263
        %v4265 = vpop.f32.mrb[0].mxu0
        %v4266 = vpop.f32.mrb[0].mxu0
        %v4267 = vadd.f32 0.0, %v4266
        %v4268 = vpop.f32.mrb[0].mxu0
        %4269 = vmatprep.mubr.bf16.mxu0 0
        %4270 = vmatmul.mubr.bf16.gmra.mrb[0].mxu0 %v3717
        %v4271 = vpop.f32.mrb[0].mxu0
        %v4272 = vadd.f32 0.0, %v4271
        %v4273 = vpop.f32.mrb[0].mxu0
        %v4274 = vpop.f32.mrb[0].mxu0
        %v4275 = vadd.f32 0.0, %v4274
        %v4276 = vpop.f32.mrb[0].mxu0
        %4277 = vmatprep.mubr.bf16.mxu0 0
        %4278 = vmatmul.mubr.bf16.gmra.mrb[0].mxu0 %v3720
        %v4279 = vpop.f32.mrb[0].mxu0
        %v4280 = vadd.f32 0.0, %v4279
        %v4281 = vpop.f32.mrb[0].mxu0
        %v4282 = vpop.f32.mrb[0].mxu0
        %v4283 = vadd.f32 0.0, %v4282
        %v4284 = vpop.f32.mrb[0].mxu0
        %4285 = vmatprep.mubr.bf16.mxu0 0
        %4286 = vmatmul.mubr.bf16.gmra.mrb[0].mxu0 %v3723
        %v4287 = vpop.f32.mrb[0].mxu0
        %v4288 = vadd.f32 0.0, %v4287
        %v4289 = vpop.f32.mrb[0].mxu0
        %v4290 = vpop.f32.mrb[0].mxu0
        %v4291 = vadd.f32 0.0, %v4290
        %v4292 = vpop.f32.mrb[0].mxu0
        %4293 = vmatprep.mubr.bf16.mxu0 0
        %4294 = vmatmul.mubr.bf16.gmra.mrb[0].mxu0 %v3726
        %v4295 = vpop.f32.mrb[0].mxu0
        %v4296 = vadd.f32 0.0, %v4295
        %v4297 = vpop.f32.mrb[0].mxu0
        %v4298 = vpop.f32.mrb[0].mxu0
        %v4299 = vadd.f32 0.0, %v4298
        %v4300 = vpop.f32.mrb[0].mxu0
        %4301 = vmatprep.mubr.bf16.mxu0 0
        %4302 = vmatmul.mubr.bf16.gmra.mrb[0].mxu0 %v3729
        %v4303 = vpop.f32.mrb[0].mxu0
        %v4304 = vadd.f32 0.0, %v4303
        %v4305 = vpop.f32.mrb[0].mxu0
        %v4306 = vpop.f32.mrb[0].mxu0
        %v4307 = vadd.f32 0.0, %v4306
        %v4308 = vpop.f32.mrb[0].mxu0
        %4309 = vmatprep.mubr.bf16.mxu0 0
        %4310 = vmatmul.mubr.bf16.gmra.mrb[0].mxu0 %v3732
        %v4311 = vpop.f32.mrb[0].mxu0
        %v4312 = vadd.f32 0.0, %v4311
        %v4313 = vpop.f32.mrb[0].mxu0
        %v4314 = vpop.f32.mrb[0].mxu0
        %v4315 = vadd.f32 0.0, %v4314
        %v4316 = vpop.f32.mrb[0].mxu0
        %4317 = vmatprep.mubr.bf16.mxu0 0
        %4318 = vmatmul.mubr.bf16.gmra.mrb[0].mxu0 %v3735
        %v4319 = vpop.f32.mrb[0].mxu0
        %v4320 = vadd.f32 0.0, %v4319
        %v4321 = vpop.f32.mrb[0].mxu0
        %v4322 = vpop.f32.mrb[0].mxu0
        %v4323 = vadd.f32 0.0, %v4322
        %v4324 = vpop.f32.mrb[0].mxu0
        %4325 = vmatprep.mubr.bf16.mxu0 0
        %4326 = vmatmul.mubr.bf16.gmra.mrb[0].mxu0 %v3738
        %v4327 = vpop.f32.mrb[0].mxu0
        %v4328 = vadd.f32 0.0, %v4327
        %v4329 = vpop.f32.mrb[0].mxu0
        %v4330 = vpop.f32.mrb[0].mxu0
        %v4331 = vadd.f32 0.0, %v4330
        %v4332 = vpop.f32.mrb[0].mxu0
        %4333 = vmatprep.mubr.bf16.mxu0 0
        %4334 = vmatmul.mubr.bf16.gmra.mrb[0].mxu0 %v3741
        %v4335 = vpop.f32.mrb[0].mxu0
        %v4336 = vadd.f32 0.0, %v4335
        %v4337 = vpop.f32.mrb[0].mxu0
        %v4338 = vpop.f32.mrb[0].mxu0
        %v4339 = vadd.f32 0.0, %v4338
        %v4340 = vpop.f32.mrb[0].mxu0
        %4341 = vmatprep.mubr.bf16.mxu0 0
        %4342 = vmatmul.mubr.bf16.gmra.mrb[0].mxu0 %v3744
        %v4343 = vpop.f32.mrb[0].mxu0
        %v4344 = vadd.f32 0.0, %v4343
        %v4345 = vpop.f32.mrb[0].mxu0
        %v4346 = vpop.f32.mrb[0].mxu0
        %v4347 = vadd.f32 0.0, %v4346
        %v4348 = vpop.f32.mrb[0].mxu0
        %4349 = vmatprep.mubr.bf16.mxu0 0
        %4350 = vmatmul.mubr.bf16.gmra.mrb[0].mxu0 %v3747
        %v4351 = vpop.f32.mrb[0].mxu0
        %v4352 = vadd.f32 0.0, %v4351
        %v4353 = vpop.f32.mrb[0].mxu0
        %v4354 = vpop.f32.mrb[0].mxu0
        %v4355 = vadd.f32 0.0, %v4354
        %v4356 = vpop.f32.mrb[0].mxu0
        %4357 = vdwg.mxu0
        %4502 = vrot.lane.b32.xlu0 %v1742, 112
        %v4503 = vpop.permute.xlu0 %4502
        %4504 = vrot.lane.b32.xlu0 %v1745, 112
        %v4505 = vpop.permute.xlu0 %4504
        %4506 = vrot.lane.b32.xlu0 %v1750, 112
        %v4507 = vpop.permute.xlu0 %4506
        %4508 = vrot.lane.b32.xlu0 %v1753, 112
        %v4509 = vpop.permute.xlu0 %4508
        %4510 = vrot.lane.b32.xlu0 %v1758, 112
        %v4511 = vpop.permute.xlu0 %4510
        %4512 = vrot.lane.b32.xlu0 %v1761, 112
        %v4513 = vpop.permute.xlu0 %4512
        %4514 = vrot.lane.b32.xlu0 %v1766, 112
        %v4515 = vpop.permute.xlu0 %4514
        %4516 = vrot.lane.b32.xlu0 %v1769, 112
        %v4517 = vpop.permute.xlu0 %4516
        %4518 = vrot.lane.b32.xlu0 %v1774, 112
        %v4519 = vpop.permute.xlu0 %4518
        %4520 = vrot.lane.b32.xlu0 %v1777, 112
        %v4521 = vpop.permute.xlu0 %4520
        %4522 = vrot.lane.b32.xlu0 %v1782, 112
        %v4523 = vpop.permute.xlu0 %4522
        %4524 = vrot.lane.b32.xlu0 %v1785, 112
        %v4525 = vpop.permute.xlu0 %4524
        %4526 = vrot.lane.b32.xlu0 %v1790, 112
        %v4527 = vpop.permute.xlu0 %4526
        %4528 = vrot.lane.b32.xlu0 %v1793, 112
        %v4529 = vpop.permute.xlu0 %4528
        %4530 = vrot.lane.b32.xlu0 %v1798, 112
        %v4531 = vpop.permute.xlu0 %4530
        %4532 = vrot.lane.b32.xlu0 %v1801, 112
        %v4533 = vpop.permute.xlu0 %4532
        %4534 = vrot.lane.b32.xlu0 %v1806, 112
        %v4535 = vpop.permute.xlu0 %4534
        %4536 = vrot.lane.b32.xlu0 %v1809, 112
        %v4537 = vpop.permute.xlu0 %4536
        %4538 = vrot.lane.b32.xlu0 %v1814, 112
        %v4539 = vpop.permute.xlu0 %4538
        %4540 = vrot.lane.b32.xlu0 %v1817, 112
        %v4541 = vpop.permute.xlu0 %4540
        %4542 = vrot.lane.b32.xlu0 %v1822, 112
        %v4543 = vpop.permute.xlu0 %4542
        %4544 = vrot.lane.b32.xlu0 %v1825, 112
        %v4545 = vpop.permute.xlu0 %4544
        %4546 = vrot.lane.b32.xlu0 %v1830, 112
        %v4547 = vpop.permute.xlu0 %4546
        %4548 = vrot.lane.b32.xlu0 %v1833, 112
        %v4549 = vpop.permute.xlu0 %4548
        %4550 = vrot.lane.b32.xlu0 %v1838, 112
        %v4551 = vpop.permute.xlu0 %4550
        %4552 = vrot.lane.b32.xlu0 %v1841, 112
        %v4553 = vpop.permute.xlu0 %4552
        %4554 = vrot.lane.b32.xlu0 %v1846, 112
        %v4555 = vpop.permute.xlu0 %4554
        %4556 = vrot.lane.b32.xlu0 %v1849, 112
        %v4557 = vpop.permute.xlu0 %4556
        %4558 = vrot.lane.b32.xlu0 %v1854, 112
        %v4559 = vpop.permute.xlu0 %4558
        %4560 = vrot.lane.b32.xlu0 %v1857, 112
        %v4561 = vpop.permute.xlu0 %4560
        %4562 = vrot.lane.b32.xlu0 %v1862, 112
        %v4563 = vpop.permute.xlu0 %4562
        %4564 = vrot.lane.b32.xlu0 %v1865, 112
        %v4565 = vpop.permute.xlu0 %4564
        %4566 = vrot.lane.b32.xlu0 %v1870, 112
        %v4567 = vpop.permute.xlu0 %4566
        %4568 = vrot.lane.b32.xlu0 %v1873, 112
        %v4569 = vpop.permute.xlu0 %4568
        %4570 = vrot.lane.b32.xlu0 %v1878, 112
        %v4571 = vpop.permute.xlu0 %4570
        %4572 = vrot.lane.b32.xlu0 %v1881, 112
        %v4573 = vpop.permute.xlu0 %4572
        %4574 = vrot.lane.b32.xlu0 %v1886, 112
        %v4575 = vpop.permute.xlu0 %4574
        %4576 = vrot.lane.b32.xlu0 %v1889, 112
        %v4577 = vpop.permute.xlu0 %4576
        %4578 = vrot.lane.b32.xlu0 %v1894, 112
        %v4579 = vpop.permute.xlu0 %4578
        %4580 = vrot.lane.b32.xlu0 %v1897, 112
        %v4581 = vpop.permute.xlu0 %4580
        %4582 = vrot.lane.b32.xlu0 %v1902, 112
        %v4583 = vpop.permute.xlu0 %4582
        %4584 = vrot.lane.b32.xlu0 %v1905, 112
        %v4585 = vpop.permute.xlu0 %4584
        %4586 = vrot.lane.b32.xlu0 %v1910, 112
        %v4587 = vpop.permute.xlu0 %4586
        %4588 = vrot.lane.b32.xlu0 %v1913, 112
        %v4589 = vpop.permute.xlu0 %4588
        %4590 = vrot.lane.b32.xlu0 %v1918, 112
        %v4591 = vpop.permute.xlu0 %4590
        %4592 = vrot.lane.b32.xlu0 %v1921, 112
        %v4593 = vpop.permute.xlu0 %4592
        %4594 = vrot.lane.b32.xlu0 %v1926, 112
        %v4595 = vpop.permute.xlu0 %4594
        %4596 = vrot.lane.b32.xlu0 %v1929, 112
        %v4597 = vpop.permute.xlu0 %4596
        %4598 = vrot.lane.b32.xlu0 %v1934, 112
        %v4599 = vpop.permute.xlu0 %4598
        %4600 = vrot.lane.b32.xlu0 %v1937, 112
        %v4601 = vpop.permute.xlu0 %4600
        %4602 = vrot.lane.b32.xlu0 %v1942, 112
        %v4603 = vpop.permute.xlu0 %4602
        %4604 = vrot.lane.b32.xlu0 %v1945, 112
        %v4605 = vpop.permute.xlu0 %4604
        %4606 = vrot.lane.b32.xlu0 %v1950, 112
        %v4607 = vpop.permute.xlu0 %4606
        %4608 = vrot.lane.b32.xlu0 %v1953, 112
        %v4609 = vpop.permute.xlu0 %4608
        %4610 = vrot.lane.b32.xlu0 %v1958, 112
        %v4611 = vpop.permute.xlu0 %4610
        %4612 = vrot.lane.b32.xlu0 %v1961, 112
        %v4613 = vpop.permute.xlu0 %4612
        %4614 = vrot.lane.b32.xlu0 %v1966, 112
        %v4615 = vpop.permute.xlu0 %4614
        %4616 = vrot.lane.b32.xlu0 %v1969, 112
        %v4617 = vpop.permute.xlu0 %4616
        %4618 = vrot.lane.b32.xlu0 %v1974, 112
        %v4619 = vpop.permute.xlu0 %4618
        %4620 = vrot.lane.b32.xlu0 %v1977, 112
        %v4621 = vpop.permute.xlu0 %4620
        %4622 = vrot.lane.b32.xlu0 %v1982, 112
        %v4623 = vpop.permute.xlu0 %4622
        %4624 = vrot.lane.b32.xlu0 %v1985, 112
        %v4625 = vpop.permute.xlu0 %4624
        %4626 = vrot.lane.b32.xlu0 %v1990, 112
        %v4627 = vpop.permute.xlu0 %4626
        %4628 = vrot.lane.b32.xlu0 %v1993, 112
        %v4629 = vpop.permute.xlu0 %4628
        %4630 = vrot.lane.b32.xlu0 %v1998, 112
        %v4631 = vpop.permute.xlu0 %4630
        %4632 = vrot.lane.b32.xlu0 %v2001, 112
        %v4633 = vpop.permute.xlu0 %4632
        %4634 = vrot.lane.b32.xlu0 %v2006, 112
        %v4635 = vpop.permute.xlu0 %4634
        %4636 = vrot.lane.b32.xlu0 %v2009, 112
        %v4637 = vpop.permute.xlu0 %4636
        %4638 = vrot.lane.b32.xlu0 %v2014, 112
        %v4639 = vpop.permute.xlu0 %4638
        %4640 = vrot.lane.b32.xlu0 %v2017, 112
        %v4641 = vpop.permute.xlu0 %4640
        %4642 = vrot.lane.b32.xlu0 %v2022, 112
        %v4643 = vpop.permute.xlu0 %4642
        %4644 = vrot.lane.b32.xlu0 %v2025, 112
        %v4645 = vpop.permute.xlu0 %4644
        %4646 = vrot.lane.b32.xlu0 %v2030, 112
        %v4647 = vpop.permute.xlu0 %4646
        %4648 = vrot.lane.b32.xlu0 %v2033, 112
        %v4649 = vpop.permute.xlu0 %4648
        %4650 = vrot.lane.b32.xlu0 %v2038, 112
        %v4651 = vpop.permute.xlu0 %4650
        %4652 = vrot.lane.b32.xlu0 %v2041, 112
        %v4653 = vpop.permute.xlu0 %4652
        %4654 = vrot.lane.b32.xlu0 %v2046, 112
        %v4655 = vpop.permute.xlu0 %4654
        %4656 = vrot.lane.b32.xlu0 %v2049, 112
        %v4657 = vpop.permute.xlu0 %4656
        %4658 = vrot.lane.b32.xlu0 %v2054, 112
        %v4659 = vpop.permute.xlu0 %4658
        %4660 = vrot.lane.b32.xlu0 %v2057, 112
        %v4661 = vpop.permute.xlu0 %4660
        %4662 = vrot.lane.b32.xlu0 %v2062, 112
        %v4663 = vpop.permute.xlu0 %4662
        %4664 = vrot.lane.b32.xlu0 %v2065, 112
        %v4665 = vpop.permute.xlu0 %4664
        %4666 = vrot.lane.b32.xlu0 %v2070, 112
        %v4667 = vpop.permute.xlu0 %4666
        %4668 = vrot.lane.b32.xlu0 %v2073, 112
        %v4669 = vpop.permute.xlu0 %4668
        %4670 = vrot.lane.b32.xlu0 %v2078, 112
        %v4671 = vpop.permute.xlu0 %4670
        %4672 = vrot.lane.b32.xlu0 %v2081, 112
        %v4673 = vpop.permute.xlu0 %4672
        %4674 = vrot.lane.b32.xlu0 %v2086, 112
        %v4675 = vpop.permute.xlu0 %4674
        %4676 = vrot.lane.b32.xlu0 %v2089, 112
        %v4677 = vpop.permute.xlu0 %4676
        %4678 = vrot.lane.b32.xlu0 %v2094, 112
        %v4679 = vpop.permute.xlu0 %4678
        %4680 = vrot.lane.b32.xlu0 %v2097, 112
        %v4681 = vpop.permute.xlu0 %4680
        %4682 = vrot.lane.b32.xlu0 %v2102, 112
        %v4683 = vpop.permute.xlu0 %4682
        %4684 = vrot.lane.b32.xlu0 %v2105, 112
        %v4685 = vpop.permute.xlu0 %4684
        %4686 = vrot.lane.b32.xlu0 %v2110, 112
        %v4687 = vpop.permute.xlu0 %4686
        %4688 = vrot.lane.b32.xlu0 %v2113, 112
        %v4689 = vpop.permute.xlu0 %4688
        %4690 = vrot.lane.b32.xlu0 %v2118, 112
        %v4691 = vpop.permute.xlu0 %4690
        %4692 = vrot.lane.b32.xlu0 %v2121, 112
        %v4693 = vpop.permute.xlu0 %4692
        %4694 = vrot.lane.b32.xlu0 %v2126, 112
        %v4695 = vpop.permute.xlu0 %4694
        %4696 = vrot.lane.b32.xlu0 %v2129, 112
        %v4697 = vpop.permute.xlu0 %4696
        %4698 = vrot.lane.b32.xlu0 %v2134, 112
        %v4699 = vpop.permute.xlu0 %4698
        %4700 = vrot.lane.b32.xlu0 %v2137, 112
        %v4701 = vpop.permute.xlu0 %4700
        %4702 = vrot.lane.b32.xlu0 %v2142, 112
        %v4703 = vpop.permute.xlu0 %4702
        %4704 = vrot.lane.b32.xlu0 %v2145, 112
        %v4705 = vpop.permute.xlu0 %4704
        %4706 = vrot.lane.b32.xlu0 %v2150, 112
        %v4707 = vpop.permute.xlu0 %4706
        %4708 = vrot.lane.b32.xlu0 %v2153, 112
        %v4709 = vpop.permute.xlu0 %4708
        %4710 = vrot.lane.b32.xlu0 %v2158, 112
        %v4711 = vpop.permute.xlu0 %4710
        %4712 = vrot.lane.b32.xlu0 %v2161, 112
        %v4713 = vpop.permute.xlu0 %4712
        %4714 = vrot.lane.b32.xlu0 %v2166, 112
        %v4715 = vpop.permute.xlu0 %4714
        %4716 = vrot.lane.b32.xlu0 %v2169, 112
        %v4717 = vpop.permute.xlu0 %4716
        %4718 = vrot.lane.b32.xlu0 %v2174, 112
        %v4719 = vpop.permute.xlu0 %4718
        %4720 = vrot.lane.b32.xlu0 %v2177, 112
        %v4721 = vpop.permute.xlu0 %4720
        %4722 = vrot.lane.b32.xlu0 %v2182, 112
        %v4723 = vpop.permute.xlu0 %4722
        %4724 = vrot.lane.b32.xlu0 %v2185, 112
        %v4725 = vpop.permute.xlu0 %4724
        %4726 = vrot.lane.b32.xlu0 %v2190, 112
        %v4727 = vpop.permute.xlu0 %4726
        %4728 = vrot.lane.b32.xlu0 %v2193, 112
        %v4729 = vpop.permute.xlu0 %4728
        %4730 = vrot.lane.b32.xlu0 %v2198, 112
        %v4731 = vpop.permute.xlu0 %4730
        %4732 = vrot.lane.b32.xlu0 %v2201, 112
        %v4733 = vpop.permute.xlu0 %4732
        %4734 = vrot.lane.b32.xlu0 %v2206, 112
        %v4735 = vpop.permute.xlu0 %4734
        %4736 = vrot.lane.b32.xlu0 %v2209, 112
        %v4737 = vpop.permute.xlu0 %4736
        %4738 = vrot.lane.b32.xlu0 %v2214, 112
        %v4739 = vpop.permute.xlu0 %4738
        %4740 = vrot.lane.b32.xlu0 %v2217, 112
        %v4741 = vpop.permute.xlu0 %4740
        %4742 = vrot.lane.b32.xlu0 %v2222, 112
        %v4743 = vpop.permute.xlu0 %4742
        %4744 = vrot.lane.b32.xlu0 %v2225, 112
        %v4745 = vpop.permute.xlu0 %4744
        %4746 = vrot.lane.b32.xlu0 %v2230, 112
        %v4747 = vpop.permute.xlu0 %4746
        %4748 = vrot.lane.b32.xlu0 %v2233, 112
        %v4749 = vpop.permute.xlu0 %4748
        %4750 = vrot.lane.b32.xlu0 %v2238, 112
        %v4751 = vpop.permute.xlu0 %4750
        %4752 = vrot.lane.b32.xlu0 %v2241, 112
        %v4753 = vpop.permute.xlu0 %4752
        %4754 = vrot.lane.b32.xlu0 %v2246, 112
        %v4755 = vpop.permute.xlu0 %4754
        %4756 = vrot.lane.b32.xlu0 %v2249, 112
        %v4757 = vpop.permute.xlu0 %4756
        %4758 = vrot.lane.b32.xlu0 %v2254, 112
        %v4759 = vpop.permute.xlu0 %4758
        %4760 = vrot.lane.b32.xlu0 %v2257, 112
        %v4761 = vpop.permute.xlu0 %4760
        %4762 = vrot.lane.b32.xlu0 %v2262, 112
        %v4763 = vpop.permute.xlu0 %4762
        %4764 = vrot.lane.b32.xlu0 %v2265, 112
        %v4765 = vpop.permute.xlu0 %4764
        %4766 = vrot.lane.b32.xlu0 %v2270, 112
        %v4767 = vpop.permute.xlu0 %4766
        %4768 = vrot.lane.b32.xlu0 %v2273, 112
        %v4769 = vpop.permute.xlu0 %4768
        %4770 = vrot.lane.b32.xlu0 %v2278, 112
        %v4771 = vpop.permute.xlu0 %4770
        %4772 = vrot.lane.b32.xlu0 %v2281, 112
        %v4773 = vpop.permute.xlu0 %4772
        %4774 = vrot.lane.b32.xlu0 %v2286, 112
        %v4775 = vpop.permute.xlu0 %4774
        %4776 = vrot.lane.b32.xlu0 %v2289, 112
        %v4777 = vpop.permute.xlu0 %4776
        %4778 = vrot.lane.b32.xlu0 %v2294, 112
        %v4779 = vpop.permute.xlu0 %4778
        %4780 = vrot.lane.b32.xlu0 %v2297, 112
        %v4781 = vpop.permute.xlu0 %4780
        %4782 = vrot.lane.b32.xlu0 %v2302, 112
        %v4783 = vpop.permute.xlu0 %4782
        %4784 = vrot.lane.b32.xlu0 %v2305, 112
        %v4785 = vpop.permute.xlu0 %4784
        %4786 = vrot.lane.b32.xlu0 %v2310, 112
        %v4787 = vpop.permute.xlu0 %4786
        %4788 = vrot.lane.b32.xlu0 %v2313, 112
        %v4789 = vpop.permute.xlu0 %4788
        %4934 = vrot.lane.b32.xlu0 %v1742, 16
        %v4935 = vpop.permute.xlu0 %4934
        %4936 = vrot.lane.b32.xlu0 %v1745, 16
        %v4937 = vpop.permute.xlu0 %4936
        %4938 = vrot.lane.b32.xlu0 %v1750, 16
        %v4939 = vpop.permute.xlu0 %4938
        %4940 = vrot.lane.b32.xlu0 %v1753, 16
        %v4941 = vpop.permute.xlu0 %4940
        %4942 = vrot.lane.b32.xlu0 %v1758, 16
        %v4943 = vpop.permute.xlu0 %4942
        %4944 = vrot.lane.b32.xlu0 %v1761, 16
        %v4945 = vpop.permute.xlu0 %4944
        %4946 = vrot.lane.b32.xlu0 %v1766, 16
        %v4947 = vpop.permute.xlu0 %4946
        %4948 = vrot.lane.b32.xlu0 %v1769, 16
        %v4949 = vpop.permute.xlu0 %4948
        %4950 = vrot.lane.b32.xlu0 %v1774, 16
        %v4951 = vpop.permute.xlu0 %4950
        %4952 = vrot.lane.b32.xlu0 %v1777, 16
        %v4953 = vpop.permute.xlu0 %4952
        %4954 = vrot.lane.b32.xlu0 %v1782, 16
        %v4955 = vpop.permute.xlu0 %4954
        %4956 = vrot.lane.b32.xlu0 %v1785, 16
        %v4957 = vpop.permute.xlu0 %4956
        %4958 = vrot.lane.b32.xlu0 %v1790, 16
        %v4959 = vpop.permute.xlu0 %4958
        %4960 = vrot.lane.b32.xlu0 %v1793, 16
        %v4961 = vpop.permute.xlu0 %4960
        %4962 = vrot.lane.b32.xlu0 %v1798, 16
        %v4963 = vpop.permute.xlu0 %4962
        %4964 = vrot.lane.b32.xlu0 %v1801, 16
        %v4965 = vpop.permute.xlu0 %4964
        %4966 = vrot.lane.b32.xlu0 %v1806, 16
        %v4967 = vpop.permute.xlu0 %4966
        %4968 = vrot.lane.b32.xlu0 %v1809, 16
        %v4969 = vpop.permute.xlu0 %4968
        %4970 = vrot.lane.b32.xlu0 %v1814, 16
        %v4971 = vpop.permute.xlu0 %4970
        %4972 = vrot.lane.b32.xlu0 %v1817, 16
        %v4973 = vpop.permute.xlu0 %4972
        %4974 = vrot.lane.b32.xlu0 %v1822, 16
        %v4975 = vpop.permute.xlu0 %4974
        %4976 = vrot.lane.b32.xlu0 %v1825, 16
        %v4977 = vpop.permute.xlu0 %4976
        %4978 = vrot.lane.b32.xlu0 %v1830, 16
        %v4979 = vpop.permute.xlu0 %4978
        %4980 = vrot.lane.b32.xlu0 %v1833, 16
        %v4981 = vpop.permute.xlu0 %4980
        %4982 = vrot.lane.b32.xlu0 %v1838, 16
        %v4983 = vpop.permute.xlu0 %4982
        %4984 = vrot.lane.b32.xlu0 %v1841, 16
        %v4985 = vpop.permute.xlu0 %4984
        %4986 = vrot.lane.b32.xlu0 %v1846, 16
        %v4987 = vpop.permute.xlu0 %4986
        %4988 = vrot.lane.b32.xlu0 %v1849, 16
        %v4989 = vpop.permute.xlu0 %4988
        %4990 = vrot.lane.b32.xlu0 %v1854, 16
        %v4991 = vpop.permute.xlu0 %4990
        %4992 = vrot.lane.b32.xlu0 %v1857, 16
        %v4993 = vpop.permute.xlu0 %4992
        %4994 = vrot.lane.b32.xlu0 %v1862, 16
        %v4995 = vpop.permute.xlu0 %4994
        %4996 = vrot.lane.b32.xlu0 %v1865, 16
        %v4997 = vpop.permute.xlu0 %4996
        %4998 = vrot.lane.b32.xlu0 %v1870, 16
        %v4999 = vpop.permute.xlu0 %4998
        %5000 = vrot.lane.b32.xlu0 %v1873, 16
        %v5001 = vpop.permute.xlu0 %5000
        %5002 = vrot.lane.b32.xlu0 %v1878, 16
        %v5003 = vpop.permute.xlu0 %5002
        %5004 = vrot.lane.b32.xlu0 %v1881, 16
        %v5005 = vpop.permute.xlu0 %5004
        %5006 = vrot.lane.b32.xlu0 %v1886, 16
        %v5007 = vpop.permute.xlu0 %5006
        %5008 = vrot.lane.b32.xlu0 %v1889, 16
        %v5009 = vpop.permute.xlu0 %5008
        %5010 = vrot.lane.b32.xlu0 %v1894, 16
        %v5011 = vpop.permute.xlu0 %5010
        %5012 = vrot.lane.b32.xlu0 %v1897, 16
        %v5013 = vpop.permute.xlu0 %5012
        %5014 = vrot.lane.b32.xlu0 %v1902, 16
        %v5015 = vpop.permute.xlu0 %5014
        %5016 = vrot.lane.b32.xlu0 %v1905, 16
        %v5017 = vpop.permute.xlu0 %5016
        %5018 = vrot.lane.b32.xlu0 %v1910, 16
        %v5019 = vpop.permute.xlu0 %5018
        %5020 = vrot.lane.b32.xlu0 %v1913, 16
        %v5021 = vpop.permute.xlu0 %5020
        %5022 = vrot.lane.b32.xlu0 %v1918, 16
        %v5023 = vpop.permute.xlu0 %5022
        %5024 = vrot.lane.b32.xlu0 %v1921, 16
        %v5025 = vpop.permute.xlu0 %5024
        %5026 = vrot.lane.b32.xlu0 %v1926, 16
        %v5027 = vpop.permute.xlu0 %5026
        %5028 = vrot.lane.b32.xlu0 %v1929, 16
        %v5029 = vpop.permute.xlu0 %5028
        %5030 = vrot.lane.b32.xlu0 %v1934, 16
        %v5031 = vpop.permute.xlu0 %5030
        %5032 = vrot.lane.b32.xlu0 %v1937, 16
        %v5033 = vpop.permute.xlu0 %5032
        %5034 = vrot.lane.b32.xlu0 %v1942, 16
        %v5035 = vpop.permute.xlu0 %5034
        %5036 = vrot.lane.b32.xlu0 %v1945, 16
        %v5037 = vpop.permute.xlu0 %5036
        %5038 = vrot.lane.b32.xlu0 %v1950, 16
        %v5039 = vpop.permute.xlu0 %5038
        %5040 = vrot.lane.b32.xlu0 %v1953, 16
        %v5041 = vpop.permute.xlu0 %5040
        %5042 = vrot.lane.b32.xlu0 %v1958, 16
        %v5043 = vpop.permute.xlu0 %5042
        %5044 = vrot.lane.b32.xlu0 %v1961, 16
        %v5045 = vpop.permute.xlu0 %5044
        %5046 = vrot.lane.b32.xlu0 %v1966, 16
        %v5047 = vpop.permute.xlu0 %5046
        %5048 = vrot.lane.b32.xlu0 %v1969, 16
        %v5049 = vpop.permute.xlu0 %5048
        %5050 = vrot.lane.b32.xlu0 %v1974, 16
        %v5051 = vpop.permute.xlu0 %5050
        %5052 = vrot.lane.b32.xlu0 %v1977, 16
        %v5053 = vpop.permute.xlu0 %5052
        %5054 = vrot.lane.b32.xlu0 %v1982, 16
        %v5055 = vpop.permute.xlu0 %5054
        %5056 = vrot.lane.b32.xlu0 %v1985, 16
        %v5057 = vpop.permute.xlu0 %5056
        %5058 = vrot.lane.b32.xlu0 %v1990, 16
        %v5059 = vpop.permute.xlu0 %5058
        %5060 = vrot.lane.b32.xlu0 %v1993, 16
        %v5061 = vpop.permute.xlu0 %5060
        %5062 = vrot.lane.b32.xlu0 %v1998, 16
        %v5063 = vpop.permute.xlu0 %5062
        %5064 = vrot.lane.b32.xlu0 %v2001, 16
        %v5065 = vpop.permute.xlu0 %5064
        %5066 = vrot.lane.b32.xlu0 %v2006, 16
        %v5067 = vpop.permute.xlu0 %5066
        %5068 = vrot.lane.b32.xlu0 %v2009, 16
        %v5069 = vpop.permute.xlu0 %5068
        %5070 = vrot.lane.b32.xlu0 %v2014, 16
        %v5071 = vpop.permute.xlu0 %5070
        %5072 = vrot.lane.b32.xlu0 %v2017, 16
        %v5073 = vpop.permute.xlu0 %5072
        %5074 = vrot.lane.b32.xlu0 %v2022, 16
        %v5075 = vpop.permute.xlu0 %5074
        %5076 = vrot.lane.b32.xlu0 %v2025, 16
        %v5077 = vpop.permute.xlu0 %5076
        %5078 = vrot.lane.b32.xlu0 %v2030, 16
        %v5079 = vpop.permute.xlu0 %5078
        %5080 = vrot.lane.b32.xlu0 %v2033, 16
        %v5081 = vpop.permute.xlu0 %5080
        %5082 = vrot.lane.b32.xlu0 %v2038, 16
        %v5083 = vpop.permute.xlu0 %5082
        %5084 = vrot.lane.b32.xlu0 %v2041, 16
        %v5085 = vpop.permute.xlu0 %5084
        %5086 = vrot.lane.b32.xlu0 %v2046, 16
        %v5087 = vpop.permute.xlu0 %5086
        %5088 = vrot.lane.b32.xlu0 %v2049, 16
        %v5089 = vpop.permute.xlu0 %5088
        %5090 = vrot.lane.b32.xlu0 %v2054, 16
        %v5091 = vpop.permute.xlu0 %5090
        %5092 = vrot.lane.b32.xlu0 %v2057, 16
        %v5093 = vpop.permute.xlu0 %5092
        %5094 = vrot.lane.b32.xlu0 %v2062, 16
        %v5095 = vpop.permute.xlu0 %5094
        %5096 = vrot.lane.b32.xlu0 %v2065, 16
        %v5097 = vpop.permute.xlu0 %5096
        %5098 = vrot.lane.b32.xlu0 %v2070, 16
        %v5099 = vpop.permute.xlu0 %5098
        %5100 = vrot.lane.b32.xlu0 %v2073, 16
        %v5101 = vpop.permute.xlu0 %5100
        %5102 = vrot.lane.b32.xlu0 %v2078, 16
        %v5103 = vpop.permute.xlu0 %5102
        %5104 = vrot.lane.b32.xlu0 %v2081, 16
        %v5105 = vpop.permute.xlu0 %5104
        %5106 = vrot.lane.b32.xlu0 %v2086, 16
        %v5107 = vpop.permute.xlu0 %5106
        %5108 = vrot.lane.b32.xlu0 %v2089, 16
        %v5109 = vpop.permute.xlu0 %5108
        %5110 = vrot.lane.b32.xlu0 %v2094, 16
        %v5111 = vpop.permute.xlu0 %5110
        %5112 = vrot.lane.b32.xlu0 %v2097, 16
        %v5113 = vpop.permute.xlu0 %5112
        %5114 = vrot.lane.b32.xlu0 %v2102, 16
        %v5115 = vpop.permute.xlu0 %5114
        %5116 = vrot.lane.b32.xlu0 %v2105, 16
        %v5117 = vpop.permute.xlu0 %5116
        %5118 = vrot.lane.b32.xlu0 %v2110, 16
        %v5119 = vpop.permute.xlu0 %5118
        %5120 = vrot.lane.b32.xlu0 %v2113, 16
        %v5121 = vpop.permute.xlu0 %5120
        %5122 = vrot.lane.b32.xlu0 %v2118, 16
        %v5123 = vpop.permute.xlu0 %5122
        %5124 = vrot.lane.b32.xlu0 %v2121, 16
        %v5125 = vpop.permute.xlu0 %5124
        %5126 = vrot.lane.b32.xlu0 %v2126, 16
        %v5127 = vpop.permute.xlu0 %5126
        %5128 = vrot.lane.b32.xlu0 %v2129, 16
        %v5129 = vpop.permute.xlu0 %5128
        %5130 = vrot.lane.b32.xlu0 %v2134, 16
        %v5131 = vpop.permute.xlu0 %5130
        %5132 = vrot.lane.b32.xlu0 %v2137, 16
        %v5133 = vpop.permute.xlu0 %5132
        %5134 = vrot.lane.b32.xlu0 %v2142, 16
        %v5135 = vpop.permute.xlu0 %5134
        %5136 = vrot.lane.b32.xlu0 %v2145, 16
        %v5137 = vpop.permute.xlu0 %5136
        %5138 = vrot.lane.b32.xlu0 %v2150, 16
        %v5139 = vpop.permute.xlu0 %5138
        %5140 = vrot.lane.b32.xlu0 %v2153, 16
        %v5141 = vpop.permute.xlu0 %5140
        %5142 = vrot.lane.b32.xlu0 %v2158, 16
        %v5143 = vpop.permute.xlu0 %5142
        %5144 = vrot.lane.b32.xlu0 %v2161, 16
        %v5145 = vpop.permute.xlu0 %5144
        %5146 = vrot.lane.b32.xlu0 %v2166, 16
        %v5147 = vpop.permute.xlu0 %5146
        %5148 = vrot.lane.b32.xlu0 %v2169, 16
        %v5149 = vpop.permute.xlu0 %5148
        %5150 = vrot.lane.b32.xlu0 %v2174, 16
        %v5151 = vpop.permute.xlu0 %5150
        %5152 = vrot.lane.b32.xlu0 %v2177, 16
        %v5153 = vpop.permute.xlu0 %5152
        %5154 = vrot.lane.b32.xlu0 %v2182, 16
        %v5155 = vpop.permute.xlu0 %5154
        %5156 = vrot.lane.b32.xlu0 %v2185, 16
        %v5157 = vpop.permute.xlu0 %5156
        %5158 = vrot.lane.b32.xlu0 %v2190, 16
        %v5159 = vpop.permute.xlu0 %5158
        %5160 = vrot.lane.b32.xlu0 %v2193, 16
        %v5161 = vpop.permute.xlu0 %5160
        %5162 = vrot.lane.b32.xlu0 %v2198, 16
        %v5163 = vpop.permute.xlu0 %5162
        %5164 = vrot.lane.b32.xlu0 %v2201, 16
        %v5165 = vpop.permute.xlu0 %5164
        %5166 = vrot.lane.b32.xlu0 %v2206, 16
        %v5167 = vpop.permute.xlu0 %5166
        %5168 = vrot.lane.b32.xlu0 %v2209, 16
        %v5169 = vpop.permute.xlu0 %5168
        %5170 = vrot.lane.b32.xlu0 %v2214, 16
        %v5171 = vpop.permute.xlu0 %5170
        %5172 = vrot.lane.b32.xlu0 %v2217, 16
        %v5173 = vpop.permute.xlu0 %5172
        %5174 = vrot.lane.b32.xlu0 %v2222, 16
        %v5175 = vpop.permute.xlu0 %5174
        %5176 = vrot.lane.b32.xlu0 %v2225, 16
        %v5177 = vpop.permute.xlu0 %5176
        %5178 = vrot.lane.b32.xlu0 %v2230, 16
        %v5179 = vpop.permute.xlu0 %5178
        %5180 = vrot.lane.b32.xlu0 %v2233, 16
        %v5181 = vpop.permute.xlu0 %5180
        %5182 = vrot.lane.b32.xlu0 %v2238, 16
        %v5183 = vpop.permute.xlu0 %5182
        %5184 = vrot.lane.b32.xlu0 %v2241, 16
        %v5185 = vpop.permute.xlu0 %5184
        %5186 = vrot.lane.b32.xlu0 %v2246, 16
        %v5187 = vpop.permute.xlu0 %5186
        %5188 = vrot.lane.b32.xlu0 %v2249, 16
        %v5189 = vpop.permute.xlu0 %5188
        %5190 = vrot.lane.b32.xlu0 %v2254, 16
        %v5191 = vpop.permute.xlu0 %5190
        %5192 = vrot.lane.b32.xlu0 %v2257, 16
        %v5193 = vpop.permute.xlu0 %5192
        %5194 = vrot.lane.b32.xlu0 %v2262, 16
        %v5195 = vpop.permute.xlu0 %5194
        %5196 = vrot.lane.b32.xlu0 %v2265, 16
        %v5197 = vpop.permute.xlu0 %5196
        %5198 = vrot.lane.b32.xlu0 %v2270, 16
        %v5199 = vpop.permute.xlu0 %5198
        %5200 = vrot.lane.b32.xlu0 %v2273, 16
        %v5201 = vpop.permute.xlu0 %5200
        %5202 = vrot.lane.b32.xlu0 %v2278, 16
        %v5203 = vpop.permute.xlu0 %5202
        %5204 = vrot.lane.b32.xlu0 %v2281, 16
        %v5205 = vpop.permute.xlu0 %5204
        %5206 = vrot.lane.b32.xlu0 %v2286, 16
        %v5207 = vpop.permute.xlu0 %5206
        %5208 = vrot.lane.b32.xlu0 %v2289, 16
        %v5209 = vpop.permute.xlu0 %5208
        %5210 = vrot.lane.b32.xlu0 %v2294, 16
        %v5211 = vpop.permute.xlu0 %5210
        %5212 = vrot.lane.b32.xlu0 %v2297, 16
        %v5213 = vpop.permute.xlu0 %5212
        %5214 = vrot.lane.b32.xlu0 %v2302, 16
        %v5215 = vpop.permute.xlu0 %5214
        %5216 = vrot.lane.b32.xlu0 %v2305, 16
        %v5217 = vpop.permute.xlu0 %5216
        %5218 = vrot.lane.b32.xlu0 %v2310, 16
        %v5219 = vpop.permute.xlu0 %5218
        %5220 = vrot.lane.b32.xlu0 %v2313, 16
        %v5221 = vpop.permute.xlu0 %5220
        %5366 = vrot.lane.b32.xlu0 %v1742, 48
        %v5367 = vpop.permute.xlu0 %5366
        %5368 = vrot.lane.b32.xlu0 %v1745, 48
        %v5369 = vpop.permute.xlu0 %5368
        %5370 = vrot.lane.b32.xlu0 %v1750, 48
        %v5371 = vpop.permute.xlu0 %5370
        %5372 = vrot.lane.b32.xlu0 %v1753, 48
        %v5373 = vpop.permute.xlu0 %5372
        %5374 = vrot.lane.b32.xlu0 %v1758, 48
        %v5375 = vpop.permute.xlu0 %5374
        %5376 = vrot.lane.b32.xlu0 %v1761, 48
        %v5377 = vpop.permute.xlu0 %5376
        %5378 = vrot.lane.b32.xlu0 %v1766, 48
        %v5379 = vpop.permute.xlu0 %5378
        %5380 = vrot.lane.b32.xlu0 %v1769, 48
        %v5381 = vpop.permute.xlu0 %5380
        %5382 = vrot.lane.b32.xlu0 %v1774, 48
        %v5383 = vpop.permute.xlu0 %5382
        %5384 = vrot.lane.b32.xlu0 %v1777, 48
        %v5385 = vpop.permute.xlu0 %5384
        %5386 = vrot.lane.b32.xlu0 %v1782, 48
        %v5387 = vpop.permute.xlu0 %5386
        %5388 = vrot.lane.b32.xlu0 %v1785, 48
        %v5389 = vpop.permute.xlu0 %5388
        %5390 = vrot.lane.b32.xlu0 %v1790, 48
        %v5391 = vpop.permute.xlu0 %5390
        %5392 = vrot.lane.b32.xlu0 %v1793, 48
        %v5393 = vpop.permute.xlu0 %5392
        %5394 = vrot.lane.b32.xlu0 %v1798, 48
        %v5395 = vpop.permute.xlu0 %5394
        %5396 = vrot.lane.b32.xlu0 %v1801, 48
        %v5397 = vpop.permute.xlu0 %5396
        %5398 = vrot.lane.b32.xlu0 %v1806, 48
        %v5399 = vpop.permute.xlu0 %5398
        %5400 = vrot.lane.b32.xlu0 %v1809, 48
        %v5401 = vpop.permute.xlu0 %5400
        %5402 = vrot.lane.b32.xlu0 %v1814, 48
        %v5403 = vpop.permute.xlu0 %5402
        %5404 = vrot.lane.b32.xlu0 %v1817, 48
        %v5405 = vpop.permute.xlu0 %5404
        %5406 = vrot.lane.b32.xlu0 %v1822, 48
        %v5407 = vpop.permute.xlu0 %5406
        %5408 = vrot.lane.b32.xlu0 %v1825, 48
        %v5409 = vpop.permute.xlu0 %5408
        %5410 = vrot.lane.b32.xlu0 %v1830, 48
        %v5411 = vpop.permute.xlu0 %5410
        %5412 = vrot.lane.b32.xlu0 %v1833, 48
        %v5413 = vpop.permute.xlu0 %5412
        %5414 = vrot.lane.b32.xlu0 %v1838, 48
        %v5415 = vpop.permute.xlu0 %5414
        %5416 = vrot.lane.b32.xlu0 %v1841, 48
        %v5417 = vpop.permute.xlu0 %5416
        %5418 = vrot.lane.b32.xlu0 %v1846, 48
        %v5419 = vpop.permute.xlu0 %5418
        %5420 = vrot.lane.b32.xlu0 %v1849, 48
        %v5421 = vpop.permute.xlu0 %5420
        %5422 = vrot.lane.b32.xlu0 %v1854, 48
        %v5423 = vpop.permute.xlu0 %5422
        %5424 = vrot.lane.b32.xlu0 %v1857, 48
        %v5425 = vpop.permute.xlu0 %5424
        %5426 = vrot.lane.b32.xlu0 %v1862, 48
        %v5427 = vpop.permute.xlu0 %5426
        %5428 = vrot.lane.b32.xlu0 %v1865, 48
        %v5429 = vpop.permute.xlu0 %5428
        %5430 = vrot.lane.b32.xlu0 %v1870, 48
        %v5431 = vpop.permute.xlu0 %5430
        %5432 = vrot.lane.b32.xlu0 %v1873, 48
        %v5433 = vpop.permute.xlu0 %5432
        %5434 = vrot.lane.b32.xlu0 %v1878, 48
        %v5435 = vpop.permute.xlu0 %5434
        %5436 = vrot.lane.b32.xlu0 %v1881, 48
        %v5437 = vpop.permute.xlu0 %5436
        %5438 = vrot.lane.b32.xlu0 %v1886, 48
        %v5439 = vpop.permute.xlu0 %5438
        %5440 = vrot.lane.b32.xlu0 %v1889, 48
        %v5441 = vpop.permute.xlu0 %5440
        %5442 = vrot.lane.b32.xlu0 %v1894, 48
        %v5443 = vpop.permute.xlu0 %5442
        %5444 = vrot.lane.b32.xlu0 %v1897, 48
        %v5445 = vpop.permute.xlu0 %5444
        %5446 = vrot.lane.b32.xlu0 %v1902, 48
        %v5447 = vpop.permute.xlu0 %5446
        %5448 = vrot.lane.b32.xlu0 %v1905, 48
        %v5449 = vpop.permute.xlu0 %5448
        %5450 = vrot.lane.b32.xlu0 %v1910, 48
        %v5451 = vpop.permute.xlu0 %5450
        %5452 = vrot.lane.b32.xlu0 %v1913, 48
        %v5453 = vpop.permute.xlu0 %5452
        %5454 = vrot.lane.b32.xlu0 %v1918, 48
        %v5455 = vpop.permute.xlu0 %5454
        %5456 = vrot.lane.b32.xlu0 %v1921, 48
        %v5457 = vpop.permute.xlu0 %5456
        %5458 = vrot.lane.b32.xlu0 %v1926, 48
        %v5459 = vpop.permute.xlu0 %5458
        %5460 = vrot.lane.b32.xlu0 %v1929, 48
        %v5461 = vpop.permute.xlu0 %5460
        %5462 = vrot.lane.b32.xlu0 %v1934, 48
        %v5463 = vpop.permute.xlu0 %5462
        %5464 = vrot.lane.b32.xlu0 %v1937, 48
        %v5465 = vpop.permute.xlu0 %5464
        %5466 = vrot.lane.b32.xlu0 %v1942, 48
        %v5467 = vpop.permute.xlu0 %5466
        %5468 = vrot.lane.b32.xlu0 %v1945, 48
        %v5469 = vpop.permute.xlu0 %5468
        %5470 = vrot.lane.b32.xlu0 %v1950, 48
        %v5471 = vpop.permute.xlu0 %5470
        %5472 = vrot.lane.b32.xlu0 %v1953, 48
        %v5473 = vpop.permute.xlu0 %5472
        %5474 = vrot.lane.b32.xlu0 %v1958, 48
        %v5475 = vpop.permute.xlu0 %5474
        %5476 = vrot.lane.b32.xlu0 %v1961, 48
        %v5477 = vpop.permute.xlu0 %5476
        %5478 = vrot.lane.b32.xlu0 %v1966, 48
        %v5479 = vpop.permute.xlu0 %5478
        %5480 = vrot.lane.b32.xlu0 %v1969, 48
        %v5481 = vpop.permute.xlu0 %5480
        %5482 = vrot.lane.b32.xlu0 %v1974, 48
        %v5483 = vpop.permute.xlu0 %5482
        %5484 = vrot.lane.b32.xlu0 %v1977, 48
        %v5485 = vpop.permute.xlu0 %5484
        %5486 = vrot.lane.b32.xlu0 %v1982, 48
        %v5487 = vpop.permute.xlu0 %5486
        %5488 = vrot.lane.b32.xlu0 %v1985, 48
        %v5489 = vpop.permute.xlu0 %5488
        %5490 = vrot.lane.b32.xlu0 %v1990, 48
        %v5491 = vpop.permute.xlu0 %5490
        %5492 = vrot.lane.b32.xlu0 %v1993, 48
        %v5493 = vpop.permute.xlu0 %5492
        %5494 = vrot.lane.b32.xlu0 %v1998, 48
        %v5495 = vpop.permute.xlu0 %5494
        %5496 = vrot.lane.b32.xlu0 %v2001, 48
        %v5497 = vpop.permute.xlu0 %5496
        %5498 = vrot.lane.b32.xlu0 %v2006, 48
        %v5499 = vpop.permute.xlu0 %5498
        %5500 = vrot.lane.b32.xlu0 %v2009, 48
        %v5501 = vpop.permute.xlu0 %5500
        %5502 = vrot.lane.b32.xlu0 %v2014, 48
        %v5503 = vpop.permute.xlu0 %5502
        %5504 = vrot.lane.b32.xlu0 %v2017, 48
        %v5505 = vpop.permute.xlu0 %5504
        %5506 = vrot.lane.b32.xlu0 %v2022, 48
        %v5507 = vpop.permute.xlu0 %5506
        %5508 = vrot.lane.b32.xlu0 %v2025, 48
        %v5509 = vpop.permute.xlu0 %5508
        %5510 = vrot.lane.b32.xlu0 %v2030, 48
        %v5511 = vpop.permute.xlu0 %5510
        %5512 = vrot.lane.b32.xlu0 %v2033, 48
        %v5513 = vpop.permute.xlu0 %5512
        %5514 = vrot.lane.b32.xlu0 %v2038, 48
        %v5515 = vpop.permute.xlu0 %5514
        %5516 = vrot.lane.b32.xlu0 %v2041, 48
        %v5517 = vpop.permute.xlu0 %5516
        %5518 = vrot.lane.b32.xlu0 %v2046, 48
        %v5519 = vpop.permute.xlu0 %5518
        %5520 = vrot.lane.b32.xlu0 %v2049, 48
        %v5521 = vpop.permute.xlu0 %5520
        %5522 = vrot.lane.b32.xlu0 %v2054, 48
        %v5523 = vpop.permute.xlu0 %5522
        %5524 = vrot.lane.b32.xlu0 %v2057, 48
        %v5525 = vpop.permute.xlu0 %5524
        %5526 = vrot.lane.b32.xlu0 %v2062, 48
        %v5527 = vpop.permute.xlu0 %5526
        %5528 = vrot.lane.b32.xlu0 %v2065, 48
        %v5529 = vpop.permute.xlu0 %5528
        %5530 = vrot.lane.b32.xlu0 %v2070, 48
        %v5531 = vpop.permute.xlu0 %5530
        %5532 = vrot.lane.b32.xlu0 %v2073, 48
        %v5533 = vpop.permute.xlu0 %5532
        %5534 = vrot.lane.b32.xlu0 %v2078, 48
        %v5535 = vpop.permute.xlu0 %5534
        %5536 = vrot.lane.b32.xlu0 %v2081, 48
        %v5537 = vpop.permute.xlu0 %5536
        %5538 = vrot.lane.b32.xlu0 %v2086, 48
        %v5539 = vpop.permute.xlu0 %5538
        %5540 = vrot.lane.b32.xlu0 %v2089, 48
        %v5541 = vpop.permute.xlu0 %5540
        %5542 = vrot.lane.b32.xlu0 %v2094, 48
        %v5543 = vpop.permute.xlu0 %5542
        %5544 = vrot.lane.b32.xlu0 %v2097, 48
        %v5545 = vpop.permute.xlu0 %5544
        %5546 = vrot.lane.b32.xlu0 %v2102, 48
        %v5547 = vpop.permute.xlu0 %5546
        %5548 = vrot.lane.b32.xlu0 %v2105, 48
        %v5549 = vpop.permute.xlu0 %5548
        %5550 = vrot.lane.b32.xlu0 %v2110, 48
        %v5551 = vpop.permute.xlu0 %5550
        %5552 = vrot.lane.b32.xlu0 %v2113, 48
        %v5553 = vpop.permute.xlu0 %5552
        %5554 = vrot.lane.b32.xlu0 %v2118, 48
        %v5555 = vpop.permute.xlu0 %5554
        %5556 = vrot.lane.b32.xlu0 %v2121, 48
        %v5557 = vpop.permute.xlu0 %5556
        %5558 = vrot.lane.b32.xlu0 %v2126, 48
        %v5559 = vpop.permute.xlu0 %5558
        %5560 = vrot.lane.b32.xlu0 %v2129, 48
        %v5561 = vpop.permute.xlu0 %5560
        %5562 = vrot.lane.b32.xlu0 %v2134, 48
        %v5563 = vpop.permute.xlu0 %5562
        %5564 = vrot.lane.b32.xlu0 %v2137, 48
        %v5565 = vpop.permute.xlu0 %5564
        %5566 = vrot.lane.b32.xlu0 %v2142, 48
        %v5567 = vpop.permute.xlu0 %5566
        %5568 = vrot.lane.b32.xlu0 %v2145, 48
        %v5569 = vpop.permute.xlu0 %5568
        %5570 = vrot.lane.b32.xlu0 %v2150, 48
        %v5571 = vpop.permute.xlu0 %5570
        %5572 = vrot.lane.b32.xlu0 %v2153, 48
        %v5573 = vpop.permute.xlu0 %5572
        %5574 = vrot.lane.b32.xlu0 %v2158, 48
        %v5575 = vpop.permute.xlu0 %5574
        %5576 = vrot.lane.b32.xlu0 %v2161, 48
        %v5577 = vpop.permute.xlu0 %5576
        %5578 = vrot.lane.b32.xlu0 %v2166, 48
        %v5579 = vpop.permute.xlu0 %5578
        %5580 = vrot.lane.b32.xlu0 %v2169, 48
        %v5581 = vpop.permute.xlu0 %5580
        %5582 = vrot.lane.b32.xlu0 %v2174, 48
        %v5583 = vpop.permute.xlu0 %5582
        %5584 = vrot.lane.b32.xlu0 %v2177, 48
        %v5585 = vpop.permute.xlu0 %5584
        %5586 = vrot.lane.b32.xlu0 %v2182, 48
        %v5587 = vpop.permute.xlu0 %5586
        %5588 = vrot.lane.b32.xlu0 %v2185, 48
        %v5589 = vpop.permute.xlu0 %5588
        %5590 = vrot.lane.b32.xlu0 %v2190, 48
        %v5591 = vpop.permute.xlu0 %5590
        %5592 = vrot.lane.b32.xlu0 %v2193, 48
        %v5593 = vpop.permute.xlu0 %5592
        %5594 = vrot.lane.b32.xlu0 %v2198, 48
        %v5595 = vpop.permute.xlu0 %5594
        %5596 = vrot.lane.b32.xlu0 %v2201, 48
        %v5597 = vpop.permute.xlu0 %5596
        %5598 = vrot.lane.b32.xlu0 %v2206, 48
        %v5599 = vpop.permute.xlu0 %5598
        %5600 = vrot.lane.b32.xlu0 %v2209, 48
        %v5601 = vpop.permute.xlu0 %5600
        %5602 = vrot.lane.b32.xlu0 %v2214, 48
        %v5603 = vpop.permute.xlu0 %5602
        %5604 = vrot.lane.b32.xlu0 %v2217, 48
        %v5605 = vpop.permute.xlu0 %5604
        %5606 = vrot.lane.b32.xlu0 %v2222, 48
        %v5607 = vpop.permute.xlu0 %5606
        %5608 = vrot.lane.b32.xlu0 %v2225, 48
        %v5609 = vpop.permute.xlu0 %5608
        %5610 = vrot.lane.b32.xlu0 %v2230, 48
        %v5611 = vpop.permute.xlu0 %5610
        %5612 = vrot.lane.b32.xlu0 %v2233, 48
        %v5613 = vpop.permute.xlu0 %5612
        %5614 = vrot.lane.b32.xlu0 %v2238, 48
        %v5615 = vpop.permute.xlu0 %5614
        %5616 = vrot.lane.b32.xlu0 %v2241, 48
        %v5617 = vpop.permute.xlu0 %5616
        %5618 = vrot.lane.b32.xlu0 %v2246, 48
        %v5619 = vpop.permute.xlu0 %5618
        %5620 = vrot.lane.b32.xlu0 %v2249, 48
        %v5621 = vpop.permute.xlu0 %5620
        %5622 = vrot.lane.b32.xlu0 %v2254, 48
        %v5623 = vpop.permute.xlu0 %5622
        %5624 = vrot.lane.b32.xlu0 %v2257, 48
        %v5625 = vpop.permute.xlu0 %5624
        %5626 = vrot.lane.b32.xlu0 %v2262, 48
        %v5627 = vpop.permute.xlu0 %5626
        %5628 = vrot.lane.b32.xlu0 %v2265, 48
        %v5629 = vpop.permute.xlu0 %5628
        %5630 = vrot.lane.b32.xlu0 %v2270, 48
        %v5631 = vpop.permute.xlu0 %5630
        %5632 = vrot.lane.b32.xlu0 %v2273, 48
        %v5633 = vpop.permute.xlu0 %5632
        %5634 = vrot.lane.b32.xlu0 %v2278, 48
        %v5635 = vpop.permute.xlu0 %5634
        %5636 = vrot.lane.b32.xlu0 %v2281, 48
        %v5637 = vpop.permute.xlu0 %5636
        %5638 = vrot.lane.b32.xlu0 %v2286, 48
        %v5639 = vpop.permute.xlu0 %5638
        %5640 = vrot.lane.b32.xlu0 %v2289, 48
        %v5641 = vpop.permute.xlu0 %5640
        %5642 = vrot.lane.b32.xlu0 %v2294, 48
        %v5643 = vpop.permute.xlu0 %5642
        %5644 = vrot.lane.b32.xlu0 %v2297, 48
        %v5645 = vpop.permute.xlu0 %5644
        %5646 = vrot.lane.b32.xlu0 %v2302, 48
        %v5647 = vpop.permute.xlu0 %5646
        %5648 = vrot.lane.b32.xlu0 %v2305, 48
        %v5649 = vpop.permute.xlu0 %5648
        %5650 = vrot.lane.b32.xlu0 %v2310, 48
        %v5651 = vpop.permute.xlu0 %5650
        %5652 = vrot.lane.b32.xlu0 %v2313, 48
        %v5653 = vpop.permute.xlu0 %5652
        %5798 = vrot.lane.b32.xlu0 %v1742, 80
        %v5799 = vpop.permute.xlu0 %5798
        %5800 = vrot.lane.b32.xlu0 %v1745, 80
        %v5801 = vpop.permute.xlu0 %5800
        %5802 = vrot.lane.b32.xlu0 %v1750, 80
        %v5803 = vpop.permute.xlu0 %5802
        %5804 = vrot.lane.b32.xlu0 %v1753, 80
        %v5805 = vpop.permute.xlu0 %5804
        %5806 = vrot.lane.b32.xlu0 %v1758, 80
        %v5807 = vpop.permute.xlu0 %5806
        %5808 = vrot.lane.b32.xlu0 %v1761, 80
        %v5809 = vpop.permute.xlu0 %5808
        %5810 = vrot.lane.b32.xlu0 %v1766, 80
        %v5811 = vpop.permute.xlu0 %5810
        %5812 = vrot.lane.b32.xlu0 %v1769, 80
        %v5813 = vpop.permute.xlu0 %5812
        %5814 = vrot.lane.b32.xlu0 %v1774, 80
        %v5815 = vpop.permute.xlu0 %5814
        %5816 = vrot.lane.b32.xlu0 %v1777, 80
        %v5817 = vpop.permute.xlu0 %5816
        %5818 = vrot.lane.b32.xlu0 %v1782, 80
        %v5819 = vpop.permute.xlu0 %5818
        %5820 = vrot.lane.b32.xlu0 %v1785, 80
        %v5821 = vpop.permute.xlu0 %5820
        %5822 = vrot.lane.b32.xlu0 %v1790, 80
        %v5823 = vpop.permute.xlu0 %5822
        %5824 = vrot.lane.b32.xlu0 %v1793, 80
        %v5825 = vpop.permute.xlu0 %5824
        %5826 = vrot.lane.b32.xlu0 %v1798, 80
        %v5827 = vpop.permute.xlu0 %5826
        %5828 = vrot.lane.b32.xlu0 %v1801, 80
        %v5829 = vpop.permute.xlu0 %5828
        %5830 = vrot.lane.b32.xlu0 %v1806, 80
        %v5831 = vpop.permute.xlu0 %5830
        %5832 = vrot.lane.b32.xlu0 %v1809, 80
        %v5833 = vpop.permute.xlu0 %5832
        %5834 = vrot.lane.b32.xlu0 %v1814, 80
        %v5835 = vpop.permute.xlu0 %5834
        %5836 = vrot.lane.b32.xlu0 %v1817, 80
        %v5837 = vpop.permute.xlu0 %5836
        %5838 = vrot.lane.b32.xlu0 %v1822, 80
        %v5839 = vpop.permute.xlu0 %5838
        %5840 = vrot.lane.b32.xlu0 %v1825, 80
        %v5841 = vpop.permute.xlu0 %5840
        %5842 = vrot.lane.b32.xlu0 %v1830, 80
        %v5843 = vpop.permute.xlu0 %5842
        %5844 = vrot.lane.b32.xlu0 %v1833, 80
        %v5845 = vpop.permute.xlu0 %5844
        %5846 = vrot.lane.b32.xlu0 %v1838, 80
        %v5847 = vpop.permute.xlu0 %5846
        %5848 = vrot.lane.b32.xlu0 %v1841, 80
        %v5849 = vpop.permute.xlu0 %5848
        %5850 = vrot.lane.b32.xlu0 %v1846, 80
        %v5851 = vpop.permute.xlu0 %5850
        %5852 = vrot.lane.b32.xlu0 %v1849, 80
        %v5853 = vpop.permute.xlu0 %5852
        %5854 = vrot.lane.b32.xlu0 %v1854, 80
        %v5855 = vpop.permute.xlu0 %5854
        %5856 = vrot.lane.b32.xlu0 %v1857, 80
        %v5857 = vpop.permute.xlu0 %5856
        %5858 = vrot.lane.b32.xlu0 %v1862, 80
        %v5859 = vpop.permute.xlu0 %5858
        %5860 = vrot.lane.b32.xlu0 %v1865, 80
        %v5861 = vpop.permute.xlu0 %5860
        %5862 = vrot.lane.b32.xlu0 %v1870, 80
        %v5863 = vpop.permute.xlu0 %5862
        %5864 = vrot.lane.b32.xlu0 %v1873, 80
        %v5865 = vpop.permute.xlu0 %5864
        %5866 = vrot.lane.b32.xlu0 %v1878, 80
        %v5867 = vpop.permute.xlu0 %5866
        %5868 = vrot.lane.b32.xlu0 %v1881, 80
        %v5869 = vpop.permute.xlu0 %5868
        %5870 = vrot.lane.b32.xlu0 %v1886, 80
        %v5871 = vpop.permute.xlu0 %5870
        %5872 = vrot.lane.b32.xlu0 %v1889, 80
        %v5873 = vpop.permute.xlu0 %5872
        %5874 = vrot.lane.b32.xlu0 %v1894, 80
        %v5875 = vpop.permute.xlu0 %5874
        %5876 = vrot.lane.b32.xlu0 %v1897, 80
        %v5877 = vpop.permute.xlu0 %5876
        %5878 = vrot.lane.b32.xlu0 %v1902, 80
        %v5879 = vpop.permute.xlu0 %5878
        %5880 = vrot.lane.b32.xlu0 %v1905, 80
        %v5881 = vpop.permute.xlu0 %5880
        %5882 = vrot.lane.b32.xlu0 %v1910, 80
        %v5883 = vpop.permute.xlu0 %5882
        %5884 = vrot.lane.b32.xlu0 %v1913, 80
        %v5885 = vpop.permute.xlu0 %5884
        %5886 = vrot.lane.b32.xlu0 %v1918, 80
        %v5887 = vpop.permute.xlu0 %5886
        %5888 = vrot.lane.b32.xlu0 %v1921, 80
        %v5889 = vpop.permute.xlu0 %5888
        %5890 = vrot.lane.b32.xlu0 %v1926, 80
        %v5891 = vpop.permute.xlu0 %5890
        %5892 = vrot.lane.b32.xlu0 %v1929, 80
        %v5893 = vpop.permute.xlu0 %5892
        %5894 = vrot.lane.b32.xlu0 %v1934, 80
        %v5895 = vpop.permute.xlu0 %5894
        %5896 = vrot.lane.b32.xlu0 %v1937, 80
        %v5897 = vpop.permute.xlu0 %5896
        %5898 = vrot.lane.b32.xlu0 %v1942, 80
        %v5899 = vpop.permute.xlu0 %5898
        %5900 = vrot.lane.b32.xlu0 %v1945, 80
        %v5901 = vpop.permute.xlu0 %5900
        %5902 = vrot.lane.b32.xlu0 %v1950, 80
        %v5903 = vpop.permute.xlu0 %5902
        %5904 = vrot.lane.b32.xlu0 %v1953, 80
        %v5905 = vpop.permute.xlu0 %5904
        %5906 = vrot.lane.b32.xlu0 %v1958, 80
        %v5907 = vpop.permute.xlu0 %5906
        %5908 = vrot.lane.b32.xlu0 %v1961, 80
        %v5909 = vpop.permute.xlu0 %5908
        %5910 = vrot.lane.b32.xlu0 %v1966, 80
        %v5911 = vpop.permute.xlu0 %5910
        %5912 = vrot.lane.b32.xlu0 %v1969, 80
        %v5913 = vpop.permute.xlu0 %5912
        %5914 = vrot.lane.b32.xlu0 %v1974, 80
        %v5915 = vpop.permute.xlu0 %5914
        %5916 = vrot.lane.b32.xlu0 %v1977, 80
        %v5917 = vpop.permute.xlu0 %5916
        %5918 = vrot.lane.b32.xlu0 %v1982, 80
        %v5919 = vpop.permute.xlu0 %5918
        %5920 = vrot.lane.b32.xlu0 %v1985, 80
        %v5921 = vpop.permute.xlu0 %5920
        %5922 = vrot.lane.b32.xlu0 %v1990, 80
        %v5923 = vpop.permute.xlu0 %5922
        %5924 = vrot.lane.b32.xlu0 %v1993, 80
        %v5925 = vpop.permute.xlu0 %5924
        %5926 = vrot.lane.b32.xlu0 %v1998, 80
        %v5927 = vpop.permute.xlu0 %5926
        %5928 = vrot.lane.b32.xlu0 %v2001, 80
        %v5929 = vpop.permute.xlu0 %5928
        %5930 = vrot.lane.b32.xlu0 %v2006, 80
        %v5931 = vpop.permute.xlu0 %5930
        %5932 = vrot.lane.b32.xlu0 %v2009, 80
        %v5933 = vpop.permute.xlu0 %5932
        %5934 = vrot.lane.b32.xlu0 %v2014, 80
        %v5935 = vpop.permute.xlu0 %5934
        %5936 = vrot.lane.b32.xlu0 %v2017, 80
        %v5937 = vpop.permute.xlu0 %5936
        %5938 = vrot.lane.b32.xlu0 %v2022, 80
        %v5939 = vpop.permute.xlu0 %5938
        %5940 = vrot.lane.b32.xlu0 %v2025, 80
        %v5941 = vpop.permute.xlu0 %5940
        %5942 = vrot.lane.b32.xlu0 %v2030, 80
        %v5943 = vpop.permute.xlu0 %5942
        %5944 = vrot.lane.b32.xlu0 %v2033, 80
        %v5945 = vpop.permute.xlu0 %5944
        %5946 = vrot.lane.b32.xlu0 %v2038, 80
        %v5947 = vpop.permute.xlu0 %5946
        %5948 = vrot.lane.b32.xlu0 %v2041, 80
        %v5949 = vpop.permute.xlu0 %5948
        %5950 = vrot.lane.b32.xlu0 %v2046, 80
        %v5951 = vpop.permute.xlu0 %5950
        %5952 = vrot.lane.b32.xlu0 %v2049, 80
        %v5953 = vpop.permute.xlu0 %5952
        %5954 = vrot.lane.b32.xlu0 %v2054, 80
        %v5955 = vpop.permute.xlu0 %5954
        %5956 = vrot.lane.b32.xlu0 %v2057, 80
        %v5957 = vpop.permute.xlu0 %5956
        %5958 = vrot.lane.b32.xlu0 %v2062, 80
        %v5959 = vpop.permute.xlu0 %5958
        %5960 = vrot.lane.b32.xlu0 %v2065, 80
        %v5961 = vpop.permute.xlu0 %5960
        %5962 = vrot.lane.b32.xlu0 %v2070, 80
        %v5963 = vpop.permute.xlu0 %5962
        %5964 = vrot.lane.b32.xlu0 %v2073, 80
        %v5965 = vpop.permute.xlu0 %5964
        %5966 = vrot.lane.b32.xlu0 %v2078, 80
        %v5967 = vpop.permute.xlu0 %5966
        %5968 = vrot.lane.b32.xlu0 %v2081, 80
        %v5969 = vpop.permute.xlu0 %5968
        %5970 = vrot.lane.b32.xlu0 %v2086, 80
        %v5971 = vpop.permute.xlu0 %5970
        %5972 = vrot.lane.b32.xlu0 %v2089, 80
        %v5973 = vpop.permute.xlu0 %5972
        %5974 = vrot.lane.b32.xlu0 %v2094, 80
        %v5975 = vpop.permute.xlu0 %5974
        %5976 = vrot.lane.b32.xlu0 %v2097, 80
        %v5977 = vpop.permute.xlu0 %5976
        %5978 = vrot.lane.b32.xlu0 %v2102, 80
        %v5979 = vpop.permute.xlu0 %5978
        %5980 = vrot.lane.b32.xlu0 %v2105, 80
        %v5981 = vpop.permute.xlu0 %5980
        %5982 = vrot.lane.b32.xlu0 %v2110, 80
        %v5983 = vpop.permute.xlu0 %5982
        %5984 = vrot.lane.b32.xlu0 %v2113, 80
        %v5985 = vpop.permute.xlu0 %5984
        %5986 = vrot.lane.b32.xlu0 %v2118, 80
        %v5987 = vpop.permute.xlu0 %5986
        %5988 = vrot.lane.b32.xlu0 %v2121, 80
        %v5989 = vpop.permute.xlu0 %5988
        %5990 = vrot.lane.b32.xlu0 %v2126, 80
        %v5991 = vpop.permute.xlu0 %5990
        %5992 = vrot.lane.b32.xlu0 %v2129, 80
        %v5993 = vpop.permute.xlu0 %5992
        %5994 = vrot.lane.b32.xlu0 %v2134, 80
        %v5995 = vpop.permute.xlu0 %5994
        %5996 = vrot.lane.b32.xlu0 %v2137, 80
        %v5997 = vpop.permute.xlu0 %5996
        %5998 = vrot.lane.b32.xlu0 %v2142, 80
        %v5999 = vpop.permute.xlu0 %5998
        %6000 = vrot.lane.b32.xlu0 %v2145, 80
        %v6001 = vpop.permute.xlu0 %6000
        %6002 = vrot.lane.b32.xlu0 %v2150, 80
        %v6003 = vpop.permute.xlu0 %6002
        %6004 = vrot.lane.b32.xlu0 %v2153, 80
        %v6005 = vpop.permute.xlu0 %6004
        %6006 = vrot.lane.b32.xlu0 %v2158, 80
        %v6007 = vpop.permute.xlu0 %6006
        %6008 = vrot.lane.b32.xlu0 %v2161, 80
        %v6009 = vpop.permute.xlu0 %6008
        %6010 = vrot.lane.b32.xlu0 %v2166, 80
        %v6011 = vpop.permute.xlu0 %6010
        %6012 = vrot.lane.b32.xlu0 %v2169, 80
        %v6013 = vpop.permute.xlu0 %6012
        %6014 = vrot.lane.b32.xlu0 %v2174, 80
        %v6015 = vpop.permute.xlu0 %6014
        %6016 = vrot.lane.b32.xlu0 %v2177, 80
        %v6017 = vpop.permute.xlu0 %6016
        %6018 = vrot.lane.b32.xlu0 %v2182, 80
        %v6019 = vpop.permute.xlu0 %6018
        %6020 = vrot.lane.b32.xlu0 %v2185, 80
        %v6021 = vpop.permute.xlu0 %6020
        %6022 = vrot.lane.b32.xlu0 %v2190, 80
        %v6023 = vpop.permute.xlu0 %6022
        %6024 = vrot.lane.b32.xlu0 %v2193, 80
        %v6025 = vpop.permute.xlu0 %6024
        %6026 = vrot.lane.b32.xlu0 %v2198, 80
        %v6027 = vpop.permute.xlu0 %6026
        %6028 = vrot.lane.b32.xlu0 %v2201, 80
        %v6029 = vpop.permute.xlu0 %6028
        %6030 = vrot.lane.b32.xlu0 %v2206, 80
        %v6031 = vpop.permute.xlu0 %6030
        %6032 = vrot.lane.b32.xlu0 %v2209, 80
        %v6033 = vpop.permute.xlu0 %6032
        %6034 = vrot.lane.b32.xlu0 %v2214, 80
        %v6035 = vpop.permute.xlu0 %6034
        %6036 = vrot.lane.b32.xlu0 %v2217, 80
        %v6037 = vpop.permute.xlu0 %6036
        %6038 = vrot.lane.b32.xlu0 %v2222, 80
        %v6039 = vpop.permute.xlu0 %6038
        %6040 = vrot.lane.b32.xlu0 %v2225, 80
        %v6041 = vpop.permute.xlu0 %6040
        %6042 = vrot.lane.b32.xlu0 %v2230, 80
        %v6043 = vpop.permute.xlu0 %6042
        %6044 = vrot.lane.b32.xlu0 %v2233, 80
        %v6045 = vpop.permute.xlu0 %6044
        %6046 = vrot.lane.b32.xlu0 %v2238, 80
        %v6047 = vpop.permute.xlu0 %6046
        %6048 = vrot.lane.b32.xlu0 %v2241, 80
        %v6049 = vpop.permute.xlu0 %6048
        %6050 = vrot.lane.b32.xlu0 %v2246, 80
        %v6051 = vpop.permute.xlu0 %6050
        %6052 = vrot.lane.b32.xlu0 %v2249, 80
        %v6053 = vpop.permute.xlu0 %6052
        %6054 = vrot.lane.b32.xlu0 %v2254, 80
        %v6055 = vpop.permute.xlu0 %6054
        %6056 = vrot.lane.b32.xlu0 %v2257, 80
        %v6057 = vpop.permute.xlu0 %6056
        %6058 = vrot.lane.b32.xlu0 %v2262, 80
        %v6059 = vpop.permute.xlu0 %6058
        %6060 = vrot.lane.b32.xlu0 %v2265, 80
        %v6061 = vpop.permute.xlu0 %6060
        %6062 = vrot.lane.b32.xlu0 %v2270, 80
        %v6063 = vpop.permute.xlu0 %6062
        %6064 = vrot.lane.b32.xlu0 %v2273, 80
        %v6065 = vpop.permute.xlu0 %6064
        %6066 = vrot.lane.b32.xlu0 %v2278, 80
        %v6067 = vpop.permute.xlu0 %6066
        %6068 = vrot.lane.b32.xlu0 %v2281, 80
        %v6069 = vpop.permute.xlu0 %6068
        %6070 = vrot.lane.b32.xlu0 %v2286, 80
        %v6071 = vpop.permute.xlu0 %6070
        %6072 = vrot.lane.b32.xlu0 %v2289, 80
        %v6073 = vpop.permute.xlu0 %6072
        %6074 = vrot.lane.b32.xlu0 %v2294, 80
        %v6075 = vpop.permute.xlu0 %6074
        %6076 = vrot.lane.b32.xlu0 %v2297, 80
        %v6077 = vpop.permute.xlu0 %6076
        %6078 = vrot.lane.b32.xlu0 %v2302, 80
        %v6079 = vpop.permute.xlu0 %6078
        %6080 = vrot.lane.b32.xlu0 %v2305, 80
        %v6081 = vpop.permute.xlu0 %6080
        %6082 = vrot.lane.b32.xlu0 %v2310, 80
        %v6083 = vpop.permute.xlu0 %6082
        %6084 = vrot.lane.b32.xlu0 %v2313, 80
        %v6085 = vpop.permute.xlu0 %6084
        %vm6230 = vcmask 261120
        %v6231 = vsel %vm6230, %v4503, %v4935
        %v6232 = vsel %vm6230, %v4505, %v4937
        %v6233 = vsel %vm6230, %v4507, %v4939
        %v6234 = vsel %vm6230, %v4509, %v4941
        %v6235 = vsel %vm6230, %v4511, %v4943
        %v6236 = vsel %vm6230, %v4513, %v4945
        %v6237 = vsel %vm6230, %v4515, %v4947
        %v6238 = vsel %vm6230, %v4517, %v4949
        %v6239 = vsel %vm6230, %v4519, %v4951
        %v6240 = vsel %vm6230, %v4521, %v4953
        %v6241 = vsel %vm6230, %v4523, %v4955
        %v6242 = vsel %vm6230, %v4525, %v4957
        %v6243 = vsel %vm6230, %v4527, %v4959
        %v6244 = vsel %vm6230, %v4529, %v4961
        %v6245 = vsel %vm6230, %v4531, %v4963
        %v6246 = vsel %vm6230, %v4533, %v4965
        %v6247 = vsel %vm6230, %v4535, %v4967
        %v6248 = vsel %vm6230, %v4537, %v4969
        %v6249 = vsel %vm6230, %v4539, %v4971
        %v6250 = vsel %vm6230, %v4541, %v4973
        %v6251 = vsel %vm6230, %v4543, %v4975
        %v6252 = vsel %vm6230, %v4545, %v4977
        %v6253 = vsel %vm6230, %v4547, %v4979
        %v6254 = vsel %vm6230, %v4549, %v4981
        %v6255 = vsel %vm6230, %v4551, %v4983
        %v6256 = vsel %vm6230, %v4553, %v4985
        %v6257 = vsel %vm6230, %v4555, %v4987
        %v6258 = vsel %vm6230, %v4557, %v4989
        %v6259 = vsel %vm6230, %v4559, %v4991
        %v6260 = vsel %vm6230, %v4561, %v4993
        %v6261 = vsel %vm6230, %v4563, %v4995
        %v6262 = vsel %vm6230, %v4565, %v4997
        %v6263 = vsel %vm6230, %v4567, %v4999
        %v6264 = vsel %vm6230, %v4569, %v5001
        %v6265 = vsel %vm6230, %v4571, %v5003
        %v6266 = vsel %vm6230, %v4573, %v5005
        %v6267 = vsel %vm6230, %v4575, %v5007
        %v6268 = vsel %vm6230, %v4577, %v5009
        %v6269 = vsel %vm6230, %v4579, %v5011
        %v6270 = vsel %vm6230, %v4581, %v5013
        %v6271 = vsel %vm6230, %v4583, %v5015
        %v6272 = vsel %vm6230, %v4585, %v5017
        %v6273 = vsel %vm6230, %v4587, %v5019
        %v6274 = vsel %vm6230, %v4589, %v5021
        %v6275 = vsel %vm6230, %v4591, %v5023
        %v6276 = vsel %vm6230, %v4593, %v5025
        %v6277 = vsel %vm6230, %v4595, %v5027
        %v6278 = vsel %vm6230, %v4597, %v5029
        %v6279 = vsel %vm6230, %v4599, %v5031
        %v6280 = vsel %vm6230, %v4601, %v5033
        %v6281 = vsel %vm6230, %v4603, %v5035
        %v6282 = vsel %vm6230, %v4605, %v5037
        %v6283 = vsel %vm6230, %v4607, %v5039
        %v6284 = vsel %vm6230, %v4609, %v5041
        %v6285 = vsel %vm6230, %v4611, %v5043
        %v6286 = vsel %vm6230, %v4613, %v5045
        %v6287 = vsel %vm6230, %v4615, %v5047
        %v6288 = vsel %vm6230, %v4617, %v5049
        %v6289 = vsel %vm6230, %v4619, %v5051
        %v6290 = vsel %vm6230, %v4621, %v5053
        %v6291 = vsel %vm6230, %v4623, %v5055
        %v6292 = vsel %vm6230, %v4625, %v5057
        %v6293 = vsel %vm6230, %v4627, %v5059
        %v6294 = vsel %vm6230, %v4629, %v5061
        %v6295 = vsel %vm6230, %v4631, %v5063
        %v6296 = vsel %vm6230, %v4633, %v5065
        %v6297 = vsel %vm6230, %v4635, %v5067
        %v6298 = vsel %vm6230, %v4637, %v5069
        %v6299 = vsel %vm6230, %v4639, %v5071
        %v6300 = vsel %vm6230, %v4641, %v5073
        %v6301 = vsel %vm6230, %v4643, %v5075
        %v6302 = vsel %vm6230, %v4645, %v5077
        %v6303 = vsel %vm6230, %v4647, %v5079
        %v6304 = vsel %vm6230, %v4649, %v5081
        %v6305 = vsel %vm6230, %v4651, %v5083
        %v6306 = vsel %vm6230, %v4653, %v5085
        %v6307 = vsel %vm6230, %v4655, %v5087
        %v6308 = vsel %vm6230, %v4657, %v5089
        %v6309 = vsel %vm6230, %v4659, %v5091
        %v6310 = vsel %vm6230, %v4661, %v5093
        %v6311 = vsel %vm6230, %v4663, %v5095
        %v6312 = vsel %vm6230, %v4665, %v5097
        %v6313 = vsel %vm6230, %v4667, %v5099
        %v6314 = vsel %vm6230, %v4669, %v5101
        %v6315 = vsel %vm6230, %v4671, %v5103
        %v6316 = vsel %vm6230, %v4673, %v5105
        %v6317 = vsel %vm6230, %v4675, %v5107
        %v6318 = vsel %vm6230, %v4677, %v5109
        %v6319 = vsel %vm6230, %v4679, %v5111
        %v6320 = vsel %vm6230, %v4681, %v5113
        %v6321 = vsel %vm6230, %v4683, %v5115
        %v6322 = vsel %vm6230, %v4685, %v5117
        %v6323 = vsel %vm6230, %v4687, %v5119
        %v6324 = vsel %vm6230, %v4689, %v5121
        %v6325 = vsel %vm6230, %v4691, %v5123
        %v6326 = vsel %vm6230, %v4693, %v5125
        %v6327 = vsel %vm6230, %v4695, %v5127
        %v6328 = vsel %vm6230, %v4697, %v5129
        %v6329 = vsel %vm6230, %v4699, %v5131
        %v6330 = vsel %vm6230, %v4701, %v5133
        %v6331 = vsel %vm6230, %v4703, %v5135
        %v6332 = vsel %vm6230, %v4705, %v5137
        %v6333 = vsel %vm6230, %v4707, %v5139
        %v6334 = vsel %vm6230, %v4709, %v5141
        %v6335 = vsel %vm6230, %v4711, %v5143
        %v6336 = vsel %vm6230, %v4713, %v5145
        %v6337 = vsel %vm6230, %v4715, %v5147
        %v6338 = vsel %vm6230, %v4717, %v5149
        %v6339 = vsel %vm6230, %v4719, %v5151
        %v6340 = vsel %vm6230, %v4721, %v5153
        %v6341 = vsel %vm6230, %v4723, %v5155
        %v6342 = vsel %vm6230, %v4725, %v5157
        %v6343 = vsel %vm6230, %v4727, %v5159
        %v6344 = vsel %vm6230, %v4729, %v5161
        %v6345 = vsel %vm6230, %v4731, %v5163
        %v6346 = vsel %vm6230, %v4733, %v5165
        %v6347 = vsel %vm6230, %v4735, %v5167
        %v6348 = vsel %vm6230, %v4737, %v5169
        %v6349 = vsel %vm6230, %v4739, %v5171
        %v6350 = vsel %vm6230, %v4741, %v5173
        %v6351 = vsel %vm6230, %v4743, %v5175
        %v6352 = vsel %vm6230, %v4745, %v5177
        %v6353 = vsel %vm6230, %v4747, %v5179
        %v6354 = vsel %vm6230, %v4749, %v5181
        %v6355 = vsel %vm6230, %v4751, %v5183
        %v6356 = vsel %vm6230, %v4753, %v5185
        %v6357 = vsel %vm6230, %v4755, %v5187
        %v6358 = vsel %vm6230, %v4757, %v5189
        %v6359 = vsel %vm6230, %v4759, %v5191
        %v6360 = vsel %vm6230, %v4761, %v5193
        %v6361 = vsel %vm6230, %v4763, %v5195
        %v6362 = vsel %vm6230, %v4765, %v5197
        %v6363 = vsel %vm6230, %v4767, %v5199
        %v6364 = vsel %vm6230, %v4769, %v5201
        %v6365 = vsel %vm6230, %v4771, %v5203
        %v6366 = vsel %vm6230, %v4773, %v5205
        %v6367 = vsel %vm6230, %v4775, %v5207
        %v6368 = vsel %vm6230, %v4777, %v5209
        %v6369 = vsel %vm6230, %v4779, %v5211
        %v6370 = vsel %vm6230, %v4781, %v5213
        %v6371 = vsel %vm6230, %v4783, %v5215
        %v6372 = vsel %vm6230, %v4785, %v5217
        %v6373 = vsel %vm6230, %v4787, %v5219
        %v6374 = vsel %vm6230, %v4789, %v5221
        %vm6375 = vcmask 523264
        %v6376 = vsel %vm6375, %v6231, %v5367
        %v6377 = vsel %vm6375, %v6232, %v5369
        %v6378 = vsel %vm6375, %v6233, %v5371
        %v6379 = vsel %vm6375, %v6234, %v5373
        %v6380 = vsel %vm6375, %v6235, %v5375
        %v6381 = vsel %vm6375, %v6236, %v5377
        %v6382 = vsel %vm6375, %v6237, %v5379
        %v6383 = vsel %vm6375, %v6238, %v5381
        %v6384 = vsel %vm6375, %v6239, %v5383
        %v6385 = vsel %vm6375, %v6240, %v5385
        %v6386 = vsel %vm6375, %v6241, %v5387
        %v6387 = vsel %vm6375, %v6242, %v5389
        %v6388 = vsel %vm6375, %v6243, %v5391
        %v6389 = vsel %vm6375, %v6244, %v5393
        %v6390 = vsel %vm6375, %v6245, %v5395
        %v6391 = vsel %vm6375, %v6246, %v5397
        %v6392 = vsel %vm6375, %v6247, %v5399
        %v6393 = vsel %vm6375, %v6248, %v5401
        %v6394 = vsel %vm6375, %v6249, %v5403
        %v6395 = vsel %vm6375, %v6250, %v5405
        %v6396 = vsel %vm6375, %v6251, %v5407
        %v6397 = vsel %vm6375, %v6252, %v5409
        %v6398 = vsel %vm6375, %v6253, %v5411
        %v6399 = vsel %vm6375, %v6254, %v5413
        %v6400 = vsel %vm6375, %v6255, %v5415
        %v6401 = vsel %vm6375, %v6256, %v5417
        %v6402 = vsel %vm6375, %v6257, %v5419
        %v6403 = vsel %vm6375, %v6258, %v5421
        %v6404 = vsel %vm6375, %v6259, %v5423
        %v6405 = vsel %vm6375, %v6260, %v5425
        %v6406 = vsel %vm6375, %v6261, %v5427
        %v6407 = vsel %vm6375, %v6262, %v5429
        %v6408 = vsel %vm6375, %v6263, %v5431
        %v6409 = vsel %vm6375, %v6264, %v5433
        %v6410 = vsel %vm6375, %v6265, %v5435
        %v6411 = vsel %vm6375, %v6266, %v5437
        %v6412 = vsel %vm6375, %v6267, %v5439
        %v6413 = vsel %vm6375, %v6268, %v5441
        %v6414 = vsel %vm6375, %v6269, %v5443
        %v6415 = vsel %vm6375, %v6270, %v5445
        %v6416 = vsel %vm6375, %v6271, %v5447
        %v6417 = vsel %vm6375, %v6272, %v5449
        %v6418 = vsel %vm6375, %v6273, %v5451
        %v6419 = vsel %vm6375, %v6274, %v5453
        %v6420 = vsel %vm6375, %v6275, %v5455
        %v6421 = vsel %vm6375, %v6276, %v5457
        %v6422 = vsel %vm6375, %v6277, %v5459
        %v6423 = vsel %vm6375, %v6278, %v5461
        %v6424 = vsel %vm6375, %v6279, %v5463
        %v6425 = vsel %vm6375, %v6280, %v5465
        %v6426 = vsel %vm6375, %v6281, %v5467
        %v6427 = vsel %vm6375, %v6282, %v5469
        %v6428 = vsel %vm6375, %v6283, %v5471
        %v6429 = vsel %vm6375, %v6284, %v5473
        %v6430 = vsel %vm6375, %v6285, %v5475
        %v6431 = vsel %vm6375, %v6286, %v5477
        %v6432 = vsel %vm6375, %v6287, %v5479
        %v6433 = vsel %vm6375, %v6288, %v5481
        %v6434 = vsel %vm6375, %v6289, %v5483
        %v6435 = vsel %vm6375, %v6290, %v5485
        %v6436 = vsel %vm6375, %v6291, %v5487
        %v6437 = vsel %vm6375, %v6292, %v5489
        %v6438 = vsel %vm6375, %v6293, %v5491
        %v6439 = vsel %vm6375, %v6294, %v5493
        %v6440 = vsel %vm6375, %v6295, %v5495
        %v6441 = vsel %vm6375, %v6296, %v5497
        %v6442 = vsel %vm6375, %v6297, %v5499
        %v6443 = vsel %vm6375, %v6298, %v5501
        %v6444 = vsel %vm6375, %v6299, %v5503
        %v6445 = vsel %vm6375, %v6300, %v5505
        %v6446 = vsel %vm6375, %v6301, %v5507
        %v6447 = vsel %vm6375, %v6302, %v5509
        %v6448 = vsel %vm6375, %v6303, %v5511
        %v6449 = vsel %vm6375, %v6304, %v5513
        %v6450 = vsel %vm6375, %v6305, %v5515
        %v6451 = vsel %vm6375, %v6306, %v5517
        %v6452 = vsel %vm6375, %v6307, %v5519
        %v6453 = vsel %vm6375, %v6308, %v5521
        %v6454 = vsel %vm6375, %v6309, %v5523
        %v6455 = vsel %vm6375, %v6310, %v5525
        %v6456 = vsel %vm6375, %v6311, %v5527
        %v6457 = vsel %vm6375, %v6312, %v5529
        %v6458 = vsel %vm6375, %v6313, %v5531
        %v6459 = vsel %vm6375, %v6314, %v5533
        %v6460 = vsel %vm6375, %v6315, %v5535
        %v6461 = vsel %vm6375, %v6316, %v5537
        %v6462 = vsel %vm6375, %v6317, %v5539
        %v6463 = vsel %vm6375, %v6318, %v5541
        %v6464 = vsel %vm6375, %v6319, %v5543
        %v6465 = vsel %vm6375, %v6320, %v5545
        %v6466 = vsel %vm6375, %v6321, %v5547
        %v6467 = vsel %vm6375, %v6322, %v5549
        %v6468 = vsel %vm6375, %v6323, %v5551
        %v6469 = vsel %vm6375, %v6324, %v5553
        %v6470 = vsel %vm6375, %v6325, %v5555
        %v6471 = vsel %vm6375, %v6326, %v5557
        %v6472 = vsel %vm6375, %v6327, %v5559
        %v6473 = vsel %vm6375, %v6328, %v5561
        %v6474 = vsel %vm6375, %v6329, %v5563
        %v6475 = vsel %vm6375, %v6330, %v5565
        %v6476 = vsel %vm6375, %v6331, %v5567
        %v6477 = vsel %vm6375, %v6332, %v5569
        %v6478 = vsel %vm6375, %v6333, %v5571
        %v6479 = vsel %vm6375, %v6334, %v5573
        %v6480 = vsel %vm6375, %v6335, %v5575
        %v6481 = vsel %vm6375, %v6336, %v5577
        %v6482 = vsel %vm6375, %v6337, %v5579
        %v6483 = vsel %vm6375, %v6338, %v5581
        %v6484 = vsel %vm6375, %v6339, %v5583
        %v6485 = vsel %vm6375, %v6340, %v5585
        %v6486 = vsel %vm6375, %v6341, %v5587
        %v6487 = vsel %vm6375, %v6342, %v5589
        %v6488 = vsel %vm6375, %v6343, %v5591
        %v6489 = vsel %vm6375, %v6344, %v5593
        %v6490 = vsel %vm6375, %v6345, %v5595
        %v6491 = vsel %vm6375, %v6346, %v5597
        %v6492 = vsel %vm6375, %v6347, %v5599
        %v6493 = vsel %vm6375, %v6348, %v5601
        %v6494 = vsel %vm6375, %v6349, %v5603
        %v6495 = vsel %vm6375, %v6350, %v5605
        %v6496 = vsel %vm6375, %v6351, %v5607
        %v6497 = vsel %vm6375, %v6352, %v5609
        %v6498 = vsel %vm6375, %v6353, %v5611
        %v6499 = vsel %vm6375, %v6354, %v5613
        %v6500 = vsel %vm6375, %v6355, %v5615
        %v6501 = vsel %vm6375, %v6356, %v5617
        %v6502 = vsel %vm6375, %v6357, %v5619
        %v6503 = vsel %vm6375, %v6358, %v5621
        %v6504 = vsel %vm6375, %v6359, %v5623
        %v6505 = vsel %vm6375, %v6360, %v5625
        %v6506 = vsel %vm6375, %v6361, %v5627
        %v6507 = vsel %vm6375, %v6362, %v5629
        %v6508 = vsel %vm6375, %v6363, %v5631
        %v6509 = vsel %vm6375, %v6364, %v5633
        %v6510 = vsel %vm6375, %v6365, %v5635
        %v6511 = vsel %vm6375, %v6366, %v5637
        %v6512 = vsel %vm6375, %v6367, %v5639
        %v6513 = vsel %vm6375, %v6368, %v5641
        %v6514 = vsel %vm6375, %v6369, %v5643
        %v6515 = vsel %vm6375, %v6370, %v5645
        %v6516 = vsel %vm6375, %v6371, %v5647
        %v6517 = vsel %vm6375, %v6372, %v5649
        %v6518 = vsel %vm6375, %v6373, %v5651
        %v6519 = vsel %vm6375, %v6374, %v5653
        %vm6520 = vcmask 785408
        %v6521 = vsel %vm6520, %v6376, %v5799
        %v6522 = vsel %vm6520, %v6377, %v5801
        %v6523 = vsel %vm6520, %v6378, %v5803
        %v6524 = vsel %vm6520, %v6379, %v5805
        %v6525 = vsel %vm6520, %v6380, %v5807
        %v6526 = vsel %vm6520, %v6381, %v5809
        %v6527 = vsel %vm6520, %v6382, %v5811
        %v6528 = vsel %vm6520, %v6383, %v5813
        %v6529 = vsel %vm6520, %v6384, %v5815
        %v6530 = vsel %vm6520, %v6385, %v5817
        %v6531 = vsel %vm6520, %v6386, %v5819
        %v6532 = vsel %vm6520, %v6387, %v5821
        %v6533 = vsel %vm6520, %v6388, %v5823
        %v6534 = vsel %vm6520, %v6389, %v5825
        %v6535 = vsel %vm6520, %v6390, %v5827
        %v6536 = vsel %vm6520, %v6391, %v5829
        %v6537 = vsel %vm6520, %v6392, %v5831
        %v6538 = vsel %vm6520, %v6393, %v5833
        %v6539 = vsel %vm6520, %v6394, %v5835
        %v6540 = vsel %vm6520, %v6395, %v5837
        %v6541 = vsel %vm6520, %v6396, %v5839
        %v6542 = vsel %vm6520, %v6397, %v5841
        %v6543 = vsel %vm6520, %v6398, %v5843
        %v6544 = vsel %vm6520, %v6399, %v5845
        %v6545 = vsel %vm6520, %v6400, %v5847
        %v6546 = vsel %vm6520, %v6401, %v5849
        %v6547 = vsel %vm6520, %v6402, %v5851
        %v6548 = vsel %vm6520, %v6403, %v5853
        %v6549 = vsel %vm6520, %v6404, %v5855
        %v6550 = vsel %vm6520, %v6405, %v5857
        %v6551 = vsel %vm6520, %v6406, %v5859
        %v6552 = vsel %vm6520, %v6407, %v5861
        %v6553 = vsel %vm6520, %v6408, %v5863
        %v6554 = vsel %vm6520, %v6409, %v5865
        %v6555 = vsel %vm6520, %v6410, %v5867
        %v6556 = vsel %vm6520, %v6411, %v5869
        %v6557 = vsel %vm6520, %v6412, %v5871
        %v6558 = vsel %vm6520, %v6413, %v5873
        %v6559 = vsel %vm6520, %v6414, %v5875
        %v6560 = vsel %vm6520, %v6415, %v5877
        %v6561 = vsel %vm6520, %v6416, %v5879
        %v6562 = vsel %vm6520, %v6417, %v5881
        %v6563 = vsel %vm6520, %v6418, %v5883
        %v6564 = vsel %vm6520, %v6419, %v5885
        %v6565 = vsel %vm6520, %v6420, %v5887
        %v6566 = vsel %vm6520, %v6421, %v5889
        %v6567 = vsel %vm6520, %v6422, %v5891
        %v6568 = vsel %vm6520, %v6423, %v5893
        %v6569 = vsel %vm6520, %v6424, %v5895
        %v6570 = vsel %vm6520, %v6425, %v5897
        %v6571 = vsel %vm6520, %v6426, %v5899
        %v6572 = vsel %vm6520, %v6427, %v5901
        %v6573 = vsel %vm6520, %v6428, %v5903
        %v6574 = vsel %vm6520, %v6429, %v5905
        %v6575 = vsel %vm6520, %v6430, %v5907
        %v6576 = vsel %vm6520, %v6431, %v5909
        %v6577 = vsel %vm6520, %v6432, %v5911
        %v6578 = vsel %vm6520, %v6433, %v5913
        %v6579 = vsel %vm6520, %v6434, %v5915
        %v6580 = vsel %vm6520, %v6435, %v5917
        %v6581 = vsel %vm6520, %v6436, %v5919
        %v6582 = vsel %vm6520, %v6437, %v5921
        %v6583 = vsel %vm6520, %v6438, %v5923
        %v6584 = vsel %vm6520, %v6439, %v5925
        %v6585 = vsel %vm6520, %v6440, %v5927
        %v6586 = vsel %vm6520, %v6441, %v5929
        %v6587 = vsel %vm6520, %v6442, %v5931
        %v6588 = vsel %vm6520, %v6443, %v5933
        %v6589 = vsel %vm6520, %v6444, %v5935
        %v6590 = vsel %vm6520, %v6445, %v5937
        %v6591 = vsel %vm6520, %v6446, %v5939
        %v6592 = vsel %vm6520, %v6447, %v5941
        %v6593 = vsel %vm6520, %v6448, %v5943
        %v6594 = vsel %vm6520, %v6449, %v5945
        %v6595 = vsel %vm6520, %v6450, %v5947
        %v6596 = vsel %vm6520, %v6451, %v5949
        %v6597 = vsel %vm6520, %v6452, %v5951
        %v6598 = vsel %vm6520, %v6453, %v5953
        %v6599 = vsel %vm6520, %v6454, %v5955
        %v6600 = vsel %vm6520, %v6455, %v5957
        %v6601 = vsel %vm6520, %v6456, %v5959
        %v6602 = vsel %vm6520, %v6457, %v5961
        %v6603 = vsel %vm6520, %v6458, %v5963
        %v6604 = vsel %vm6520, %v6459, %v5965
        %v6605 = vsel %vm6520, %v6460, %v5967
        %v6606 = vsel %vm6520, %v6461, %v5969
        %v6607 = vsel %vm6520, %v6462, %v5971
        %v6608 = vsel %vm6520, %v6463, %v5973
        %v6609 = vsel %vm6520, %v6464, %v5975
        %v6610 = vsel %vm6520, %v6465, %v5977
        %v6611 = vsel %vm6520, %v6466, %v5979
        %v6612 = vsel %vm6520, %v6467, %v5981
        %v6613 = vsel %vm6520, %v6468, %v5983
        %v6614 = vsel %vm6520, %v6469, %v5985
        %v6615 = vsel %vm6520, %v6470, %v5987
        %v6616 = vsel %vm6520, %v6471, %v5989
        %v6617 = vsel %vm6520, %v6472, %v5991
        %v6618 = vsel %vm6520, %v6473, %v5993
        %v6619 = vsel %vm6520, %v6474, %v5995
        %v6620 = vsel %vm6520, %v6475, %v5997
        %v6621 = vsel %vm6520, %v6476, %v5999
        %v6622 = vsel %vm6520, %v6477, %v6001
        %v6623 = vsel %vm6520, %v6478, %v6003
        %v6624 = vsel %vm6520, %v6479, %v6005
        %v6625 = vsel %vm6520, %v6480, %v6007
        %v6626 = vsel %vm6520, %v6481, %v6009
        %v6627 = vsel %vm6520, %v6482, %v6011
        %v6628 = vsel %vm6520, %v6483, %v6013
        %v6629 = vsel %vm6520, %v6484, %v6015
        %v6630 = vsel %vm6520, %v6485, %v6017
        %v6631 = vsel %vm6520, %v6486, %v6019
        %v6632 = vsel %vm6520, %v6487, %v6021
        %v6633 = vsel %vm6520, %v6488, %v6023
        %v6634 = vsel %vm6520, %v6489, %v6025
        %v6635 = vsel %vm6520, %v6490, %v6027
        %v6636 = vsel %vm6520, %v6491, %v6029
        %v6637 = vsel %vm6520, %v6492, %v6031
        %v6638 = vsel %vm6520, %v6493, %v6033
        %v6639 = vsel %vm6520, %v6494, %v6035
        %v6640 = vsel %vm6520, %v6495, %v6037
        %v6641 = vsel %vm6520, %v6496, %v6039
        %v6642 = vsel %vm6520, %v6497, %v6041
        %v6643 = vsel %vm6520, %v6498, %v6043
        %v6644 = vsel %vm6520, %v6499, %v6045
        %v6645 = vsel %vm6520, %v6500, %v6047
        %v6646 = vsel %vm6520, %v6501, %v6049
        %v6647 = vsel %vm6520, %v6502, %v6051
        %v6648 = vsel %vm6520, %v6503, %v6053
        %v6649 = vsel %vm6520, %v6504, %v6055
        %v6650 = vsel %vm6520, %v6505, %v6057
        %v6651 = vsel %vm6520, %v6506, %v6059
        %v6652 = vsel %vm6520, %v6507, %v6061
        %v6653 = vsel %vm6520, %v6508, %v6063
        %v6654 = vsel %vm6520, %v6509, %v6065
        %v6655 = vsel %vm6520, %v6510, %v6067
        %v6656 = vsel %vm6520, %v6511, %v6069
        %v6657 = vsel %vm6520, %v6512, %v6071
        %v6658 = vsel %vm6520, %v6513, %v6073
        %v6659 = vsel %vm6520, %v6514, %v6075
        %v6660 = vsel %vm6520, %v6515, %v6077
        %v6661 = vsel %vm6520, %v6516, %v6079
        %v6662 = vsel %vm6520, %v6517, %v6081
        %v6663 = vsel %vm6520, %v6518, %v6083
        %v6664 = vsel %vm6520, %v6519, %v6085
        %v6665 = vmul.f32 %v3784, %v6521
        %v6666 = vmul.f32 %v3787, %v6522
        %v6667 = vmul.f32 %v3792, %v6523
        %v6668 = vmul.f32 %v3795, %v6524
        %v6669 = vmul.f32 %v3800, %v6525
        %v6670 = vmul.f32 %v3803, %v6526
        %v6671 = vmul.f32 %v3808, %v6527
        %v6672 = vmul.f32 %v3811, %v6528
        %v6673 = vmul.f32 %v3816, %v6529
        %v6674 = vmul.f32 %v3819, %v6530
        %v6675 = vmul.f32 %v3824, %v6531
        %v6676 = vmul.f32 %v3827, %v6532
        %v6677 = vmul.f32 %v3832, %v6533
        %v6678 = vmul.f32 %v3835, %v6534
        %v6679 = vmul.f32 %v3840, %v6535
        %v6680 = vmul.f32 %v3843, %v6536
        %v6681 = vmul.f32 %v3848, %v6537
        %v6682 = vmul.f32 %v3851, %v6538
        %v6683 = vmul.f32 %v3856, %v6539
        %v6684 = vmul.f32 %v3859, %v6540
        %v6685 = vmul.f32 %v3864, %v6541
        %v6686 = vmul.f32 %v3867, %v6542
        %v6687 = vmul.f32 %v3872, %v6543
        %v6688 = vmul.f32 %v3875, %v6544
        %v6689 = vmul.f32 %v3880, %v6545
        %v6690 = vmul.f32 %v3883, %v6546
        %v6691 = vmul.f32 %v3888, %v6547
        %v6692 = vmul.f32 %v3891, %v6548
        %v6693 = vmul.f32 %v3896, %v6549
        %v6694 = vmul.f32 %v3899, %v6550
        %v6695 = vmul.f32 %v3904, %v6551
        %v6696 = vmul.f32 %v3907, %v6552
        %v6697 = vmul.f32 %v3912, %v6553
        %v6698 = vmul.f32 %v3915, %v6554
        %v6699 = vmul.f32 %v3920, %v6555
        %v6700 = vmul.f32 %v3923, %v6556
        %v6701 = vmul.f32 %v3928, %v6557
        %v6702 = vmul.f32 %v3931, %v6558
        %v6703 = vmul.f32 %v3936, %v6559
        %v6704 = vmul.f32 %v3939, %v6560
        %v6705 = vmul.f32 %v3944, %v6561
        %v6706 = vmul.f32 %v3947, %v6562
        %v6707 = vmul.f32 %v3952, %v6563
        %v6708 = vmul.f32 %v3955, %v6564
        %v6709 = vmul.f32 %v3960, %v6565
        %v6710 = vmul.f32 %v3963, %v6566
        %v6711 = vmul.f32 %v3968, %v6567
        %v6712 = vmul.f32 %v3971, %v6568
        %v6713 = vmul.f32 %v3976, %v6569
        %v6714 = vmul.f32 %v3979, %v6570
        %v6715 = vmul.f32 %v3984, %v6571
        %v6716 = vmul.f32 %v3987, %v6572
        %v6717 = vmul.f32 %v3992, %v6573
        %v6718 = vmul.f32 %v3995, %v6574
        %v6719 = vmul.f32 %v4000, %v6575
        %v6720 = vmul.f32 %v4003, %v6576
        %v6721 = vmul.f32 %v4008, %v6577
        %v6722 = vmul.f32 %v4011, %v6578
        %v6723 = vmul.f32 %v4016, %v6579
        %v6724 = vmul.f32 %v4019, %v6580
        %v6725 = vmul.f32 %v4024, %v6581
        %v6726 = vmul.f32 %v4027, %v6582
        %v6727 = vmul.f32 %v4032, %v6583
        %v6728 = vmul.f32 %v4035, %v6584
        %v6729 = vmul.f32 %v4040, %v6585
        %v6730 = vmul.f32 %v4043, %v6586
        %v6731 = vmul.f32 %v4048, %v6587
        %v6732 = vmul.f32 %v4051, %v6588
        %v6733 = vmul.f32 %v4056, %v6589
        %v6734 = vmul.f32 %v4059, %v6590
        %v6735 = vmul.f32 %v4064, %v6591
        %v6736 = vmul.f32 %v4067, %v6592
        %v6737 = vmul.f32 %v4072, %v6593
        %v6738 = vmul.f32 %v4075, %v6594
        %v6739 = vmul.f32 %v4080, %v6595
        %v6740 = vmul.f32 %v4083, %v6596
        %v6741 = vmul.f32 %v4088, %v6597
        %v6742 = vmul.f32 %v4091, %v6598
        %v6743 = vmul.f32 %v4096, %v6599
        %v6744 = vmul.f32 %v4099, %v6600
        %v6745 = vmul.f32 %v4104, %v6601
        %v6746 = vmul.f32 %v4107, %v6602
        %v6747 = vmul.f32 %v4112, %v6603
        %v6748 = vmul.f32 %v4115, %v6604
        %v6749 = vmul.f32 %v4120, %v6605
        %v6750 = vmul.f32 %v4123, %v6606
        %v6751 = vmul.f32 %v4128, %v6607
        %v6752 = vmul.f32 %v4131, %v6608
        %v6753 = vmul.f32 %v4136, %v6609
        %v6754 = vmul.f32 %v4139, %v6610
        %v6755 = vmul.f32 %v4144, %v6611
        %v6756 = vmul.f32 %v4147, %v6612
        %v6757 = vmul.f32 %v4152, %v6613
        %v6758 = vmul.f32 %v4155, %v6614
        %v6759 = vmul.f32 %v4160, %v6615
        %v6760 = vmul.f32 %v4163, %v6616
        %v6761 = vmul.f32 %v4168, %v6617
        %v6762 = vmul.f32 %v4171, %v6618
        %v6763 = vmul.f32 %v4176, %v6619
        %v6764 = vmul.f32 %v4179, %v6620
        %v6765 = vmul.f32 %v4184, %v6621
        %v6766 = vmul.f32 %v4187, %v6622
        %v6767 = vmul.f32 %v4192, %v6623
        %v6768 = vmul.f32 %v4195, %v6624
        %v6769 = vmul.f32 %v4200, %v6625
        %v6770 = vmul.f32 %v4203, %v6626
        %v6771 = vmul.f32 %v4208, %v6627
        %v6772 = vmul.f32 %v4211, %v6628
        %v6773 = vmul.f32 %v4216, %v6629
        %v6774 = vmul.f32 %v4219, %v6630
        %v6775 = vmul.f32 %v4224, %v6631
        %v6776 = vmul.f32 %v4227, %v6632
        %v6777 = vmul.f32 %v4232, %v6633
        %v6778 = vmul.f32 %v4235, %v6634
        %v6779 = vmul.f32 %v4240, %v6635
        %v6780 = vmul.f32 %v4243, %v6636
        %v6781 = vmul.f32 %v4248, %v6637
        %v6782 = vmul.f32 %v4251, %v6638
        %v6783 = vmul.f32 %v4256, %v6639
        %v6784 = vmul.f32 %v4259, %v6640
        %v6785 = vmul.f32 %v4264, %v6641
        %v6786 = vmul.f32 %v4267, %v6642
        %v6787 = vmul.f32 %v4272, %v6643
        %v6788 = vmul.f32 %v4275, %v6644
        %v6789 = vmul.f32 %v4280, %v6645
        %v6790 = vmul.f32 %v4283, %v6646
        %v6791 = vmul.f32 %v4288, %v6647
        %v6792 = vmul.f32 %v4291, %v6648
        %v6793 = vmul.f32 %v4296, %v6649
        %v6794 = vmul.f32 %v4299, %v6650
        %v6795 = vmul.f32 %v4304, %v6651
        %v6796 = vmul.f32 %v4307, %v6652
        %v6797 = vmul.f32 %v4312, %v6653
        %v6798 = vmul.f32 %v4315, %v6654
        %v6799 = vmul.f32 %v4320, %v6655
        %v6800 = vmul.f32 %v4323, %v6656
        %v6801 = vmul.f32 %v4328, %v6657
        %v6802 = vmul.f32 %v4331, %v6658
        %v6803 = vmul.f32 %v4336, %v6659
        %v6804 = vmul.f32 %v4339, %v6660
        %v6805 = vmul.f32 %v4344, %v6661
        %v6806 = vmul.f32 %v4347, %v6662
        %v6807 = vmul.f32 %v4352, %v6663
        %v6808 = vmul.f32 %v4355, %v6664
        %v6809 = vadd.f32 %v6665, %v6681
        %v6810 = vadd.f32 %v6809, %v6697
        %v6811 = vadd.f32 %v6810, %v6713
        %v6812 = vadd.f32 %v6811, %v6729
        %v6813 = vadd.f32 %v6812, %v6745
        %v6814 = vadd.f32 %v6813, %v6761
        %v6815 = vadd.f32 %v6814, %v6777
        %v6816 = vadd.f32 %v6815, %v6793
        %v6817 = vadd.f32 %v6666, %v6682
        %v6818 = vadd.f32 %v6817, %v6698
        %v6819 = vadd.f32 %v6818, %v6714
        %v6820 = vadd.f32 %v6819, %v6730
        %v6821 = vadd.f32 %v6820, %v6746
        %v6822 = vadd.f32 %v6821, %v6762
        %v6823 = vadd.f32 %v6822, %v6778
        %v6824 = vadd.f32 %v6823, %v6794
        %v6825 = vadd.f32 %v6667, %v6683
        %v6826 = vadd.f32 %v6825, %v6699
        %v6827 = vadd.f32 %v6826, %v6715
        %v6828 = vadd.f32 %v6827, %v6731
        %v6829 = vadd.f32 %v6828, %v6747
        %v6830 = vadd.f32 %v6829, %v6763
        %v6831 = vadd.f32 %v6830, %v6779
        %v6832 = vadd.f32 %v6831, %v6795
        %v6833 = vadd.f32 %v6668, %v6684
        %v6834 = vadd.f32 %v6833, %v6700
        %v6835 = vadd.f32 %v6834, %v6716
        %v6836 = vadd.f32 %v6835, %v6732
        %v6837 = vadd.f32 %v6836, %v6748
        %v6838 = vadd.f32 %v6837, %v6764
        %v6839 = vadd.f32 %v6838, %v6780
        %v6840 = vadd.f32 %v6839, %v6796
        %v6841 = vadd.f32 %v6669, %v6685
        %v6842 = vadd.f32 %v6841, %v6701
        %v6843 = vadd.f32 %v6842, %v6717
        %v6844 = vadd.f32 %v6843, %v6733
        %v6845 = vadd.f32 %v6844, %v6749
        %v6846 = vadd.f32 %v6845, %v6765
        %v6847 = vadd.f32 %v6846, %v6781
        %v6848 = vadd.f32 %v6847, %v6797
        %v6849 = vadd.f32 %v6670, %v6686
        %v6850 = vadd.f32 %v6849, %v6702
        %v6851 = vadd.f32 %v6850, %v6718
        %v6852 = vadd.f32 %v6851, %v6734
        %v6853 = vadd.f32 %v6852, %v6750
        %v6854 = vadd.f32 %v6853, %v6766
        %v6855 = vadd.f32 %v6854, %v6782
        %v6856 = vadd.f32 %v6855, %v6798
        %v6857 = vadd.f32 %v6671, %v6687
        %v6858 = vadd.f32 %v6857, %v6703
        %v6859 = vadd.f32 %v6858, %v6719
        %v6860 = vadd.f32 %v6859, %v6735
        %v6861 = vadd.f32 %v6860, %v6751
        %v6862 = vadd.f32 %v6861, %v6767
        %v6863 = vadd.f32 %v6862, %v6783
        %v6864 = vadd.f32 %v6863, %v6799
        %v6865 = vadd.f32 %v6672, %v6688
        %v6866 = vadd.f32 %v6865, %v6704
        %v6867 = vadd.f32 %v6866, %v6720
        %v6868 = vadd.f32 %v6867, %v6736
        %v6869 = vadd.f32 %v6868, %v6752
        %v6870 = vadd.f32 %v6869, %v6768
        %v6871 = vadd.f32 %v6870, %v6784
        %v6872 = vadd.f32 %v6871, %v6800
        %v6873 = vadd.f32 %v6673, %v6689
        %v6874 = vadd.f32 %v6873, %v6705
        %v6875 = vadd.f32 %v6874, %v6721
        %v6876 = vadd.f32 %v6875, %v6737
        %v6877 = vadd.f32 %v6876, %v6753
        %v6878 = vadd.f32 %v6877, %v6769
        %v6879 = vadd.f32 %v6878, %v6785
        %v6880 = vadd.f32 %v6879, %v6801
        %v6881 = vadd.f32 %v6674, %v6690
        %v6882 = vadd.f32 %v6881, %v6706
        %v6883 = vadd.f32 %v6882, %v6722
        %v6884 = vadd.f32 %v6883, %v6738
        %v6885 = vadd.f32 %v6884, %v6754
        %v6886 = vadd.f32 %v6885, %v6770
        %v6887 = vadd.f32 %v6886, %v6786
        %v6888 = vadd.f32 %v6887, %v6802
        %v6889 = vadd.f32 %v6675, %v6691
        %v6890 = vadd.f32 %v6889, %v6707
        %v6891 = vadd.f32 %v6890, %v6723
        %v6892 = vadd.f32 %v6891, %v6739
        %v6893 = vadd.f32 %v6892, %v6755
        %v6894 = vadd.f32 %v6893, %v6771
        %v6895 = vadd.f32 %v6894, %v6787
        %v6896 = vadd.f32 %v6895, %v6803
        %v6897 = vadd.f32 %v6676, %v6692
        %v6898 = vadd.f32 %v6897, %v6708
        %v6899 = vadd.f32 %v6898, %v6724
        %v6900 = vadd.f32 %v6899, %v6740
        %v6901 = vadd.f32 %v6900, %v6756
        %v6902 = vadd.f32 %v6901, %v6772
        %v6903 = vadd.f32 %v6902, %v6788
        %v6904 = vadd.f32 %v6903, %v6804
        %v6905 = vadd.f32 %v6677, %v6693
        %v6906 = vadd.f32 %v6905, %v6709
        %v6907 = vadd.f32 %v6906, %v6725
        %v6908 = vadd.f32 %v6907, %v6741
        %v6909 = vadd.f32 %v6908, %v6757
        %v6910 = vadd.f32 %v6909, %v6773
        %v6911 = vadd.f32 %v6910, %v6789
        %v6912 = vadd.f32 %v6911, %v6805
        %v6913 = vadd.f32 %v6678, %v6694
        %v6914 = vadd.f32 %v6913, %v6710
        %v6915 = vadd.f32 %v6914, %v6726
        %v6916 = vadd.f32 %v6915, %v6742
        %v6917 = vadd.f32 %v6916, %v6758
        %v6918 = vadd.f32 %v6917, %v6774
        %v6919 = vadd.f32 %v6918, %v6790
        %v6920 = vadd.f32 %v6919, %v6806
        %v6921 = vadd.f32 %v6679, %v6695
        %v6922 = vadd.f32 %v6921, %v6711
        %v6923 = vadd.f32 %v6922, %v6727
        %v6924 = vadd.f32 %v6923, %v6743
        %v6925 = vadd.f32 %v6924, %v6759
        %v6926 = vadd.f32 %v6925, %v6775
        %v6927 = vadd.f32 %v6926, %v6791
        %v6928 = vadd.f32 %v6927, %v6807
        %v6929 = vadd.f32 %v6680, %v6696
        %v6930 = vadd.f32 %v6929, %v6712
        %v6931 = vadd.f32 %v6930, %v6728
        %v6932 = vadd.f32 %v6931, %v6744
        %v6933 = vadd.f32 %v6932, %v6760
        %v6934 = vadd.f32 %v6933, %v6776
        %v6935 = vadd.f32 %v6934, %v6792
        %v6936 = vadd.f32 %v6935, %v6808
        %v6937 = vpack.c.bf16 %v6824, %v6816
        %v6938 = vpack.c.bf16 %v6840, %v6832
        %v6939 = vpack.c.bf16 %v6856, %v6848
        %v6940 = vpack.c.bf16 %v6872, %v6864
        %v6941 = vpack.c.bf16 %v6888, %v6880
        %v6942 = vpack.c.bf16 %v6904, %v6896
        %v6943 = vpack.c.bf16 %v6920, %v6912
        %v6944 = vpack.c.bf16 %v6936, %v6928
        %v6945 = vld [vmem:[%s3] sm:$0xf]
        %v6946 = vld [vmem:[%s3 + $0x4] sm:$0xf]
        %v6947 = vld [vmem:[%s3 + $0x8] sm:$0xf]
        %v6948 = vld [vmem:[%s3 + $0xc] sm:$0xf]
        %v6949 = vld [vmem:[%s3 + $0x10] sm:$0xf]
        %v6950 = vld [vmem:[%s3 + $0x14] sm:$0xf]
        %v6951 = vld [vmem:[%s3 + $0x18] sm:$0xf]
        %v6952 = vld [vmem:[%s3 + $0x1c] sm:$0xf]
        %v6953 = vld [vmem:[%s3 + $0x20] sm:$0xf]
        %v6954 = vld [vmem:[%s3 + $0x24] sm:$0xf]
        %v6955 = vld [vmem:[%s3 + $0x28] sm:$0xf]
        %v6956 = vld [vmem:[%s3 + $0x2c] sm:$0xf]
        %v6957 = vld [vmem:[%s3 + $0x30] sm:$0xf]
        %v6958 = vld [vmem:[%s3 + $0x34] sm:$0xf]
        %v6959 = vld [vmem:[%s3 + $0x38] sm:$0xf]
        %v6960 = vld [vmem:[%s3 + $0x3c] sm:$0xf]
        %v6961 = vld [vmem:[%s4] sm:$0x1]
        %v6963 = vlaneseq
        %v6964 = vshrl.u32 %v6963, 7
        %v6965 = vsub.s32 0, %v6964
        %v6966 = vrot.slane %v6961, %v6965
        %v6984 = vunpack.c.l.b16 %v6945
        %v6985 = vunpack.c.l.b16 %v6946
        %v6986 = vunpack.c.l.b16 %v6947
        %v6987 = vunpack.c.l.b16 %v6948
        %v6988 = vunpack.c.l.b16 %v6949
        %v6989 = vunpack.c.l.b16 %v6950
        %v6990 = vunpack.c.l.b16 %v6951
        %v6991 = vunpack.c.l.b16 %v6952
        %v6992 = vunpack.c.l.b16 %v6953
        %v6993 = vunpack.c.l.b16 %v6954
        %v6994 = vunpack.c.l.b16 %v6955
        %v6995 = vunpack.c.l.b16 %v6956
        %v6996 = vunpack.c.l.b16 %v6957
        %v6997 = vunpack.c.l.b16 %v6958
        %v6998 = vunpack.c.l.b16 %v6959
        %v6999 = vunpack.c.l.b16 %v6960
        %v7000 = vpack.c.b16 %v6985, %v6984
        %v7001 = vpack.c.b16 %v6987, %v6986
        %v7002 = vpack.c.b16 %v6989, %v6988
        %v7003 = vpack.c.b16 %v6991, %v6990
        %v7004 = vpack.c.b16 %v6993, %v6992
        %v7005 = vpack.c.b16 %v6995, %v6994
        %v7006 = vpack.c.b16 %v6997, %v6996
        %v7007 = vpack.c.b16 %v6999, %v6998
        %7016 = vmatprep.subr.bf16.mxu0 0
        %7017 = vmatpush1.bf16.msra.mxu0 %v7000
        %7018 = vmatprep.subr.bf16.mxu0 0
        %7019 = vmatpush1.bf16.msra.mxu0 %v7001
        %7020 = vmatprep.subr.bf16.mxu0 0
        %7021 = vmatpush1.bf16.msra.mxu0 %v7002
        %7022 = vmatprep.subr.bf16.mxu0 0
        %7023 = vmatpush1.bf16.msra.mxu0 %v7003
        %7024 = vmatprep.subr.bf16.mxu0 0
        %7025 = vmatpush1.bf16.msra.mxu0 %v7004
        %7026 = vmatprep.subr.bf16.mxu0 0
        %7027 = vmatpush1.bf16.msra.mxu0 %v7005
        %7028 = vmatprep.subr.bf16.mxu0 0
        %7029 = vmatpush1.bf16.msra.mxu0 %v7006
        %7030 = vmatprep.subr.bf16.mxu0 0
        %7031 = vmatpush1.bf16.msra.mxu0 %v7007
        %7032 = vmatprep.subr.bf16.mxu0 0
        %7033 = vmatpush1.bf16.msra.mxu0 0
        %7034 = vmatprep.subr.bf16.mxu0 0
        %7035 = vmatpush1.bf16.msra.mxu0 0
        %7036 = vmatprep.subr.bf16.mxu0 0
        %7037 = vmatpush1.bf16.msra.mxu0 0
        %7038 = vmatprep.subr.bf16.mxu0 0
        %7039 = vmatpush1.bf16.msra.mxu0 0
        %7040 = vmatprep.subr.bf16.mxu0 0
        %7041 = vmatpush1.bf16.msra.mxu0 0
        %7042 = vmatprep.subr.bf16.mxu0 0
        %7043 = vmatpush1.bf16.msra.mxu0 0
        %7044 = vmatprep.subr.bf16.mxu0 0
        %7045 = vmatpush1.bf16.msra.mxu0 0
        %7046 = vmatprep.subr.bf16.mxu0 0
        %7047 = vmatpush1.bf16.msra.mxu0 0
        %7048 = vmatprep.mubr.bf16.mxu0 0
        %7049 = vmatmul.mubr.bf16.gmra.mrb[0].mxu0 %v6937
        %v7050 = vpop.f32.mrb[0].mxu0
        %v7051 = vadd.f32 %v6966, %v7050
        %v7052 = vpop.f32.mrb[0].mxu0
        %v7053 = vpop.f32.mrb[0].mxu0
        %v7054 = vadd.f32 %v6966, %v7053
        %v7055 = vpop.f32.mrb[0].mxu0
        %7056 = vmatprep.mubr.bf16.mxu0 0
        %7057 = vmatmul.mubr.bf16.gmra.mrb[0].mxu0 %v6938
        %v7058 = vpop.f32.mrb[0].mxu0
        %v7059 = vadd.f32 %v6966, %v7058
        %v7060 = vpop.f32.mrb[0].mxu0
        %v7061 = vpop.f32.mrb[0].mxu0
        %v7062 = vadd.f32 %v6966, %v7061
        %v7063 = vpop.f32.mrb[0].mxu0
        %7064 = vmatprep.mubr.bf16.mxu0 0
        %7065 = vmatmul.mubr.bf16.gmra.mrb[0].mxu0 %v6939
        %v7066 = vpop.f32.mrb[0].mxu0
        %v7067 = vadd.f32 %v6966, %v7066
        %v7068 = vpop.f32.mrb[0].mxu0
        %v7069 = vpop.f32.mrb[0].mxu0
        %v7070 = vadd.f32 %v6966, %v7069
        %v7071 = vpop.f32.mrb[0].mxu0
        %7072 = vmatprep.mubr.bf16.mxu0 0
        %7073 = vmatmul.mubr.bf16.gmra.mrb[0].mxu0 %v6940
        %v7074 = vpop.f32.mrb[0].mxu0
        %v7075 = vadd.f32 %v6966, %v7074
        %v7076 = vpop.f32.mrb[0].mxu0
        %v7077 = vpop.f32.mrb[0].mxu0
        %v7078 = vadd.f32 %v6966, %v7077
        %v7079 = vpop.f32.mrb[0].mxu0
        %7080 = vmatprep.mubr.bf16.mxu0 0
        %7081 = vmatmul.mubr.bf16.gmra.mrb[0].mxu0 %v6941
        %v7082 = vpop.f32.mrb[0].mxu0
        %v7083 = vadd.f32 %v6966, %v7082
        %v7084 = vpop.f32.mrb[0].mxu0
        %v7085 = vpop.f32.mrb[0].mxu0
        %v7086 = vadd.f32 %v6966, %v7085
        %v7087 = vpop.f32.mrb[0].mxu0
        %7088 = vmatprep.mubr.bf16.mxu0 0
        %7089 = vmatmul.mubr.bf16.gmra.mrb[0].mxu0 %v6942
        %v7090 = vpop.f32.mrb[0].mxu0
        %v7091 = vadd.f32 %v6966, %v7090
        %v7092 = vpop.f32.mrb[0].mxu0
        %v7093 = vpop.f32.mrb[0].mxu0
        %v7094 = vadd.f32 %v6966, %v7093
        %v7095 = vpop.f32.mrb[0].mxu0
        %7096 = vmatprep.mubr.bf16.mxu0 0
        %7097 = vmatmul.mubr.bf16.gmra.mrb[0].mxu0 %v6943
        %v7098 = vpop.f32.mrb[0].mxu0
        %v7099 = vadd.f32 %v6966, %v7098
        %v7100 = vpop.f32.mrb[0].mxu0
        %v7101 = vpop.f32.mrb[0].mxu0
        %v7102 = vadd.f32 %v6966, %v7101
        %v7103 = vpop.f32.mrb[0].mxu0
        %7104 = vmatprep.mubr.bf16.mxu0 0
        %7105 = vmatmul.mubr.bf16.gmra.mrb[0].mxu0 %v6944
        %v7106 = vpop.f32.mrb[0].mxu0
        %v7107 = vadd.f32 %v6966, %v7106
        %v7108 = vpop.f32.mrb[0].mxu0
        %v7109 = vpop.f32.mrb[0].mxu0
        %v7110 = vadd.f32 %v6966, %v7109
        %v7111 = vpop.f32.mrb[0].mxu0
        %7112 = vdwg.mxu0
        %v7113 = vmul.f32 %v7051, %v7051
        %v7114 = vmul.f32 %v7054, %v7054
        %v7115 = vmul.f32 %v7059, %v7059
        %v7116 = vmul.f32 %v7062, %v7062
        %v7117 = vmul.f32 %v7067, %v7067
        %v7118 = vmul.f32 %v7070, %v7070
        %v7119 = vmul.f32 %v7075, %v7075
        %v7120 = vmul.f32 %v7078, %v7078
        %v7121 = vmul.f32 %v7083, %v7083
        %v7122 = vmul.f32 %v7086, %v7086
        %v7123 = vmul.f32 %v7091, %v7091
        %v7124 = vmul.f32 %v7094, %v7094
        %v7125 = vmul.f32 %v7099, %v7099
        %v7126 = vmul.f32 %v7102, %v7102
        %v7127 = vmul.f32 %v7107, %v7107
        %v7128 = vmul.f32 %v7110, %v7110
        %v7129 = vpack.c.bf16 %v7114, %v7113
        %v7130 = vpack.c.bf16 %v7116, %v7115
        %v7131 = vpack.c.bf16 %v7118, %v7117
        %v7132 = vpack.c.bf16 %v7120, %v7119
        %v7133 = vpack.c.bf16 %v7122, %v7121
        %v7134 = vpack.c.bf16 %v7124, %v7123
        %v7135 = vpack.c.bf16 %v7126, %v7125
        %v7136 = vpack.c.bf16 %v7128, %v7127
        %v7137 = vld [vmem:[%s5] sm:$0xf]
        %v7138 = vld [vmem:[%s5 + $0x4] sm:$0xf]
        %v7139 = vld [vmem:[%s5 + $0x8] sm:$0xf]
        %v7140 = vld [vmem:[%s5 + $0xc] sm:$0xf]
        %v7141 = vld [vmem:[%s5 + $0x10] sm:$0xf]
        %v7142 = vld [vmem:[%s5 + $0x14] sm:$0xf]
        %v7143 = vld [vmem:[%s5 + $0x18] sm:$0xf]
        %v7144 = vld [vmem:[%s5 + $0x1c] sm:$0xf]
        %v7145 = vld [vmem:[%s5 + $0x20] sm:$0xf]
        %v7146 = vld [vmem:[%s5 + $0x24] sm:$0xf]
        %v7147 = vld [vmem:[%s5 + $0x28] sm:$0xf]
        %v7148 = vld [vmem:[%s5 + $0x2c] sm:$0xf]
        %v7149 = vld [vmem:[%s5 + $0x30] sm:$0xf]
        %v7150 = vld [vmem:[%s5 + $0x34] sm:$0xf]
        %v7151 = vld [vmem:[%s5 + $0x38] sm:$0xf]
        %v7152 = vld [vmem:[%s5 + $0x3c] sm:$0xf]
        %v7169 = vunpack.c.l.b16 %v7137
        %v7170 = vunpack.c.l.b16 %v7138
        %v7171 = vunpack.c.l.b16 %v7139
        %v7172 = vunpack.c.l.b16 %v7140
        %v7173 = vunpack.c.l.b16 %v7141
        %v7174 = vunpack.c.l.b16 %v7142
        %v7175 = vunpack.c.l.b16 %v7143
        %v7176 = vunpack.c.l.b16 %v7144
        %v7177 = vunpack.c.l.b16 %v7145
        %v7178 = vunpack.c.l.b16 %v7146
        %v7179 = vunpack.c.l.b16 %v7147
        %v7180 = vunpack.c.l.b16 %v7148
        %v7181 = vunpack.c.l.b16 %v7149
        %v7182 = vunpack.c.l.b16 %v7150
        %v7183 = vunpack.c.l.b16 %v7151
        %v7184 = vunpack.c.l.b16 %v7152
        %v7185 = vpack.c.b16 %v7170, %v7169
        %v7186 = vpack.c.b16 %v7172, %v7171
        %v7187 = vpack.c.b16 %v7174, %v7173
        %v7188 = vpack.c.b16 %v7176, %v7175
        %v7189 = vpack.c.b16 %v7178, %v7177
        %v7190 = vpack.c.b16 %v7180, %v7179
        %v7191 = vpack.c.b16 %v7182, %v7181
        %v7192 = vpack.c.b16 %v7184, %v7183
        %7201 = vmatprep.subr.bf16.mxu0 0
        %7202 = vmatpush1.bf16.msra.mxu0 %v7185
        %7203 = vmatprep.subr.bf16.mxu0 0
        %7204 = vmatpush1.bf16.msra.mxu0 %v7186
        %7205 = vmatprep.subr.bf16.mxu0 0
        %7206 = vmatpush1.bf16.msra.mxu0 %v7187
        %7207 = vmatprep.subr.bf16.mxu0 0
        %7208 = vmatpush1.bf16.msra.mxu0 %v7188
        %7209 = vmatprep.subr.bf16.mxu0 0
        %7210 = vmatpush1.bf16.msra.mxu0 %v7189
        %7211 = vmatprep.subr.bf16.mxu0 0
        %7212 = vmatpush1.bf16.msra.mxu0 %v7190
        %7213 = vmatprep.subr.bf16.mxu0 0
        %7214 = vmatpush1.bf16.msra.mxu0 %v7191
        %7215 = vmatprep.subr.bf16.mxu0 0
        %7216 = vmatpush1.bf16.msra.mxu0 %v7192
        %7217 = vmatprep.subr.bf16.mxu0 0
        %7218 = vmatpush1.bf16.msra.mxu0 0
        %7219 = vmatprep.subr.bf16.mxu0 0
        %7220 = vmatpush1.bf16.msra.mxu0 0
        %7221 = vmatprep.subr.bf16.mxu0 0
        %7222 = vmatpush1.bf16.msra.mxu0 0
        %7223 = vmatprep.subr.bf16.mxu0 0
        %7224 = vmatpush1.bf16.msra.mxu0 0
        %7225 = vmatprep.subr.bf16.mxu0 0
        %7226 = vmatpush1.bf16.msra.mxu0 0
        %7227 = vmatprep.subr.bf16.mxu0 0
        %7228 = vmatpush1.bf16.msra.mxu0 0
        %7229 = vmatprep.subr.bf16.mxu0 0
        %7230 = vmatpush1.bf16.msra.mxu0 0
        %7231 = vmatprep.subr.bf16.mxu0 0
        %7232 = vmatpush1.bf16.msra.mxu0 0
        %7233 = vmatprep.mubr.bf16.mxu0 0
        %7234 = vmatmul.mubr.bf16.gmra.mrb[0].mxu0 %v7129
        %v7235 = vpop.f32.mrb[0].mxu0
        %v7236 = vadd.f32 1e-05, %v7235
        %v7237 = vpop.f32.mrb[0].mxu0
        %v7238 = vpop.f32.mrb[0].mxu0
        %v7239 = vadd.f32 1e-05, %v7238
        %v7240 = vpop.f32.mrb[0].mxu0
        %7241 = vmatprep.mubr.bf16.mxu0 0
        %7242 = vmatmul.mubr.bf16.gmra.mrb[0].mxu0 %v7130
        %v7243 = vpop.f32.mrb[0].mxu0
        %v7244 = vadd.f32 1e-05, %v7243
        %v7245 = vpop.f32.mrb[0].mxu0
        %v7246 = vpop.f32.mrb[0].mxu0
        %v7247 = vadd.f32 1e-05, %v7246
        %v7248 = vpop.f32.mrb[0].mxu0
        %7249 = vmatprep.mubr.bf16.mxu0 0
        %7250 = vmatmul.mubr.bf16.gmra.mrb[0].mxu0 %v7131
        %v7251 = vpop.f32.mrb[0].mxu0
        %v7252 = vadd.f32 1e-05, %v7251
        %v7253 = vpop.f32.mrb[0].mxu0
        %v7254 = vpop.f32.mrb[0].mxu0
        %v7255 = vadd.f32 1e-05, %v7254
        %v7256 = vpop.f32.mrb[0].mxu0
        %7257 = vmatprep.mubr.bf16.mxu0 0
        %7258 = vmatmul.mubr.bf16.gmra.mrb[0].mxu0 %v7132
        %v7259 = vpop.f32.mrb[0].mxu0
        %v7260 = vadd.f32 1e-05, %v7259
        %v7261 = vpop.f32.mrb[0].mxu0
        %v7262 = vpop.f32.mrb[0].mxu0
        %v7263 = vadd.f32 1e-05, %v7262
        %v7264 = vpop.f32.mrb[0].mxu0
        %7265 = vmatprep.mubr.bf16.mxu0 0
        %7266 = vmatmul.mubr.bf16.gmra.mrb[0].mxu0 %v7133
        %v7267 = vpop.f32.mrb[0].mxu0
        %v7268 = vadd.f32 1e-05, %v7267
        %v7269 = vpop.f32.mrb[0].mxu0
        %v7270 = vpop.f32.mrb[0].mxu0
        %v7271 = vadd.f32 1e-05, %v7270
        %v7272 = vpop.f32.mrb[0].mxu0
        %7273 = vmatprep.mubr.bf16.mxu0 0
        %7274 = vmatmul.mubr.bf16.gmra.mrb[0].mxu0 %v7134
        %v7275 = vpop.f32.mrb[0].mxu0
        %v7276 = vadd.f32 1e-05, %v7275
        %v7277 = vpop.f32.mrb[0].mxu0
        %v7278 = vpop.f32.mrb[0].mxu0
        %v7279 = vadd.f32 1e-05, %v7278
        %v7280 = vpop.f32.mrb[0].mxu0
        %7281 = vmatprep.mubr.bf16.mxu0 0
        %7282 = vmatmul.mubr.bf16.gmra.mrb[0].mxu0 %v7135
        %v7283 = vpop.f32.mrb[0].mxu0
        %v7284 = vadd.f32 1e-05, %v7283
        %v7285 = vpop.f32.mrb[0].mxu0
        %v7286 = vpop.f32.mrb[0].mxu0
        %v7287 = vadd.f32 1e-05, %v7286
        %v7288 = vpop.f32.mrb[0].mxu0
        %7289 = vmatprep.mubr.bf16.mxu0 0
        %7290 = vmatmul.mubr.bf16.gmra.mrb[0].mxu0 %v7136
        %v7291 = vpop.f32.mrb[0].mxu0
        %v7292 = vadd.f32 1e-05, %v7291
        %v7293 = vpop.f32.mrb[0].mxu0
        %v7294 = vpop.f32.mrb[0].mxu0
        %v7295 = vadd.f32 1e-05, %v7294
        %v7296 = vpop.f32.mrb[0].mxu0
        %7297 = vdwg.mxu0
        %v7298 = vrsqrt.pop %v7236
        %v7299 = vrsqrt.pop %v7239
        %v7300 = vrsqrt.pop %v7244
        %v7301 = vrsqrt.pop %v7247
        %v7302 = vrsqrt.pop %v7252
        %v7303 = vrsqrt.pop %v7255
        %v7304 = vrsqrt.pop %v7260
        %v7305 = vrsqrt.pop %v7263
        %v7306 = vrsqrt.pop %v7268
        %v7307 = vrsqrt.pop %v7271
        %v7308 = vrsqrt.pop %v7276
        %v7309 = vrsqrt.pop %v7279
        %v7310 = vrsqrt.pop %v7284
        %v7311 = vrsqrt.pop %v7287
        %v7312 = vrsqrt.pop %v7292
        %v7313 = vrsqrt.pop %v7295
        %v7314 = vmul.f32 %v7051, %v7298
        %v7315 = vmul.f32 %v7054, %v7299
        %v7316 = vmul.f32 %v7059, %v7300
        %v7317 = vmul.f32 %v7062, %v7301
        %v7318 = vmul.f32 %v7067, %v7302
        %v7319 = vmul.f32 %v7070, %v7303
        %v7320 = vmul.f32 %v7075, %v7304
        %v7321 = vmul.f32 %v7078, %v7305
        %v7322 = vmul.f32 %v7083, %v7306
        %v7323 = vmul.f32 %v7086, %v7307
        %v7324 = vmul.f32 %v7091, %v7308
        %v7325 = vmul.f32 %v7094, %v7309
        %v7326 = vmul.f32 %v7099, %v7310
        %v7327 = vmul.f32 %v7102, %v7311
        %v7328 = vmul.f32 %v7107, %v7312
        %v7329 = vmul.f32 %v7110, %v7313
        %v7330 = vld [vmem:[%s6] sm:$0x1]
        %v7332 = vlaneseq
        %v7333 = vshrl.u32 %v7332, 7
        %v7334 = vsub.s32 0, %v7333
        %v7335 = vrot.slane %v7330, %v7334
        %v7337 = vmul.f32 %v7314, %v7335
        %v7338 = vmul.f32 %v7315, %v7335
        %v7339 = vmul.f32 %v7316, %v7335
        %v7340 = vmul.f32 %v7317, %v7335
        %v7341 = vmul.f32 %v7318, %v7335
        %v7342 = vmul.f32 %v7319, %v7335
        %v7343 = vmul.f32 %v7320, %v7335
        %v7344 = vmul.f32 %v7321, %v7335
        %v7345 = vmul.f32 %v7322, %v7335
        %v7346 = vmul.f32 %v7323, %v7335
        %v7347 = vmul.f32 %v7324, %v7335
        %v7348 = vmul.f32 %v7325, %v7335
        %v7349 = vmul.f32 %v7326, %v7335
        %v7350 = vmul.f32 %v7327, %v7335
        %v7351 = vmul.f32 %v7328, %v7335
        %v7352 = vmul.f32 %v7329, %v7335
        %v7353 = vld [vmem:[%s7] sm:$0x1]
        %v7355 = vlaneseq
        %v7356 = vshrl.u32 %v7355, 7
        %v7357 = vsub.s32 0, %v7356
        %v7358 = vrot.slane %v7353, %v7357
        %v7360 = vadd.f32 %v7337, %v7358
        %v7361 = vadd.f32 %v7338, %v7358
        %v7362 = vadd.f32 %v7339, %v7358
        %v7363 = vadd.f32 %v7340, %v7358
        %v7364 = vadd.f32 %v7341, %v7358
        %v7365 = vadd.f32 %v7342, %v7358
        %v7366 = vadd.f32 %v7343, %v7358
        %v7367 = vadd.f32 %v7344, %v7358
        %v7368 = vadd.f32 %v7345, %v7358
        %v7369 = vadd.f32 %v7346, %v7358
        %v7370 = vadd.f32 %v7347, %v7358
        %v7371 = vadd.f32 %v7348, %v7358
        %v7372 = vadd.f32 %v7349, %v7358
        %v7373 = vadd.f32 %v7350, %v7358
        %v7374 = vadd.f32 %v7351, %v7358
        %v7375 = vadd.f32 %v7352, %v7358
        %7376 = vst [vmem:[%s298] sm:$0xff] %v7360
        %7377 = vst [vmem:[%s298 + $0x8] sm:$0xff] %v7361
        %7378 = vst [vmem:[%s298 + $0x10] sm:$0xff] %v7362
        %7379 = vst [vmem:[%s298 + $0x18] sm:$0xff] %v7363
        %7380 = vst [vmem:[%s298 + $0x20] sm:$0xff] %v7364
        %7381 = vst [vmem:[%s298 + $0x28] sm:$0xff] %v7365
        %7382 = vst [vmem:[%s298 + $0x30] sm:$0xff] %v7366
        %7383 = vst [vmem:[%s298 + $0x38] sm:$0xff] %v7367
        %7384 = vst [vmem:[%s298 + $0x40] sm:$0xff] %v7368
        %7385 = vst [vmem:[%s298 + $0x48] sm:$0xff] %v7369
        %7386 = vst [vmem:[%s298 + $0x50] sm:$0xff] %v7370
        %7387 = vst [vmem:[%s298 + $0x58] sm:$0xff] %v7371
        %7388 = vst [vmem:[%s298 + $0x60] sm:$0xff] %v7372
        %7389 = vst [vmem:[%s298 + $0x68] sm:$0xff] %v7373
        %7390 = vst [vmem:[%s298 + $0x70] sm:$0xff] %v7374
        %7391 = vst [vmem:[%s298 + $0x78] sm:$0xff] %v7375
        %s7392 = sand.u32 %s203, 1
        %s7393 = scalar_lea.sflag [#allocation3], %s7392
        %s7394 = sand.u32 %s203, 1
        %s7395 = smul.addr %s7394, 128
        %s7396 = scalar_lea.vmem [#allocation2], %s7395
        // Predicated region
        $region53: #{tpu_custom_call.1} parent=51 // pred_check
          %p7397 = pneg %p213
        $region54: #{tpu_custom_call.1} parent=51 // pred_check_branch
          %7399 = sbr.rel (%p7397) target = $region56
        $region55: #{tpu_custom_call.1} parent=51 // pred_region
          %s7400 = smul.u32 16, %s22
          %s7402 = ssub.s32 2048, 2048
          %7403 = vsyncadd %s7393, %s7402
          %s7404 = smul.addr %s7400, 128
          %s7405 = scalar_lea.hbm %s8, %s7404
          %s7406 = sshll.u32 %s7396, 4
          %s7407 = int_to_ptr.vmem [resolvable:$true] %s7406
          %7412 = dma.vmem_to_hbm [thread:$0]  %s7407, 2048, %s7405, %s7393, 128, 128, 8
        $region56: #{tpu_custom_call.1} parent=51 // pred_fallthru
          _
      $region52: #{tpu_custom_call.1} parent=5 // pred_fallthru
        _
      %p7413 = scmp.le.s32.totalorder 2, %s17
      // Predicated region
      $region57: #{tpu_custom_call.1} parent=5 // pred_check
        %p7414 = pneg %p7413
      $region58: #{tpu_custom_call.1} parent=5 // pred_check_branch
        %7416 = sbr.rel (%p7414) target = $region60
      $region59: #{tpu_custom_call.1} parent=5 // pred_region
        %s7417 = ssub.s32 %s17, 2
        // Predicated region
        $region61: #{tpu_custom_call.1} parent=59 // pred_check
          %p7418 = pneg %p219
        $region62: #{tpu_custom_call.1} parent=59 // pred_check_branch
          %7420 = sbr.rel (%p7418) target = $region64
        $region63: #{tpu_custom_call.1} parent=59 // pred_region
          %s7421 = sand.u32 %s204, 1
          %s7422 = scalar_lea.sflag [#allocation3], %s7421
          %s7423 = sand.u32 %s204, 1
          %s7424 = smul.addr %s7423, 128
          %s7425 = scalar_lea.vmem [#allocation2], %s7424
          %7426 = dma.done %s7422, 2048
        $region64: #{tpu_custom_call.1} parent=59 // pred_fallthru
          _
      $region60: #{tpu_custom_call.1} parent=5 // pred_fallthru
        _
    $region6: #{tpu_custom_call.1} parent=1 // loop_footer
      %s21 = sadd.s32 1, %s17
    $region7: #{tpu_custom_call.1} parent=1 // loop_footer_branch
      %16 = sbr.rel target = $region3
    $region8: #{tpu_custom_call.1} parent=1 // loop_exit
      _
    %7427 = vsyncpa [#allocation3], 1
    %s7428 = scalar_lea.sflag [#allocation3], 1
    %7429 = vsyncpa %s7428, 1

</llo_original>
